<compile_context>
chip_gen: v5e
topology: v5e:2x2
jax: 0.10.0
libtpu: 0.0.40
codegen_flags: <defaults>
</compile_context>

<pallas_src>
import functools

import jax
import jax.numpy as jnp
from jax import lax
from jax.experimental import pallas as pl
from jax.experimental.pallas import tpu as pltpu


def _round_up(x, m):
    return (x + m - 1) // m * m


# ------------------------------ fused kernel ------------------------------- #

def _unet_kernel(x_ref, w1_ref, b1_ref, s1m_ref, w2_ref, b2_ref, s2m_ref,
                 w3_ref, b3_ref, w4_ref, b4_ref, o_ref,
                 s1, p1, col2, s2, *, P1, P2):
    """Whole SimpleUNet forward for one batch element (grid is over batch).

    x_ref : (Lin1, 1)    zero-padded input image, flattened with row pitch P1.
    w1_ref: (9, C1)      conv1 taps (f32, Cin=1 -> VPU broadcast path).
    s1m   : (NP2, LM1)   0/1 pool-1 compaction matrix (emits padded map, pitch P2).
    w2_ref: (9*C1, C2)   conv2 weights, taps folded into the contraction dim.
    s2m   : (M3, LM2)    0/1 pool-2 compaction matrix.
    w3_ref: (C2, 4*C3)   deconv1 as GEMM (per-pixel 2x2*C3 patch).
    w4_ref: (4*C3, 16)   deconv2 fused on deconv1's un-shuffled layout
                         (block-diagonal, columns ordered as 4x4 sub-pixels).
    o_ref : (M3, 16)     per bottleneck pixel: its 4x4 block of final pixels.
    s1/p1/col2/s2        VMEM scratch (conv1 out, padded pooled map, conv2
                         im2col LHS, conv2 out).
    """
    Lout1, C1 = s1.shape
    Lout2, C2 = s2.shape
    LM1 = s1m_ref.shape[1]
    LM2 = s2m_ref.shape[1]

    # ---- conv1 (1 -> C1, 3x3, pad 1) + ReLU: 9 broadcast FMAs (f32 VPU) ---- #
    acc1 = jnp.zeros((Lout1, C1), jnp.float32)
    for dy in range(3):
        for dx in range(3):
            tap = dy * 3 + dx
            acc1 = acc1 + (x_ref[pl.ds(dy * P1 + dx, Lout1), :] *
                           w1_ref[pl.ds(tap, 1), :])
    s1[...] = jnp.maximum(acc1 + b1_ref[...], 0.0)

    # ---- maxpool 2x2 #1: 4 offset reads + maxes, then 0/1 matmul compaction.
    m1 = jnp.maximum(
        jnp.maximum(s1[pl.ds(0, LM1), :], s1[pl.ds(1, LM1), :]),
        jnp.maximum(s1[pl.ds(P1, LM1), :], s1[pl.ds(P1 + 1, LM1), :]))
    # p1 = zero-padded pooled map (pitch P2), ready for conv2's tap slices.
    p1[...] = jnp.dot(s1m_ref[...], m1, preferred_element_type=jnp.float32)

    # ---- conv2 (C1 -> C2, 3x3, pad 1) + ReLU: taps folded into K = 9*C1 ---- #
    for dy in range(3):
        for dx in range(3):
            tap = dy * 3 + dx
            col2[:, tap * C1:(tap + 1) * C1] = p1[pl.ds(dy * P2 + dx, Lout2), :]
    y2 = jnp.dot(col2[...].astype(jnp.bfloat16), w2_ref[...],
                 preferred_element_type=jnp.float32)
    s2[...] = jnp.maximum(y2 + b2_ref[...], 0.0)

    # ---- maxpool 2x2 #2 ---- #
    m2 = jnp.maximum(
        jnp.maximum(s2[pl.ds(0, LM2), :], s2[pl.ds(1, LM2), :]),
        jnp.maximum(s2[pl.ds(P2, LM2), :], s2[pl.ds(P2 + 1, LM2), :]))
    z = jnp.dot(s2m_ref[...], m2, preferred_element_type=jnp.float32)  # (M3, C2)

    # ---- decoder: deconv(2,2)+ReLU, deconv(2,2)+sigmoid as two GEMMs ------- #
    d1 = jnp.dot(z.astype(jnp.bfloat16), w3_ref[...],
                 preferred_element_type=jnp.float32)
    d1 = jnp.maximum(d1 + b3_ref[...], 0.0)                           # (M3, 4*C3)
    f = jnp.dot(d1.astype(jnp.bfloat16), w4_ref[...],
                preferred_element_type=jnp.float32)                   # (M3, 16)
    o_ref[...] = jax.nn.sigmoid(f + b4_ref[...]).astype(o_ref.dtype)


# ------------------------------ forward wrapper ----------------------------- #

def simple_unet_forward(x_nchw, params):
    N, Cin, H, W = x_nchw.shape
    assert Cin == 1 and H % 4 == 0 and W % 4 == 0
    C1, C2, C3 = 16, 32, 16

    # conv1 / pool1 geometry (pitch-flattened padded image).
    P1 = W + 2
    Lout1 = _round_up(H * P1, 8)
    Lin1 = _round_up(2 * P1 + 2 + Lout1, 8)
    LM1 = Lout1 - P1 - 1
    H2, W2 = H // 2, W // 2
    # conv2 / pool2 geometry (pitch-flattened padded pooled map).
    P2 = W2 + 2
    Lout2 = _round_up(H2 * P2, 8)
    NP2 = _round_up(max((H2 + 2) * P2, 2 * P2 + 2 + Lout2), 8)
    LM2 = Lout2 - P2 - 1
    H3, W3 = H2 // 2, W2 // 2
    M3 = H3 * W3
    assert M3 % 8 == 0, "bottleneck pixel count must be a multiple of 8"

    # ---- input: zero-pad spatially, flatten with row pitch P1 -------------- #
    xp = jnp.pad(x_nchw[:, 0], ((0, 0), (1, 1), (1, 1)))          # (N, H+2, W+2)
    xf = xp.reshape(N, (H + 2) * (W + 2))
    xf = jnp.pad(xf, ((0, 0), (0, Lin1 - (H + 2) * (W + 2))))
    xf = xf.reshape(N * Lin1, 1)

    # ---- weight prepacking (one-time) -------------------------------------- #
    w1m = jnp.transpose(params["w1"], (2, 3, 1, 0)).reshape(9, C1)
    w1m = w1m.astype(jnp.float32)
    b1m = params["b1"].reshape(1, C1).astype(jnp.float32)
    w2m = jnp.transpose(params["w2"], (2, 3, 1, 0)).reshape(9 * C1, C2)
    w2m = w2m.astype(jnp.bfloat16)
    b2m = params["b2"].reshape(1, C2).astype(jnp.float32)
    # deconv1: (Cin, Cout, 2, 2) -> (Cin, (dy,dx,cout)) GEMM weight.
    w3m = jnp.transpose(params["w3"], (0, 2, 3, 1)).reshape(C2, 4 * C3)
    w3m = w3m.astype(jnp.bfloat16)
    b3m = jnp.tile(params["b3"], 4).reshape(1, 4 * C3).astype(jnp.float32)
    # deconv2 fused on deconv1's un-shuffled layout: block-diagonal weight,
    # columns permuted so column index = (2*dy+ey)*4 + (2*dx+ex)  (4x4 block).
    w4m = jnp.transpose(params["w4"], (0, 2, 3, 1)).reshape(C3, 4)
    w4big = jnp.kron(jnp.eye(4, dtype=w4m.dtype), w4m)            # (4*C3, 16)
    w4big = (w4big.reshape(4 * C3, 2, 2, 2, 2)
                   .transpose(0, 1, 3, 2, 4)
                   .reshape(4 * C3, 16)).astype(jnp.bfloat16)
    b4big = jnp.tile(params["b4"], 16).reshape(1, 16).astype(jnp.float32)

    # ---- 0/1 pool-compaction matrices (constant, VMEM-resident) ------------ #
    yo, xo = jnp.meshgrid(jnp.arange(H2), jnp.arange(W2), indexing="ij")
    r1 = ((yo + 1) * P2 + xo + 1).reshape(-1)          # into padded pooled map
    c1 = (2 * P1 * yo + 2 * xo).reshape(-1)            # from shift-max rows
    S1 = jnp.zeros((NP2, LM1), jnp.float32).at[r1, c1].set(1.0)

    y3, x3 = jnp.meshgrid(jnp.arange(H3), jnp.arange(W3), indexing="ij")
    r2 = (y3 * W3 + x3).reshape(-1)
    c2 = (2 * P2 * y3 + 2 * x3).reshape(-1)
    S2 = jnp.zeros((M3, LM2), jnp.float32).at[r2, c2].set(1.0)

    flops = 2 * N * (9 * Lout1 * C1 + NP2 * LM1 * C1 + Lout2 * 9 * C1 * C2
                     + M3 * LM2 * C2 + M3 * C2 * 4 * C3 + M3 * 4 * C3 * 16)
    bytes_accessed = (xf.size * 4 + S1.size * 4 + S2.size * 4
                      + w1m.size * 4 + b1m.size * 4 + w2m.size * 2
                      + b2m.size * 4 + w3m.size * 2 + b3m.size * 4
                      + w4big.size * 2 + b4big.size * 4 + N * M3 * 16 * 4)
    cost = pl.CostEstimate(flops=flops, transcendentals=N * M3 * 16,
                           bytes_accessed=bytes_accessed)

    out = pl.pallas_call(
        functools.partial(_unet_kernel, P1=P1, P2=P2),
        out_shape=jax.ShapeDtypeStruct((N * M3, 16), jnp.float32),
        grid=(N,),
        in_specs=[
            pl.BlockSpec((Lin1, 1), lambda i: (i, 0)),          # per-image input
            pl.BlockSpec((9, C1), lambda i: (0, 0)),            # conv1 weights
            pl.BlockSpec((1, C1), lambda i: (0, 0)),            # conv1 bias
            pl.BlockSpec((NP2, LM1), lambda i: (0, 0)),         # pool1 selection
            pl.BlockSpec((9 * C1, C2), lambda i: (0, 0)),       # conv2 weights
            pl.BlockSpec((1, C2), lambda i: (0, 0)),            # conv2 bias
            pl.BlockSpec((M3, LM2), lambda i: (0, 0)),          # pool2 selection
            pl.BlockSpec((C2, 4 * C3), lambda i: (0, 0)),       # deconv1 weights
            pl.BlockSpec((1, 4 * C3), lambda i: (0, 0)),        # deconv1 bias
            pl.BlockSpec((4 * C3, 16), lambda i: (0, 0)),       # deconv2 weights
            pl.BlockSpec((1, 16), lambda i: (0, 0)),            # deconv2 bias
        ],
        out_specs=pl.BlockSpec((M3, 16), lambda i: (i, 0)),
        scratch_shapes=[
            pltpu.VMEM((Lout1, C1), jnp.float32),               # conv1 output
            pltpu.VMEM((NP2, C1), jnp.float32),                 # padded pooled map
            pltpu.VMEM((Lout2, 9 * C1), jnp.float32),           # conv2 im2col LHS
            pltpu.VMEM((Lout2, C2), jnp.float32),               # conv2 output
        ],
        compiler_params=pltpu.CompilerParams(
            dimension_semantics=("parallel",)),                 # batch across TCs
        cost_estimate=cost,
    )(xf, w1m, b1m, S1, w2m, b2m, S2, w3m, b3m, w4big, b4big)

    # Depth-to-space of the per-bottleneck-pixel 4x4 blocks (tiny XLA op).
    y = out.reshape(N, H3, W3, 4, 4).transpose(0, 1, 3, 2, 4).reshape(N, H, W)
    return y[:, None, :, :]                                      # NCHW
    # TODO(synk): for large spatial sizes, add a row-tile grid axis with a
    # 1-row halo instead of holding a whole image's working set per grid step.


# ----------------------------- pure-XLA reference --------------------------- #

def _ref_conv3x3_relu(x, w_oihw, b):
    w_hwio = jnp.transpose(w_oihw, (2, 3, 1, 0))
    y = lax.conv_general_dilated(
        x, w_hwio, window_strides=(1, 1), padding="SAME",
        dimension_numbers=("NHWC", "HWIO", "NHWC"),
        precision=lax.Precision.HIGHEST)
    return jax.nn.relu(y + b)


def _ref_maxpool(x):
    return lax.reduce_window(x, -jnp.inf, lax.max,
                             (1, 2, 2, 1), (1, 2, 2, 1), "VALID")


def _ref_deconv2x2(x, w_iohw, b):
    y = jnp.einsum("nhwi,iojk->nhjwko", x, w_iohw,
                   precision=lax.Precision.HIGHEST)
    N, H, _, W, _, Cout = y.shape
    return y.reshape(N, 2 * H, 2 * W, Cout) + b


def reference_forward(x_nchw, p):
    x = jnp.transpose(x_nchw, (0, 2, 3, 1))
    x = _ref_maxpool(_ref_conv3x3_relu(x, p["w1"], p["b1"]))
    x = _ref_maxpool(_ref_conv3x3_relu(x, p["w2"], p["b2"]))
    x = jax.nn.relu(_ref_deconv2x2(x, p["w3"], p["b3"]))
    x = jax.nn.sigmoid(_ref_deconv2x2(x, p["w4"], p["b4"]))
    return jnp.transpose(x, (0, 3, 1, 2))


# ---------------------------------- driver ---------------------------------- #

def init_params():
    """Deterministic synthetic parameters with the PyTorch layer shapes."""
    keys = jax.random.split(jax.random.PRNGKey(42), 8)
    def n(k, shape, scale):
        return (scale * jax.random.normal(k, shape)).astype(jnp.float32)
    return {
        # Conv2d(1, 16, 3, padding=1): weight (Cout, Cin, 3, 3), bias (Cout,)
        "w1": n(keys[0], (16, 1, 3, 3), 0.2), "b1": n(keys[1], (16,), 0.1),
        # Conv2d(16, 32, 3, padding=1)
        "w2": n(keys[2], (32, 16, 3, 3), 0.1), "b2": n(keys[3], (32,), 0.1),
        # ConvTranspose2d(32, 16, 2, stride=2): weight (Cin, Cout, 2, 2)
        "w3": n(keys[4], (32, 16, 2, 2), 0.1), "b3": n(keys[5], (16,), 0.1),
        # ConvTranspose2d(16, 1, 2, stride=2)
        "w4": n(keys[6], (16, 1, 2, 2), 0.2), "b4": n(keys[7], (1,), 0.1),
    }


if __name__ == "__main__":
    params = init_params()
    x = jax.random.normal(jax.random.PRNGKey(0), (2, 1, 16, 16),
                          dtype=jnp.float32)

    fwd = jax.jit(simple_unet_forward)
    out = jax.block_until_ready(fwd(x, params))

    assert out.shape == (2, 1, 16, 16), out.shape
    assert out.dtype == jnp.float32
    # sigmoid output must lie in [0, 1]
    assert bool(jnp.all(out >= 0.0)) and bool(jnp.all(out <= 1.0))

    # numerical check vs a pure-XLA f32 reference (bf16 MXU operands => tol)
    ref = jax.block_until_ready(jax.jit(reference_forward)(x, params))
    max_err = float(jnp.max(jnp.abs(out - ref)))
    assert max_err < 5e-2, f"max |err| vs reference = {max_err}"

    print("KERNEL_OK")
</pallas_src>

<mosaic_0001>
module attributes {stable_mosaic.version = 11 : i64} {
  func.func @_unet_kernel(%arg0: i32, %arg1: memref<328x1xf32, #tpu.memory_space<vmem>>, %arg2: memref<9x16xf32, #tpu.memory_space<vmem>>, %arg3: memref<1x16xf32, #tpu.memory_space<vmem>>, %arg4: memref<104x269xf32, #tpu.memory_space<vmem>>, %arg5: memref<144x32xbf16, #tpu.memory_space<vmem>>, %arg6: memref<1x32xf32, #tpu.memory_space<vmem>>, %arg7: memref<16x69xf32, #tpu.memory_space<vmem>>, %arg8: memref<32x64xbf16, #tpu.memory_space<vmem>>, %arg9: memref<1x64xf32, #tpu.memory_space<vmem>>, %arg10: memref<64x16xbf16, #tpu.memory_space<vmem>>, %arg11: memref<1x16xf32, #tpu.memory_space<vmem>>, %arg12: memref<16x16xf32, #tpu.memory_space<vmem>>, %arg13: memref<288x16xf32, #tpu.memory_space<vmem>>, %arg14: memref<104x16xf32, #tpu.memory_space<vmem>>, %arg15: memref<80x144xf32, #tpu.memory_space<vmem>>, %arg16: memref<80x32xf32, #tpu.memory_space<vmem>>) attributes {dimension_semantics = [#tpu.dimension_semantics<parallel>], iteration_bounds = array<i64: 2>, scalar_prefetch = 0 : i64, scratch_operands = 4 : i64, tpu.core_type = #tpu.core_type<tc>, window_params = [{transform_indices = @transform_0, window_bounds = array<i64: 328, 1>}, {pipeline_mode = #tpu.pipeline_mode<synchronous>, transform_indices = @transform_1, window_bounds = array<i64: 9, 16>}, {pipeline_mode = #tpu.pipeline_mode<synchronous>, transform_indices = @transform_2, window_bounds = array<i64: 1, 16>}, {pipeline_mode = #tpu.pipeline_mode<synchronous>, transform_indices = @transform_3, window_bounds = array<i64: 104, 269>}, {pipeline_mode = #tpu.pipeline_mode<synchronous>, transform_indices = @transform_4, window_bounds = array<i64: 144, 32>}, {pipeline_mode = #tpu.pipeline_mode<synchronous>, transform_indices = @transform_5, window_bounds = array<i64: 1, 32>}, {pipeline_mode = #tpu.pipeline_mode<synchronous>, transform_indices = @transform_6, window_bounds = array<i64: 16, 69>}, {pipeline_mode = #tpu.pipeline_mode<synchronous>, transform_indices = @transform_7, window_bounds = array<i64: 32, 64>}, {pipeline_mode = #tpu.pipeline_mode<synchronous>, transform_indices = @transform_8, window_bounds = array<i64: 1, 64>}, {pipeline_mode = #tpu.pipeline_mode<synchronous>, transform_indices = @transform_9, window_bounds = array<i64: 64, 16>}, {pipeline_mode = #tpu.pipeline_mode<synchronous>, transform_indices = @transform_10, window_bounds = array<i64: 1, 16>}, {transform_indices = @transform_11, window_bounds = array<i64: 16, 16>}]} {
    %cst = arith.constant 0.000000e+00 : f32
    %0 = vector.broadcast %cst : f32 to vector<288x16xf32>
    %c0 = arith.constant 0 : index
    %c0_0 = arith.constant 0 : index
    %1 = vector.load %arg1[%c0, %c0_0] : memref<328x1xf32, #tpu.memory_space<vmem>>, vector<288x1xf32>
    %c0_1 = arith.constant 0 : index
    %c0_2 = arith.constant 0 : index
    %2 = vector.load %arg2[%c0_1, %c0_2] : memref<9x16xf32, #tpu.memory_space<vmem>>, vector<1x16xf32>
    %3 = vector.broadcast %1 : vector<288x1xf32> to vector<288x16xf32>
    %4 = vector.broadcast %2 : vector<1x16xf32> to vector<288x16xf32>
    %5 = arith.mulf %3, %4 : vector<288x16xf32>
    %6 = arith.addf %0, %5 : vector<288x16xf32>
    %c1 = arith.constant 1 : index
    %c0_3 = arith.constant 0 : index
    %7 = vector.load %arg1[%c1, %c0_3] : memref<328x1xf32, #tpu.memory_space<vmem>>, vector<288x1xf32>
    %c1_4 = arith.constant 1 : index
    %c0_5 = arith.constant 0 : index
    %8 = vector.load %arg2[%c1_4, %c0_5] : memref<9x16xf32, #tpu.memory_space<vmem>>, vector<1x16xf32>
    %9 = vector.broadcast %7 : vector<288x1xf32> to vector<288x16xf32>
    %10 = vector.broadcast %8 : vector<1x16xf32> to vector<288x16xf32>
    %11 = arith.mulf %9, %10 : vector<288x16xf32>
    %12 = arith.addf %6, %11 : vector<288x16xf32>
    %c2 = arith.constant 2 : index
    %c0_6 = arith.constant 0 : index
    %13 = vector.load %arg1[%c2, %c0_6] : memref<328x1xf32, #tpu.memory_space<vmem>>, vector<288x1xf32>
    %c2_7 = arith.constant 2 : index
    %c0_8 = arith.constant 0 : index
    %14 = vector.load %arg2[%c2_7, %c0_8] : memref<9x16xf32, #tpu.memory_space<vmem>>, vector<1x16xf32>
    %15 = vector.broadcast %13 : vector<288x1xf32> to vector<288x16xf32>
    %16 = vector.broadcast %14 : vector<1x16xf32> to vector<288x16xf32>
    %17 = arith.mulf %15, %16 : vector<288x16xf32>
    %18 = arith.addf %12, %17 : vector<288x16xf32>
    %c18 = arith.constant 18 : index
    %c0_9 = arith.constant 0 : index
    %19 = vector.load %arg1[%c18, %c0_9] : memref<328x1xf32, #tpu.memory_space<vmem>>, vector<288x1xf32>
    %c3 = arith.constant 3 : index
    %c0_10 = arith.constant 0 : index
    %20 = vector.load %arg2[%c3, %c0_10] : memref<9x16xf32, #tpu.memory_space<vmem>>, vector<1x16xf32>
    %21 = vector.broadcast %19 : vector<288x1xf32> to vector<288x16xf32>
    %22 = vector.broadcast %20 : vector<1x16xf32> to vector<288x16xf32>
    %23 = arith.mulf %21, %22 : vector<288x16xf32>
    %24 = arith.addf %18, %23 : vector<288x16xf32>
    %c19 = arith.constant 19 : index
    %c0_11 = arith.constant 0 : index
    %25 = vector.load %arg1[%c19, %c0_11] : memref<328x1xf32, #tpu.memory_space<vmem>>, vector<288x1xf32>
    %c4 = arith.constant 4 : index
    %c0_12 = arith.constant 0 : index
    %26 = vector.load %arg2[%c4, %c0_12] : memref<9x16xf32, #tpu.memory_space<vmem>>, vector<1x16xf32>
    %27 = vector.broadcast %25 : vector<288x1xf32> to vector<288x16xf32>
    %28 = vector.broadcast %26 : vector<1x16xf32> to vector<288x16xf32>
    %29 = arith.mulf %27, %28 : vector<288x16xf32>
    %30 = arith.addf %24, %29 : vector<288x16xf32>
    %c20 = arith.constant 20 : index
    %c0_13 = arith.constant 0 : index
    %31 = vector.load %arg1[%c20, %c0_13] : memref<328x1xf32, #tpu.memory_space<vmem>>, vector<288x1xf32>
    %c5 = arith.constant 5 : index
    %c0_14 = arith.constant 0 : index
    %32 = vector.load %arg2[%c5, %c0_14] : memref<9x16xf32, #tpu.memory_space<vmem>>, vector<1x16xf32>
    %33 = vector.broadcast %31 : vector<288x1xf32> to vector<288x16xf32>
    %34 = vector.broadcast %32 : vector<1x16xf32> to vector<288x16xf32>
    %35 = arith.mulf %33, %34 : vector<288x16xf32>
    %36 = arith.addf %30, %35 : vector<288x16xf32>
    %c36 = arith.constant 36 : index
    %c0_15 = arith.constant 0 : index
    %37 = vector.load %arg1[%c36, %c0_15] : memref<328x1xf32, #tpu.memory_space<vmem>>, vector<288x1xf32>
    %c6 = arith.constant 6 : index
    %c0_16 = arith.constant 0 : index
    %38 = vector.load %arg2[%c6, %c0_16] : memref<9x16xf32, #tpu.memory_space<vmem>>, vector<1x16xf32>
    %39 = vector.broadcast %37 : vector<288x1xf32> to vector<288x16xf32>
    %40 = vector.broadcast %38 : vector<1x16xf32> to vector<288x16xf32>
    %41 = arith.mulf %39, %40 : vector<288x16xf32>
    %42 = arith.addf %36, %41 : vector<288x16xf32>
    %c37 = arith.constant 37 : index
    %c0_17 = arith.constant 0 : index
    %43 = vector.load %arg1[%c37, %c0_17] : memref<328x1xf32, #tpu.memory_space<vmem>>, vector<288x1xf32>
    %c7 = arith.constant 7 : index
    %c0_18 = arith.constant 0 : index
    %44 = vector.load %arg2[%c7, %c0_18] : memref<9x16xf32, #tpu.memory_space<vmem>>, vector<1x16xf32>
    %45 = vector.broadcast %43 : vector<288x1xf32> to vector<288x16xf32>
    %46 = vector.broadcast %44 : vector<1x16xf32> to vector<288x16xf32>
    %47 = arith.mulf %45, %46 : vector<288x16xf32>
    %48 = arith.addf %42, %47 : vector<288x16xf32>
    %c38 = arith.constant 38 : index
    %c0_19 = arith.constant 0 : index
    %49 = vector.load %arg1[%c38, %c0_19] : memref<328x1xf32, #tpu.memory_space<vmem>>, vector<288x1xf32>
    %c8 = arith.constant 8 : index
    %c0_20 = arith.constant 0 : index
    %50 = vector.load %arg2[%c8, %c0_20] : memref<9x16xf32, #tpu.memory_space<vmem>>, vector<1x16xf32>
    %51 = vector.broadcast %49 : vector<288x1xf32> to vector<288x16xf32>
    %52 = vector.broadcast %50 : vector<1x16xf32> to vector<288x16xf32>
    %53 = arith.mulf %51, %52 : vector<288x16xf32>
    %54 = arith.addf %48, %53 : vector<288x16xf32>
    %c0_21 = arith.constant 0 : index
    %c0_22 = arith.constant 0 : index
    %55 = vector.load %arg3[%c0_21, %c0_22] : memref<1x16xf32, #tpu.memory_space<vmem>>, vector<1x16xf32>
    %56 = vector.broadcast %55 : vector<1x16xf32> to vector<288x16xf32>
    %57 = arith.addf %54, %56 : vector<288x16xf32>
    %cst_23 = arith.constant 0.000000e+00 : f32
    %58 = vector.broadcast %cst_23 : f32 to vector<288x16xf32>
    %59 = arith.maximumf %57, %58 : vector<288x16xf32>
    %c0_24 = arith.constant 0 : index
    %c0_25 = arith.constant 0 : index
    %60 = vector.load %arg13[%c0_24, %c0_25] : memref<288x16xf32, #tpu.memory_space<vmem>>, vector<288x16xf32>
    tpu.vector_store %arg13[%c0_24, %c0_25], %59 {strides = array<i32>} : memref<288x16xf32, #tpu.memory_space<vmem>>, vector<288x16xf32>,
    %c0_26 = arith.constant 0 : index
    %c0_27 = arith.constant 0 : index
    %61 = vector.load %arg13[%c0_26, %c0_27] : memref<288x16xf32, #tpu.memory_space<vmem>>, vector<269x16xf32>
    %c1_28 = arith.constant 1 : index
    %c0_29 = arith.constant 0 : index
    %62 = vector.load %arg13[%c1_28, %c0_29] : memref<288x16xf32, #tpu.memory_space<vmem>>, vector<269x16xf32>
    %63 = arith.maximumf %61, %62 : vector<269x16xf32>
    %c18_30 = arith.constant 18 : index
    %c0_31 = arith.constant 0 : index
    %64 = vector.load %arg13[%c18_30, %c0_31] : memref<288x16xf32, #tpu.memory_space<vmem>>, vector<269x16xf32>
    %c19_32 = arith.constant 19 : index
    %c0_33 = arith.constant 0 : index
    %65 = vector.load %arg13[%c19_32, %c0_33] : memref<288x16xf32, #tpu.memory_space<vmem>>, vector<269x16xf32>
    %66 = arith.maximumf %64, %65 : vector<269x16xf32>
    %67 = arith.maximumf %63, %66 : vector<269x16xf32>
    %c0_34 = arith.constant 0 : index
    %c0_35 = arith.constant 0 : index
    %68 = vector.load %arg4[%c0_34, %c0_35] : memref<104x269xf32, #tpu.memory_space<vmem>>, vector<104x269xf32>
    %cst_36 = arith.constant dense<0.000000e+00> : vector<104x16xf32>
    %69 = tpu.matmul %68, %67, %cst_36 {dimension_numbers = #tpu.dot_dimension_numbers<[1], [0], [0], [1], [0, 0, 1, 1], [], []>} : vector<104x269xf32>, vector<269x16xf32>, vector<104x16xf32> -> vector<104x16xf32>
    %c0_37 = arith.constant 0 : index
    %c0_38 = arith.constant 0 : index
    %70 = vector.load %arg14[%c0_37, %c0_38] : memref<104x16xf32, #tpu.memory_space<vmem>>, vector<104x16xf32>
    tpu.vector_store %arg14[%c0_37, %c0_38], %69 {strides = array<i32>} : memref<104x16xf32, #tpu.memory_space<vmem>>, vector<104x16xf32>,
    %c0_39 = arith.constant 0 : index
    %c0_40 = arith.constant 0 : index
    %71 = vector.load %arg14[%c0_39, %c0_40] : memref<104x16xf32, #tpu.memory_space<vmem>>, vector<80x16xf32>
    %c0_41 = arith.constant 0 : index
    %c0_42 = arith.constant 0 : index
    %72 = vector.load %arg15[%c0_41, %c0_42] : memref<80x144xf32, #tpu.memory_space<vmem>>, vector<80x16xf32>
    tpu.vector_store %arg15[%c0_41, %c0_42], %71 {strides = array<i32>} : memref<80x144xf32, #tpu.memory_space<vmem>>, vector<80x16xf32>,
    %c1_43 = arith.constant 1 : index
    %c0_44 = arith.constant 0 : index
    %73 = vector.load %arg14[%c1_43, %c0_44] : memref<104x16xf32, #tpu.memory_space<vmem>>, vector<80x16xf32>
    %c0_45 = arith.constant 0 : index
    %c16 = arith.constant 16 : index
    %74 = vector.load %arg15[%c0_45, %c16] : memref<80x144xf32, #tpu.memory_space<vmem>>, vector<80x16xf32>
    tpu.vector_store %arg15[%c0_45, %c16], %73 {strides = array<i32>} : memref<80x144xf32, #tpu.memory_space<vmem>>, vector<80x16xf32>,
    %c2_46 = arith.constant 2 : index
    %c0_47 = arith.constant 0 : index
    %75 = vector.load %arg14[%c2_46, %c0_47] : memref<104x16xf32, #tpu.memory_space<vmem>>, vector<80x16xf32>
    %c0_48 = arith.constant 0 : index
    %c32 = arith.constant 32 : index
    %76 = vector.load %arg15[%c0_48, %c32] : memref<80x144xf32, #tpu.memory_space<vmem>>, vector<80x16xf32>
    tpu.vector_store %arg15[%c0_48, %c32], %75 {strides = array<i32>} : memref<80x144xf32, #tpu.memory_space<vmem>>, vector<80x16xf32>,
    %c10 = arith.constant 10 : index
    %c0_49 = arith.constant 0 : index
    %77 = vector.load %arg14[%c10, %c0_49] : memref<104x16xf32, #tpu.memory_space<vmem>>, vector<80x16xf32>
    %c0_50 = arith.constant 0 : index
    %c48 = arith.constant 48 : index
    %78 = vector.load %arg15[%c0_50, %c48] : memref<80x144xf32, #tpu.memory_space<vmem>>, vector<80x16xf32>
    tpu.vector_store %arg15[%c0_50, %c48], %77 {strides = array<i32>} : memref<80x144xf32, #tpu.memory_space<vmem>>, vector<80x16xf32>,
    %c11 = arith.constant 11 : index
    %c0_51 = arith.constant 0 : index
    %79 = vector.load %arg14[%c11, %c0_51] : memref<104x16xf32, #tpu.memory_space<vmem>>, vector<80x16xf32>
    %c0_52 = arith.constant 0 : index
    %c64 = arith.constant 64 : index
    %80 = vector.load %arg15[%c0_52, %c64] : memref<80x144xf32, #tpu.memory_space<vmem>>, vector<80x16xf32>
    tpu.vector_store %arg15[%c0_52, %c64], %79 {strides = array<i32>} : memref<80x144xf32, #tpu.memory_space<vmem>>, vector<80x16xf32>,
    %c12 = arith.constant 12 : index
    %c0_53 = arith.constant 0 : index
    %81 = vector.load %arg14[%c12, %c0_53] : memref<104x16xf32, #tpu.memory_space<vmem>>, vector<80x16xf32>
    %c0_54 = arith.constant 0 : index
    %c80 = arith.constant 80 : index
    %82 = vector.load %arg15[%c0_54, %c80] : memref<80x144xf32, #tpu.memory_space<vmem>>, vector<80x16xf32>
    tpu.vector_store %arg15[%c0_54, %c80], %81 {strides = array<i32>} : memref<80x144xf32, #tpu.memory_space<vmem>>, vector<80x16xf32>,
    %c20_55 = arith.constant 20 : index
    %c0_56 = arith.constant 0 : index
    %83 = vector.load %arg14[%c20_55, %c0_56] : memref<104x16xf32, #tpu.memory_space<vmem>>, vector<80x16xf32>
    %c0_57 = arith.constant 0 : index
    %c96 = arith.constant 96 : index
    %84 = vector.load %arg15[%c0_57, %c96] : memref<80x144xf32, #tpu.memory_space<vmem>>, vector<80x16xf32>
    tpu.vector_store %arg15[%c0_57, %c96], %83 {strides = array<i32>} : memref<80x144xf32, #tpu.memory_space<vmem>>, vector<80x16xf32>,
    %c21 = arith.constant 21 : index
    %c0_58 = arith.constant 0 : index
    %85 = vector.load %arg14[%c21, %c0_58] : memref<104x16xf32, #tpu.memory_space<vmem>>, vector<80x16xf32>
    %c0_59 = arith.constant 0 : index
    %c112 = arith.constant 112 : index
    %86 = vector.load %arg15[%c0_59, %c112] : memref<80x144xf32, #tpu.memory_space<vmem>>, vector<80x16xf32>
    tpu.vector_store %arg15[%c0_59, %c112], %85 {strides = array<i32>} : memref<80x144xf32, #tpu.memory_space<vmem>>, vector<80x16xf32>,
    %c22 = arith.constant 22 : index
    %c0_60 = arith.constant 0 : index
    %87 = vector.load %arg14[%c22, %c0_60] : memref<104x16xf32, #tpu.memory_space<vmem>>, vector<80x16xf32>
    %c0_61 = arith.constant 0 : index
    %c128 = arith.constant 128 : index
    %88 = vector.load %arg15[%c0_61, %c128] : memref<80x144xf32, #tpu.memory_space<vmem>>, vector<80x16xf32>
    tpu.vector_store %arg15[%c0_61, %c128], %87 {strides = array<i32>} : memref<80x144xf32, #tpu.memory_space<vmem>>, vector<80x16xf32>,
    %c0_62 = arith.constant 0 : index
    %c0_63 = arith.constant 0 : index
    %89 = vector.load %arg15[%c0_62, %c0_63] : memref<80x144xf32, #tpu.memory_space<vmem>>, vector<80x144xf32>
    %90 = arith.truncf %89 : vector<80x144xf32> to vector<80x144xbf16>
    %c0_64 = arith.constant 0 : index
    %c0_65 = arith.constant 0 : index
    %91 = vector.load %arg5[%c0_64, %c0_65] : memref<144x32xbf16, #tpu.memory_space<vmem>>, vector<144x32xbf16>
    %cst_66 = arith.constant dense<0.000000e+00> : vector<80x32xf32>
    %92 = tpu.matmul %90, %91, %cst_66 {dimension_numbers = #tpu.dot_dimension_numbers<[1], [0], [0], [1], [0, 0, 1, 1], [], []>} : vector<80x144xbf16>, vector<144x32xbf16>, vector<80x32xf32> -> vector<80x32xf32>
    %c0_67 = arith.constant 0 : index
    %c0_68 = arith.constant 0 : index
    %93 = vector.load %arg6[%c0_67, %c0_68] : memref<1x32xf32, #tpu.memory_space<vmem>>, vector<1x32xf32>
    %94 = vector.broadcast %93 : vector<1x32xf32> to vector<80x32xf32>
    %95 = arith.addf %92, %94 : vector<80x32xf32>
    %cst_69 = arith.constant 0.000000e+00 : f32
    %96 = vector.broadcast %cst_69 : f32 to vector<80x32xf32>
    %97 = arith.maximumf %95, %96 : vector<80x32xf32>
    %c0_70 = arith.constant 0 : index
    %c0_71 = arith.constant 0 : index
    %98 = vector.load %arg16[%c0_70, %c0_71] : memref<80x32xf32, #tpu.memory_space<vmem>>, vector<80x32xf32>
    tpu.vector_store %arg16[%c0_70, %c0_71], %97 {strides = array<i32>} : memref<80x32xf32, #tpu.memory_space<vmem>>, vector<80x32xf32>,
    %c0_72 = arith.constant 0 : index
    %c0_73 = arith.constant 0 : index
    %99 = vector.load %arg16[%c0_72, %c0_73] : memref<80x32xf32, #tpu.memory_space<vmem>>, vector<69x32xf32>
    %c1_74 = arith.constant 1 : index
    %c0_75 = arith.constant 0 : index
    %100 = vector.load %arg16[%c1_74, %c0_75] : memref<80x32xf32, #tpu.memory_space<vmem>>, vector<69x32xf32>
    %101 = arith.maximumf %99, %100 : vector<69x32xf32>
    %c10_76 = arith.constant 10 : index
    %c0_77 = arith.constant 0 : index
    %102 = vector.load %arg16[%c10_76, %c0_77] : memref<80x32xf32, #tpu.memory_space<vmem>>, vector<69x32xf32>
    %c11_78 = arith.constant 11 : index
    %c0_79 = arith.constant 0 : index
    %103 = vector.load %arg16[%c11_78, %c0_79] : memref<80x32xf32, #tpu.memory_space<vmem>>, vector<69x32xf32>
    %104 = arith.maximumf %102, %103 : vector<69x32xf32>
    %105 = arith.maximumf %101, %104 : vector<69x32xf32>
    %c0_80 = arith.constant 0 : index
    %c0_81 = arith.constant 0 : index
    %106 = vector.load %arg7[%c0_80, %c0_81] : memref<16x69xf32, #tpu.memory_space<vmem>>, vector<16x69xf32>
    %cst_82 = arith.constant dense<0.000000e+00> : vector<16x32xf32>
    %107 = tpu.matmul %106, %105, %cst_82 {dimension_numbers = #tpu.dot_dimension_numbers<[1], [0], [0], [1], [0, 0, 1, 1], [], []>} : vector<16x69xf32>, vector<69x32xf32>, vector<16x32xf32> -> vector<16x32xf32>
    %108 = arith.truncf %107 : vector<16x32xf32> to vector<16x32xbf16>
    %c0_83 = arith.constant 0 : index
    %c0_84 = arith.constant 0 : index
    %109 = vector.load %arg8[%c0_83, %c0_84] : memref<32x64xbf16, #tpu.memory_space<vmem>>, vector<32x64xbf16>
    %cst_85 = arith.constant dense<0.000000e+00> : vector<16x64xf32>
    %110 = tpu.matmul %108, %109, %cst_85 {dimension_numbers = #tpu.dot_dimension_numbers<[1], [0], [0], [1], [0, 0, 1, 1], [], []>} : vector<16x32xbf16>, vector<32x64xbf16>, vector<16x64xf32> -> vector<16x64xf32>
    %c0_86 = arith.constant 0 : index
    %c0_87 = arith.constant 0 : index
    %111 = vector.load %arg9[%c0_86, %c0_87] : memref<1x64xf32, #tpu.memory_space<vmem>>, vector<1x64xf32>
    %112 = vector.broadcast %111 : vector<1x64xf32> to vector<16x64xf32>
    %113 = arith.addf %110, %112 : vector<16x64xf32>
    %cst_88 = arith.constant 0.000000e+00 : f32
    %114 = vector.broadcast %cst_88 : f32 to vector<16x64xf32>
    %115 = arith.maximumf %113, %114 : vector<16x64xf32>
    %116 = arith.truncf %115 : vector<16x64xf32> to vector<16x64xbf16>
    %c0_89 = arith.constant 0 : index
    %c0_90 = arith.constant 0 : index
    %117 = vector.load %arg10[%c0_89, %c0_90] : memref<64x16xbf16, #tpu.memory_space<vmem>>, vector<64x16xbf16>
    %cst_91 = arith.constant dense<0.000000e+00> : vector<16x16xf32>
    %118 = tpu.matmul %116, %117, %cst_91 {dimension_numbers = #tpu.dot_dimension_numbers<[1], [0], [0], [1], [0, 0, 1, 1], [], []>} : vector<16x64xbf16>, vector<64x16xbf16>, vector<16x16xf32> -> vector<16x16xf32>
    %c0_92 = arith.constant 0 : index
    %c0_93 = arith.constant 0 : index
    %119 = vector.load %arg11[%c0_92, %c0_93] : memref<1x16xf32, #tpu.memory_space<vmem>>, vector<1x16xf32>
    %120 = vector.broadcast %119 : vector<1x16xf32> to vector<16x16xf32>
    %121 = arith.addf %118, %120 : vector<16x16xf32>
    %122 = arith.negf %121 : vector<16x16xf32>
    %123 = math.exp %122 : vector<16x16xf32>
    %cst_94 = arith.constant 1.000000e+00 : f32
    %124 = vector.broadcast %cst_94 : f32 to vector<16x16xf32>
    %125 = arith.addf %124, %123 : vector<16x16xf32>
    %126 = arith.divf %124, %125 : vector<16x16xf32>
    %c0_95 = arith.constant 0 : index
    %c0_96 = arith.constant 0 : index
    %127 = vector.load %arg12[%c0_95, %c0_96] : memref<16x16xf32, #tpu.memory_space<vmem>>, vector<16x16xf32>
    tpu.vector_store %arg12[%c0_95, %c0_96], %126 {strides = array<i32>} : memref<16x16xf32, #tpu.memory_space<vmem>>, vector<16x16xf32>,
    return
  }
  func.func @transform_0(%arg0: i32) -> (i32, i32) {
    %c0_i32 = arith.constant 0 : i32
    %c0_i32_0 = arith.constant 0 : i32
    return %arg0, %c0_i32 : i32, i32
  }
  func.func @transform_1(%arg0: i32) -> (i32, i32) {
    %c0_i32 = arith.constant 0 : i32
    %c0_i32_0 = arith.constant 0 : i32
    %c0_i32_1 = arith.constant 0 : i32
    return %c0_i32, %c0_i32_0 : i32, i32
  }
  func.func @transform_2(%arg0: i32) -> (i32, i32) {
    %c0_i32 = arith.constant 0 : i32
    %c0_i32_0 = arith.constant 0 : i32
    %c0_i32_1 = arith.constant 0 : i32
    return %c0_i32, %c0_i32_0 : i32, i32
  }
  func.func @transform_3(%arg0: i32) -> (i32, i32) {
    %c0_i32 = arith.constant 0 : i32
    %c0_i32_0 = arith.constant 0 : i32
    %c0_i32_1 = arith.constant 0 : i32
    return %c0_i32, %c0_i32_0 : i32, i32
  }
  func.func @transform_4(%arg0: i32) -> (i32, i32) {
    %c0_i32 = arith.constant 0 : i32
    %c0_i32_0 = arith.constant 0 : i32
    %c0_i32_1 = arith.constant 0 : i32
    return %c0_i32, %c0_i32_0 : i32, i32
  }
  func.func @transform_5(%arg0: i32) -> (i32, i32) {
    %c0_i32 = arith.constant 0 : i32
    %c0_i32_0 = arith.constant 0 : i32
    %c0_i32_1 = arith.constant 0 : i32
    return %c0_i32, %c0_i32_0 : i32, i32
  }
  func.func @transform_6(%arg0: i32) -> (i32, i32) {
    %c0_i32 = arith.constant 0 : i32
    %c0_i32_0 = arith.constant 0 : i32
    %c0_i32_1 = arith.constant 0 : i32
    return %c0_i32, %c0_i32_0 : i32, i32
  }
  func.func @transform_7(%arg0: i32) -> (i32, i32) {
    %c0_i32 = arith.constant 0 : i32
    %c0_i32_0 = arith.constant 0 : i32
    %c0_i32_1 = arith.constant 0 : i32
    return %c0_i32, %c0_i32_0 : i32, i32
  }
  func.func @transform_8(%arg0: i32) -> (i32, i32) {
    %c0_i32 = arith.constant 0 : i32
    %c0_i32_0 = arith.constant 0 : i32
    %c0_i32_1 = arith.constant 0 : i32
    return %c0_i32, %c0_i32_0 : i32, i32
  }
  func.func @transform_9(%arg0: i32) -> (i32, i32) {
    %c0_i32 = arith.constant 0 : i32
    %c0_i32_0 = arith.constant 0 : i32
    %c0_i32_1 = arith.constant 0 : i32
    return %c0_i32, %c0_i32_0 : i32, i32
  }
  func.func @transform_10(%arg0: i32) -> (i32, i32) {
    %c0_i32 = arith.constant 0 : i32
    %c0_i32_0 = arith.constant 0 : i32
    %c0_i32_1 = arith.constant 0 : i32
    return %c0_i32, %c0_i32_0 : i32, i32
  }
  func.func @transform_11(%arg0: i32) -> (i32, i32) {
    %c0_i32 = arith.constant 0 : i32
    %c0_i32_0 = arith.constant 0 : i32
    return %arg0, %c0_i32 : i32, i32
  }
}

</mosaic_0001>

<llo_original>
// kernel: tile.13
$region0: #{tile.13}
  #allocation0 [shape = 's32[1]{0}', space=sflag, size = 0x4, scoped, tag = 'scoped memory for tile.13']
  %s0 = inlined_call_operand.vmem [shape: f32[16], index: 0, kind: input, shape index: {}]
  %s1 = inlined_call_operand.vmem [shape: f32[4,16], index: 1, kind: output, shape index: {}]
  // Predicated region
  $region2: #{tile.13} parent=0 // pred_check
    _
  $region3: #{tile.13} parent=0 // pred_check_branch
    %3 = sbr.rel (0) target = $region5
  $region4: #{tile.13} parent=0 // pred_region
    _
  $region5: #{tile.13} parent=0 // pred_fallthru
    _
  %v4 = vld [vmem:[%s0] ss:$0 sm:$0xff]
  %5 = vst [vmem:[%s1] sm:$0xf] %v4

// kernel: tile.14
$region0: #{tile.14}
  %s0 = inlined_call_operand.vmem [shape: f32[4,16], index: 0, kind: input, shape index: {}]
  %s1 = inlined_call_operand.vmem [shape: f32[1,64], index: 1, kind: output, shape index: {}]
  $region1: #{tile.14} parent=0
    #allocation0 [shape = 'u8[4096]{0}', space=vmem, size = 0x1000, scoped, tag = 'scoped mem for output reshape']
    #allocation1 [shape = 'u8[4096]{0}', space=vmem, size = 0x1000, scoped, tag = 'scoped mem for input reshape']
    %s3 = ssub.s32 16, 1
    %v4 = vld [vmem:[%s0] sm:%s3]
    %5 = vst [vmem:[#allocation1] sm:%s3] %v4
    %v6 = vld [vmem:[#allocation1] sm:$0x1]
    %vm7 = vcmask 130048
    %8 = vst.msk [vmem:[#allocation0] sm:$0x1] %vm7, %v6
    %s9 = scalar_lea.vmem [#allocation1], 3
    %v10 = vld [vmem:[%s9] sm:$0x1]
    %11 = vrot.lane.b32.xlu0 %v10, 48
    %v12 = vpop.permute.xlu0 %11
    %vm13 = vcmask 523648
    %14 = vst.msk [vmem:[#allocation0] sm:$0x1] %vm13, %v12
    %s15 = scalar_lea.vmem [#allocation1], 2
    %v16 = vld [vmem:[%s15] sm:$0x1]
    %17 = vrot.lane.b32.xlu0 %v16, 32
    %v18 = vpop.permute.xlu0 %17
    %vm19 = vcmask 392448
    %20 = vst.msk [vmem:[#allocation0] sm:$0x1] %vm19, %v18
    %s21 = scalar_lea.vmem [#allocation1], 1
    %v22 = vld [vmem:[%s21] sm:$0x1]
    %23 = vrot.lane.b32.xlu0 %v22, 16
    %v24 = vpop.permute.xlu0 %23
    %vm25 = vcmask 261248
    %26 = vst.msk [vmem:[#allocation0] sm:$0x1] %vm25, %v24
    %s28 = ssub.s32 2, 1
    %v29 = vld [vmem:[#allocation0] sm:%s28]
    %s31 = ssub.s32 2, 1
    %32 = vst [vmem:[%s1] sm:%s31] %v29

// kernel: simple_unet_forward.1
$region0: #{simple_unet_forward.1}
  #allocation0 [shape = 'u32[]', space=smem, size = 0x4, offset = 0x4, fixed_abs, tag = 'smem constant byte address 0x4 - core index']
  #allocation1 [shape = 'u32[72,128]{1,0:T(1,128)}', space=vmem, size = 0x9000, scoped, tag = 'internal scratch']
  #allocation2 [shape = 'f32[288,16]{1,0:T(8,128)}', space=vmem, size = 0x24000, scoped, tag = 'scratch operand']
  #allocation3 [shape = 'f32[104,16]{1,0:T(8,128)}', space=vmem, size = 0xd000, scoped, tag = 'scratch operand']
  #allocation4 [shape = 'f32[80,144]{1,0:T(8,128)}', space=vmem, size = 0x14000, scoped, tag = 'scratch operand']
  #allocation5 [shape = 'f32[80,32]{1,0:T(8,128)}', space=vmem, size = 0xa000, scoped, tag = 'scratch operand']
  %s0 = inlined_call_operand.vmem [shape: f32[656,1], index: 0, kind: input, shape index: {}]
  %s1 = inlined_call_operand.vmem [shape: f32[9,16], index: 1, kind: input, shape index: {}]
  %s2 = inlined_call_operand.vmem [shape: f32[1,16], index: 2, kind: input, shape index: {}]
  %s3 = inlined_call_operand.vmem [shape: f32[104,269], index: 3, kind: input, shape index: {}]
  %s4 = inlined_call_operand.vmem [shape: bf16[144,32], index: 4, kind: input, shape index: {}]
  %s5 = inlined_call_operand.vmem [shape: f32[1,32], index: 5, kind: input, shape index: {}]
  %s6 = inlined_call_operand.vmem [shape: f32[16,69], index: 6, kind: input, shape index: {}]
  %s7 = inlined_call_operand.vmem [shape: bf16[32,64], index: 7, kind: input, shape index: {}]
  %s8 = inlined_call_operand.vmem [shape: f32[1,64], index: 8, kind: input, shape index: {}]
  %s9 = inlined_call_operand.vmem [shape: bf16[64,16], index: 9, kind: input, shape index: {}]
  %s10 = inlined_call_operand.vmem [shape: f32[1,16], index: 10, kind: input, shape index: {}]
  %s11 = inlined_call_operand.vmem [shape: f32[32,16], index: 11, kind: output, shape index: {}]
  %s12 = sld [smem:[#allocation0]]
  $region77: #{simple_unet_forward.1} parent=0
    _
  %s14 = ssub.s32 1, %s12
  %s15 = scalar_select 0, %s14, %s12
  loop: start=0, step=1, limit=4
  $region2: #{simple_unet_forward.1} parent=0 // loop_pre_header
    _
  $region3: #{simple_unet_forward.1} parent=0 // loop_header
    %s17 = sphi 0, %s21
    %p18 = scmp.ge.s32.totalorder %s17, 4
    %s27 = sphi 0, %s29
    %s30 = sphi 0, %s27
    %s31 = sphi 0, %s30
    %s47 = sphi 0, %s31
    %s51 = sphi 0, %s51
    %s53 = sphi 0, %s51
    %s54 = sphi 0, %s53
    %s68 = sphi 0, %s54
    %s72 = sphi 0, %s72
    %s74 = sphi 0, %s72
    %s75 = sphi 0, %s74
    %s89 = sphi 0, %s75
    %s93 = sphi 0, %s93
    %s95 = sphi 0, %s93
    %s96 = sphi 0, %s95
    %s110 = sphi 0, %s96
    %s114 = sphi 0, %s114
    %s116 = sphi 0, %s114
    %s117 = sphi 0, %s116
    %s131 = sphi 0, %s117
    %s135 = sphi 0, %s135
    %s137 = sphi 0, %s135
    %s138 = sphi 0, %s137
    %s152 = sphi 0, %s138
    %s156 = sphi 0, %s156
    %s158 = sphi 0, %s156
    %s159 = sphi 0, %s158
    %s173 = sphi 0, %s159
    %s177 = sphi 0, %s177
    %s179 = sphi 0, %s177
    %s180 = sphi 0, %s179
    %s194 = sphi 0, %s180
    %s198 = sphi 0, %s198
    %s200 = sphi 0, %s198
    %s201 = sphi 0, %s200
    %s215 = sphi 0, %s201
    %s219 = sphi 0, %s219
    %s221 = sphi 0, %s219
    %s222 = sphi 0, %s221
    %s236 = sphi 0, %s222
    %s240 = sphi 0, %s240
    %s242 = sphi 0, %s240
    %s243 = sphi 0, %s242
    %s257 = sphi 0, %s243
    %s263 = sphi 0, %s265
    %s266 = sphi 0, %s263
    %s267 = sphi 0, %s266
    %s283 = sphi 0, %s267
  $region4: #{simple_unet_forward.1} parent=0 // loop_header_branch
    %20 = sbr.rel (%p18) target = $region8
  $region5: #{simple_unet_forward.1} parent=0 // loop_body
    %s22 = ssub.s32 %s17, 1
    %s23 = ssub.s32 %s17, 2
    %s24 = sadd.s32 %s17, 1
    %s25 = ssub.s32 %s17, %s24
    %p26 = scmp.eq.s32.totalorder %s25, 0
    %s28 = sadd.s32 %s27, 1
    %s29 = scalar_select %p26, %s27, %s28
    %p32 = pneg %p26
    %p33 = scmp.eq.s32.totalorder %s17, 1
    %p34 = por %p32, %p33
    %p35 = scmp.ne.s32.totalorder %s27, %s30
    %p36 = scmp.eq.s32.totalorder %s17, 0
    %p37 = por %p35, %p36
    %p38 = scmp.ne.s32.totalorder %s27, %s30
    %p39 = scmp.eq.s32.totalorder %s22, 1
    %p40 = por %p38, %p39
    %p41 = scmp.ne.s32.totalorder %s30, %s31
    %p42 = scmp.eq.s32.totalorder %s22, 0
    %p43 = por %p41, %p42
    %p44 = scmp.ne.s32.totalorder %s30, %s31
    %p45 = scmp.eq.s32.totalorder %s23, 1
    %p46 = por %p44, %p45
    %p48 = scmp.ne.s32.totalorder %s31, %s47
    %p49 = scmp.eq.s32.totalorder %s23, 0
    %p50 = por %p48, %p49
    %s52 = sadd.s32 %s51, 1
    %p55 = scmp.eq.s32.totalorder %s17, 1
    %p56 = scmp.ne.s32.totalorder %s51, %s53
    %p57 = scmp.eq.s32.totalorder %s17, 0
    %p58 = por %p56, %p57
    %p59 = scmp.ne.s32.totalorder %s51, %s53
    %p60 = scmp.eq.s32.totalorder %s22, 1
    %p61 = por %p59, %p60
    %p62 = scmp.ne.s32.totalorder %s53, %s54
    %p63 = scmp.eq.s32.totalorder %s22, 0
    %p64 = por %p62, %p63
    %p65 = scmp.ne.s32.totalorder %s53, %s54
    %p66 = scmp.eq.s32.totalorder %s23, 1
    %p67 = por %p65, %p66
    %p69 = scmp.ne.s32.totalorder %s54, %s68
    %p70 = scmp.eq.s32.totalorder %s23, 0
    %p71 = por %p69, %p70
    %s73 = sadd.s32 %s72, 1
    %p76 = scmp.eq.s32.totalorder %s17, 1
    %p77 = scmp.ne.s32.totalorder %s72, %s74
    %p78 = scmp.eq.s32.totalorder %s17, 0
    %p79 = por %p77, %p78
    %p80 = scmp.ne.s32.totalorder %s72, %s74
    %p81 = scmp.eq.s32.totalorder %s22, 1
    %p82 = por %p80, %p81
    %p83 = scmp.ne.s32.totalorder %s74, %s75
    %p84 = scmp.eq.s32.totalorder %s22, 0
    %p85 = por %p83, %p84
    %p86 = scmp.ne.s32.totalorder %s74, %s75
    %p87 = scmp.eq.s32.totalorder %s23, 1
    %p88 = por %p86, %p87
    %p90 = scmp.ne.s32.totalorder %s75, %s89
    %p91 = scmp.eq.s32.totalorder %s23, 0
    %p92 = por %p90, %p91
    %s94 = sadd.s32 %s93, 1
    %p97 = scmp.eq.s32.totalorder %s17, 1
    %p98 = scmp.ne.s32.totalorder %s93, %s95
    %p99 = scmp.eq.s32.totalorder %s17, 0
    %p100 = por %p98, %p99
    %p101 = scmp.ne.s32.totalorder %s93, %s95
    %p102 = scmp.eq.s32.totalorder %s22, 1
    %p103 = por %p101, %p102
    %p104 = scmp.ne.s32.totalorder %s95, %s96
    %p105 = scmp.eq.s32.totalorder %s22, 0
    %p106 = por %p104, %p105
    %p107 = scmp.ne.s32.totalorder %s95, %s96
    %p108 = scmp.eq.s32.totalorder %s23, 1
    %p109 = por %p107, %p108
    %p111 = scmp.ne.s32.totalorder %s96, %s110
    %p112 = scmp.eq.s32.totalorder %s23, 0
    %p113 = por %p111, %p112
    %s115 = sadd.s32 %s114, 1
    %p118 = scmp.eq.s32.totalorder %s17, 1
    %p119 = scmp.ne.s32.totalorder %s114, %s116
    %p120 = scmp.eq.s32.totalorder %s17, 0
    %p121 = por %p119, %p120
    %p122 = scmp.ne.s32.totalorder %s114, %s116
    %p123 = scmp.eq.s32.totalorder %s22, 1
    %p124 = por %p122, %p123
    %p125 = scmp.ne.s32.totalorder %s116, %s117
    %p126 = scmp.eq.s32.totalorder %s22, 0
    %p127 = por %p125, %p126
    %p128 = scmp.ne.s32.totalorder %s116, %s117
    %p129 = scmp.eq.s32.totalorder %s23, 1
    %p130 = por %p128, %p129
    %p132 = scmp.ne.s32.totalorder %s117, %s131
    %p133 = scmp.eq.s32.totalorder %s23, 0
    %p134 = por %p132, %p133
    %s136 = sadd.s32 %s135, 1
    %p139 = scmp.eq.s32.totalorder %s17, 1
    %p140 = scmp.ne.s32.totalorder %s135, %s137
    %p141 = scmp.eq.s32.totalorder %s17, 0
    %p142 = por %p140, %p141
    %p143 = scmp.ne.s32.totalorder %s135, %s137
    %p144 = scmp.eq.s32.totalorder %s22, 1
    %p145 = por %p143, %p144
    %p146 = scmp.ne.s32.totalorder %s137, %s138
    %p147 = scmp.eq.s32.totalorder %s22, 0
    %p148 = por %p146, %p147
    %p149 = scmp.ne.s32.totalorder %s137, %s138
    %p150 = scmp.eq.s32.totalorder %s23, 1
    %p151 = por %p149, %p150
    %p153 = scmp.ne.s32.totalorder %s138, %s152
    %p154 = scmp.eq.s32.totalorder %s23, 0
    %p155 = por %p153, %p154
    %s157 = sadd.s32 %s156, 1
    %p160 = scmp.eq.s32.totalorder %s17, 1
    %p161 = scmp.ne.s32.totalorder %s156, %s158
    %p162 = scmp.eq.s32.totalorder %s17, 0
    %p163 = por %p161, %p162
    %p164 = scmp.ne.s32.totalorder %s156, %s158
    %p165 = scmp.eq.s32.totalorder %s22, 1
    %p166 = por %p164, %p165
    %p167 = scmp.ne.s32.totalorder %s158, %s159
    %p168 = scmp.eq.s32.totalorder %s22, 0
    %p169 = por %p167, %p168
    %p170 = scmp.ne.s32.totalorder %s158, %s159
    %p171 = scmp.eq.s32.totalorder %s23, 1
    %p172 = por %p170, %p171
    %p174 = scmp.ne.s32.totalorder %s159, %s173
    %p175 = scmp.eq.s32.totalorder %s23, 0
    %p176 = por %p174, %p175
    %s178 = sadd.s32 %s177, 1
    %p181 = scmp.eq.s32.totalorder %s17, 1
    %p182 = scmp.ne.s32.totalorder %s177, %s179
    %p183 = scmp.eq.s32.totalorder %s17, 0
    %p184 = por %p182, %p183
    %p185 = scmp.ne.s32.totalorder %s177, %s179
    %p186 = scmp.eq.s32.totalorder %s22, 1
    %p187 = por %p185, %p186
    %p188 = scmp.ne.s32.totalorder %s179, %s180
    %p189 = scmp.eq.s32.totalorder %s22, 0
    %p190 = por %p188, %p189
    %p191 = scmp.ne.s32.totalorder %s179, %s180
    %p192 = scmp.eq.s32.totalorder %s23, 1
    %p193 = por %p191, %p192
    %p195 = scmp.ne.s32.totalorder %s180, %s194
    %p196 = scmp.eq.s32.totalorder %s23, 0
    %p197 = por %p195, %p196
    %s199 = sadd.s32 %s198, 1
    %p202 = scmp.eq.s32.totalorder %s17, 1
    %p203 = scmp.ne.s32.totalorder %s198, %s200
    %p204 = scmp.eq.s32.totalorder %s17, 0
    %p205 = por %p203, %p204
    %p206 = scmp.ne.s32.totalorder %s198, %s200
    %p207 = scmp.eq.s32.totalorder %s22, 1
    %p208 = por %p206, %p207
    %p209 = scmp.ne.s32.totalorder %s200, %s201
    %p210 = scmp.eq.s32.totalorder %s22, 0
    %p211 = por %p209, %p210
    %p212 = scmp.ne.s32.totalorder %s200, %s201
    %p213 = scmp.eq.s32.totalorder %s23, 1
    %p214 = por %p212, %p213
    %p216 = scmp.ne.s32.totalorder %s201, %s215
    %p217 = scmp.eq.s32.totalorder %s23, 0
    %p218 = por %p216, %p217
    %s220 = sadd.s32 %s219, 1
    %p223 = scmp.eq.s32.totalorder %s17, 1
    %p224 = scmp.ne.s32.totalorder %s219, %s221
    %p225 = scmp.eq.s32.totalorder %s17, 0
    %p226 = por %p224, %p225
    %p227 = scmp.ne.s32.totalorder %s219, %s221
    %p228 = scmp.eq.s32.totalorder %s22, 1
    %p229 = por %p227, %p228
    %p230 = scmp.ne.s32.totalorder %s221, %s222
    %p231 = scmp.eq.s32.totalorder %s22, 0
    %p232 = por %p230, %p231
    %p233 = scmp.ne.s32.totalorder %s221, %s222
    %p234 = scmp.eq.s32.totalorder %s23, 1
    %p235 = por %p233, %p234
    %p237 = scmp.ne.s32.totalorder %s222, %s236
    %p238 = scmp.eq.s32.totalorder %s23, 0
    %p239 = por %p237, %p238
    %s241 = sadd.s32 %s240, 1
    %p244 = scmp.eq.s32.totalorder %s17, 1
    %p245 = scmp.ne.s32.totalorder %s240, %s242
    %p246 = scmp.eq.s32.totalorder %s17, 0
    %p247 = por %p245, %p246
    %p248 = scmp.ne.s32.totalorder %s240, %s242
    %p249 = scmp.eq.s32.totalorder %s22, 1
    %p250 = por %p248, %p249
    %p251 = scmp.ne.s32.totalorder %s242, %s243
    %p252 = scmp.eq.s32.totalorder %s22, 0
    %p253 = por %p251, %p252
    %p254 = scmp.ne.s32.totalorder %s242, %s243
    %p255 = scmp.eq.s32.totalorder %s23, 1
    %p256 = por %p254, %p255
    %p258 = scmp.ne.s32.totalorder %s243, %s257
    %p259 = scmp.eq.s32.totalorder %s23, 0
    %p260 = por %p258, %p259
    %s261 = ssub.s32 %s17, %s24
    %p262 = scmp.eq.s32.totalorder %s261, 0
    %s264 = sadd.s32 %s263, 1
    %s265 = scalar_select %p262, %s263, %s264
    %p268 = pneg %p262
    %p269 = scmp.eq.s32.totalorder %s17, 1
    %p270 = por %p268, %p269
    %p271 = scmp.ne.s32.totalorder %s263, %s266
    %p272 = scmp.eq.s32.totalorder %s17, 0
    %p273 = por %p271, %p272
    %p274 = scmp.ne.s32.totalorder %s263, %s266
    %p275 = scmp.eq.s32.totalorder %s22, 1
    %p276 = por %p274, %p275
    %p277 = scmp.ne.s32.totalorder %s266, %s267
    %p278 = scmp.eq.s32.totalorder %s22, 0
    %p279 = por %p277, %p278
    %p280 = scmp.ne.s32.totalorder %s266, %s267
    %p281 = scmp.eq.s32.totalorder %s23, 1
    %p282 = por %p280, %p281
    %p284 = scmp.ne.s32.totalorder %s267, %s283
    %p285 = scmp.eq.s32.totalorder %s23, 0
    %p286 = por %p284, %p285
    %p287 = scmp.le.s32.totalorder 1, %s17
    %p288 = scmp.lt.s32.totalorder %s17, 3
    %p289 = pnand %p287, %p288
    %p290 = pneg %p289
    // Predicated region
    $region9: #{simple_unet_forward.1} parent=5 // pred_check
      _
    $region10: #{simple_unet_forward.1} parent=5 // pred_check_branch
      %292 = sbr.rel (%p289) target = $region12
    $region11: #{simple_unet_forward.1} parent=5 // pred_region
      %s293 = ssub.s32 %s17, 1
      // Predicated region
      $region13: #{simple_unet_forward.1} parent=11 // pred_check
        %p294 = pneg %p64
      $region14: #{simple_unet_forward.1} parent=11 // pred_check_branch
        %296 = sbr.rel (%p294) target = $region16
      $region15: #{simple_unet_forward.1} parent=11 // pred_region
        _
      $region16: #{simple_unet_forward.1} parent=11 // pred_fallthru
        _
      // Predicated region
      $region17: #{simple_unet_forward.1} parent=11 // pred_check
        %p297 = pneg %p85
      $region18: #{simple_unet_forward.1} parent=11 // pred_check_branch
        %299 = sbr.rel (%p297) target = $region20
      $region19: #{simple_unet_forward.1} parent=11 // pred_region
        _
      $region20: #{simple_unet_forward.1} parent=11 // pred_fallthru
        _
      // Predicated region
      $region21: #{simple_unet_forward.1} parent=11 // pred_check
        %p300 = pneg %p106
      $region22: #{simple_unet_forward.1} parent=11 // pred_check_branch
        %302 = sbr.rel (%p300) target = $region24
      $region23: #{simple_unet_forward.1} parent=11 // pred_region
        _
      $region24: #{simple_unet_forward.1} parent=11 // pred_fallthru
        _
      // Predicated region
      $region25: #{simple_unet_forward.1} parent=11 // pred_check
        %p303 = pneg %p127
      $region26: #{simple_unet_forward.1} parent=11 // pred_check_branch
        %305 = sbr.rel (%p303) target = $region28
      $region27: #{simple_unet_forward.1} parent=11 // pred_region
        _
      $region28: #{simple_unet_forward.1} parent=11 // pred_fallthru
        _
      // Predicated region
      $region29: #{simple_unet_forward.1} parent=11 // pred_check
        %p306 = pneg %p148
      $region30: #{simple_unet_forward.1} parent=11 // pred_check_branch
        %308 = sbr.rel (%p306) target = $region32
      $region31: #{simple_unet_forward.1} parent=11 // pred_region
        _
      $region32: #{simple_unet_forward.1} parent=11 // pred_fallthru
        _
      // Predicated region
      $region33: #{simple_unet_forward.1} parent=11 // pred_check
        %p309 = pneg %p169
      $region34: #{simple_unet_forward.1} parent=11 // pred_check_branch
        %311 = sbr.rel (%p309) target = $region36
      $region35: #{simple_unet_forward.1} parent=11 // pred_region
        _
      $region36: #{simple_unet_forward.1} parent=11 // pred_fallthru
        _
      // Predicated region
      $region37: #{simple_unet_forward.1} parent=11 // pred_check
        %p312 = pneg %p190
      $region38: #{simple_unet_forward.1} parent=11 // pred_check_branch
        %314 = sbr.rel (%p312) target = $region40
      $region39: #{simple_unet_forward.1} parent=11 // pred_region
        _
      $region40: #{simple_unet_forward.1} parent=11 // pred_fallthru
        _
      // Predicated region
      $region41: #{simple_unet_forward.1} parent=11 // pred_check
        %p315 = pneg %p211
      $region42: #{simple_unet_forward.1} parent=11 // pred_check_branch
        %317 = sbr.rel (%p315) target = $region44
      $region43: #{simple_unet_forward.1} parent=11 // pred_region
        _
      $region44: #{simple_unet_forward.1} parent=11 // pred_fallthru
        _
      // Predicated region
      $region45: #{simple_unet_forward.1} parent=11 // pred_check
        %p318 = pneg %p232
      $region46: #{simple_unet_forward.1} parent=11 // pred_check_branch
        %320 = sbr.rel (%p318) target = $region48
      $region47: #{simple_unet_forward.1} parent=11 // pred_region
        _
      $region48: #{simple_unet_forward.1} parent=11 // pred_fallthru
        _
      // Predicated region
      $region49: #{simple_unet_forward.1} parent=11 // pred_check
        %p321 = pneg %p253
      $region50: #{simple_unet_forward.1} parent=11 // pred_check_branch
        %323 = sbr.rel (%p321) target = $region52
      $region51: #{simple_unet_forward.1} parent=11 // pred_region
        _
      $region52: #{simple_unet_forward.1} parent=11 // pred_fallthru
        _
    $region12: #{simple_unet_forward.1} parent=5 // pred_fallthru
      _
    %p324 = scmp.lt.s32.totalorder %s17, 2
    // Predicated region
    $region53: #{simple_unet_forward.1} parent=5 // pred_check
      %p325 = pneg %p324
    $region54: #{simple_unet_forward.1} parent=5 // pred_check_branch
      %327 = sbr.rel (%p325) target = $region56
    $region55: #{simple_unet_forward.1} parent=5 // pred_region
      // Predicated region
      $region57: #{simple_unet_forward.1} parent=55 // pred_check
        %p328 = pneg %p37
      $region58: #{simple_unet_forward.1} parent=55 // pred_check_branch
        %330 = sbr.rel (%p328) target = $region60
      $region59: #{simple_unet_forward.1} parent=55 // pred_region
        %s331 = smul.u32 41, %s17
        %p332 = scmp.lt.s32.totalorder %s331, 81
        %s333 = scalar_select %p332, %s331, 81
        %s334 = smul.addr %s333, 8
        %s335 = scalar_lea.vmem %s0, %s334
        %s336 = smul.u32 41, %s17
      $region60: #{simple_unet_forward.1} parent=55 // pred_fallthru
        _
    $region56: #{simple_unet_forward.1} parent=5 // pred_fallthru
      _
    %p337 = scmp.le.s32.totalorder 1, %s17
    %p338 = scmp.lt.s32.totalorder %s17, 3
    %p339 = pnand %p337, %p338
    %p340 = pneg %p339
    // Predicated region
    $region61: #{simple_unet_forward.1} parent=5 // pred_check
      _
    $region62: #{simple_unet_forward.1} parent=5 // pred_check_branch
      %342 = sbr.rel (%p339) target = $region64
    $region63: #{simple_unet_forward.1} parent=5 // pred_region
      %s343 = ssub.s32 %s17, 1
      %s344 = smul.u32 41, %s22
      %p345 = scmp.lt.s32.totalorder %s344, 81
      %s346 = scalar_select %p345, %s344, 81
      %s347 = smul.addr %s346, 8
      %s348 = scalar_lea.vmem %s0, %s347
      %p349 = pneg %p43
      %p350 = pneg %p40
      %p351 = pneg %p64
      %p352 = pneg %p61
      %p353 = pneg %p85
      %p354 = pneg %p82
      %p355 = pneg %p106
      %p356 = pneg %p103
      %p357 = pneg %p127
      %p358 = pneg %p124
      %p359 = pneg %p148
      %p360 = pneg %p145
      %p361 = pneg %p169
      %p362 = pneg %p166
      %p363 = pneg %p190
      %p364 = pneg %p187
      %p365 = pneg %p211
      %p366 = pneg %p208
      %p367 = pneg %p232
      %p368 = pneg %p229
      %p369 = pneg %p253
      %p370 = pneg %p250
      %p371 = pneg %p279
      %p372 = pneg %p276
      %s373 = smul.u32 2, %s22
      %p374 = scmp.lt.s32.totalorder %s373, 3
      %s375 = scalar_select %p374, %s373, 3
      %s376 = smul.addr %s375, 8
      %s377 = scalar_lea.vmem %s11, %s376
      %s378 = smul.u32 41, %s22
      %p379 = scmp.lt.s32.totalorder %s378, 81
      %s380 = scalar_select %p379, %s378, 81
      %s381 = smul.addr %s380, 8
      %s382 = scalar_lea.vmem %s0, %s381
      %s383 = smul.u32 41, %s22
      %s384 = smul.u32 2, %s22
      %p385 = scmp.lt.s32.totalorder %s384, 3
      %s386 = scalar_select %p385, %s384, 3
      %s387 = smul.addr %s386, 8
      %s388 = scalar_lea.vmem %s11, %s387
      %s389 = smul.u32 2, %s22
      %v391 = vld [vmem:[%s382] sm:$0xff]
      %v392 = vld [vmem:[%s382 + $0x8] sm:$0xff]
      %v393 = vld [vmem:[%s382 + $0x10] sm:$0xff]
      %v394 = vld [vmem:[%s382 + $0x18] sm:$0xff]
      %v395 = vld [vmem:[%s382 + $0x20] sm:$0xff]
      %v396 = vld [vmem:[%s382 + $0x28] sm:$0xff]
      %v397 = vld [vmem:[%s382 + $0x30] sm:$0xff]
      %v398 = vld [vmem:[%s382 + $0x38] sm:$0xff]
      %v399 = vld [vmem:[%s382 + $0x40] sm:$0xff]
      %v400 = vld [vmem:[%s382 + $0x48] sm:$0xff]
      %v401 = vld [vmem:[%s382 + $0x50] sm:$0xff]
      %v402 = vld [vmem:[%s382 + $0x58] sm:$0xff]
      %v403 = vld [vmem:[%s382 + $0x60] sm:$0xff]
      %v404 = vld [vmem:[%s382 + $0x68] sm:$0xff]
      %v405 = vld [vmem:[%s382 + $0x70] sm:$0xff]
      %v406 = vld [vmem:[%s382 + $0x78] sm:$0xff]
      %v407 = vld [vmem:[%s382 + $0x80] sm:$0xff]
      %v408 = vld [vmem:[%s382 + $0x88] sm:$0xff]
      %v409 = vld [vmem:[%s382 + $0x90] sm:$0xff]
      %v410 = vld [vmem:[%s382 + $0x98] sm:$0xff]
      %v411 = vld [vmem:[%s382 + $0xa0] sm:$0xff]
      %v412 = vld [vmem:[%s382 + $0xa8] sm:$0xff]
      %v413 = vld [vmem:[%s382 + $0xb0] sm:$0xff]
      %v414 = vld [vmem:[%s382 + $0xb8] sm:$0xff]
      %v415 = vld [vmem:[%s382 + $0xc0] sm:$0xff]
      %v416 = vld [vmem:[%s382 + $0xc8] sm:$0xff]
      %v417 = vld [vmem:[%s382 + $0xd0] sm:$0xff]
      %v418 = vld [vmem:[%s382 + $0xd8] sm:$0xff]
      %v419 = vld [vmem:[%s382 + $0xe0] sm:$0xff]
      %v420 = vld [vmem:[%s382 + $0xe8] sm:$0xff]
      %v421 = vld [vmem:[%s382 + $0xf0] sm:$0xff]
      %v422 = vld [vmem:[%s382 + $0xf8] sm:$0xff]
      %v423 = vld [vmem:[%s382 + $0x100] sm:$0xff]
      %v424 = vld [vmem:[%s382 + $0x108] sm:$0xff]
      %v425 = vld [vmem:[%s382 + $0x110] sm:$0xff]
      %v426 = vld [vmem:[%s382 + $0x118] sm:$0xff]
      %v427 = vld [vmem:[%s1] sm:$0x1]
      %429 = vset.pattern.permute.xlu0 0
      %430 = vperm.xlu0 %429, %v391
      %v431 = vpop.permute.xlu0 %430
      %434 = vset.pattern.permute.xlu0 0
      %435 = vperm.xlu0 %434, %v392
      %v436 = vpop.permute.xlu0 %435
      %439 = vset.pattern.permute.xlu0 0
      %440 = vperm.xlu0 %439, %v393
      %v441 = vpop.permute.xlu0 %440
      %444 = vset.pattern.permute.xlu0 0
      %445 = vperm.xlu0 %444, %v394
      %v446 = vpop.permute.xlu0 %445
      %449 = vset.pattern.permute.xlu0 0
      %450 = vperm.xlu0 %449, %v395
      %v451 = vpop.permute.xlu0 %450
      %454 = vset.pattern.permute.xlu0 0
      %455 = vperm.xlu0 %454, %v396
      %v456 = vpop.permute.xlu0 %455
      %459 = vset.pattern.permute.xlu0 0
      %460 = vperm.xlu0 %459, %v397
      %v461 = vpop.permute.xlu0 %460
      %464 = vset.pattern.permute.xlu0 0
      %465 = vperm.xlu0 %464, %v398
      %v466 = vpop.permute.xlu0 %465
      %469 = vset.pattern.permute.xlu0 0
      %470 = vperm.xlu0 %469, %v399
      %v471 = vpop.permute.xlu0 %470
      %474 = vset.pattern.permute.xlu0 0
      %475 = vperm.xlu0 %474, %v400
      %v476 = vpop.permute.xlu0 %475
      %479 = vset.pattern.permute.xlu0 0
      %480 = vperm.xlu0 %479, %v401
      %v481 = vpop.permute.xlu0 %480
      %484 = vset.pattern.permute.xlu0 0
      %485 = vperm.xlu0 %484, %v402
      %v486 = vpop.permute.xlu0 %485
      %489 = vset.pattern.permute.xlu0 0
      %490 = vperm.xlu0 %489, %v403
      %v491 = vpop.permute.xlu0 %490
      %494 = vset.pattern.permute.xlu0 0
      %495 = vperm.xlu0 %494, %v404
      %v496 = vpop.permute.xlu0 %495
      %499 = vset.pattern.permute.xlu0 0
      %500 = vperm.xlu0 %499, %v405
      %v501 = vpop.permute.xlu0 %500
      %504 = vset.pattern.permute.xlu0 0
      %505 = vperm.xlu0 %504, %v406
      %v506 = vpop.permute.xlu0 %505
      %509 = vset.pattern.permute.xlu0 0
      %510 = vperm.xlu0 %509, %v407
      %v511 = vpop.permute.xlu0 %510
      %514 = vset.pattern.permute.xlu0 0
      %515 = vperm.xlu0 %514, %v408
      %v516 = vpop.permute.xlu0 %515
      %519 = vset.pattern.permute.xlu0 0
      %520 = vperm.xlu0 %519, %v409
      %v521 = vpop.permute.xlu0 %520
      %524 = vset.pattern.permute.xlu0 0
      %525 = vperm.xlu0 %524, %v410
      %v526 = vpop.permute.xlu0 %525
      %529 = vset.pattern.permute.xlu0 0
      %530 = vperm.xlu0 %529, %v411
      %v531 = vpop.permute.xlu0 %530
      %534 = vset.pattern.permute.xlu0 0
      %535 = vperm.xlu0 %534, %v412
      %v536 = vpop.permute.xlu0 %535
      %539 = vset.pattern.permute.xlu0 0
      %540 = vperm.xlu0 %539, %v413
      %v541 = vpop.permute.xlu0 %540
      %544 = vset.pattern.permute.xlu0 0
      %545 = vperm.xlu0 %544, %v414
      %v546 = vpop.permute.xlu0 %545
      %549 = vset.pattern.permute.xlu0 0
      %550 = vperm.xlu0 %549, %v415
      %v551 = vpop.permute.xlu0 %550
      %554 = vset.pattern.permute.xlu0 0
      %555 = vperm.xlu0 %554, %v416
      %v556 = vpop.permute.xlu0 %555
      %559 = vset.pattern.permute.xlu0 0
      %560 = vperm.xlu0 %559, %v417
      %v561 = vpop.permute.xlu0 %560
      %564 = vset.pattern.permute.xlu0 0
      %565 = vperm.xlu0 %564, %v418
      %v566 = vpop.permute.xlu0 %565
      %569 = vset.pattern.permute.xlu0 0
      %570 = vperm.xlu0 %569, %v419
      %v571 = vpop.permute.xlu0 %570
      %574 = vset.pattern.permute.xlu0 0
      %575 = vperm.xlu0 %574, %v420
      %v576 = vpop.permute.xlu0 %575
      %579 = vset.pattern.permute.xlu0 0
      %580 = vperm.xlu0 %579, %v421
      %v581 = vpop.permute.xlu0 %580
      %584 = vset.pattern.permute.xlu0 0
      %585 = vperm.xlu0 %584, %v422
      %v586 = vpop.permute.xlu0 %585
      %589 = vset.pattern.permute.xlu0 0
      %590 = vperm.xlu0 %589, %v423
      %v591 = vpop.permute.xlu0 %590
      %594 = vset.pattern.permute.xlu0 0
      %595 = vperm.xlu0 %594, %v424
      %v596 = vpop.permute.xlu0 %595
      %599 = vset.pattern.permute.xlu0 0
      %600 = vperm.xlu0 %599, %v425
      %v601 = vpop.permute.xlu0 %600
      %604 = vset.pattern.permute.xlu0 0
      %605 = vperm.xlu0 %604, %v426
      %v606 = vpop.permute.xlu0 %605
      %v608 = vperm.slane %v427, 0
      %v609 = vmul.f32 %v431, %v608
      %v610 = vmul.f32 %v436, %v608
      %v611 = vmul.f32 %v441, %v608
      %v612 = vmul.f32 %v446, %v608
      %v613 = vmul.f32 %v451, %v608
      %v614 = vmul.f32 %v456, %v608
      %v615 = vmul.f32 %v461, %v608
      %v616 = vmul.f32 %v466, %v608
      %v617 = vmul.f32 %v471, %v608
      %v618 = vmul.f32 %v476, %v608
      %v619 = vmul.f32 %v481, %v608
      %v620 = vmul.f32 %v486, %v608
      %v621 = vmul.f32 %v491, %v608
      %v622 = vmul.f32 %v496, %v608
      %v623 = vmul.f32 %v501, %v608
      %v624 = vmul.f32 %v506, %v608
      %v625 = vmul.f32 %v511, %v608
      %v626 = vmul.f32 %v516, %v608
      %v627 = vmul.f32 %v521, %v608
      %v628 = vmul.f32 %v526, %v608
      %v629 = vmul.f32 %v531, %v608
      %v630 = vmul.f32 %v536, %v608
      %v631 = vmul.f32 %v541, %v608
      %v632 = vmul.f32 %v546, %v608
      %v633 = vmul.f32 %v551, %v608
      %v634 = vmul.f32 %v556, %v608
      %v635 = vmul.f32 %v561, %v608
      %v636 = vmul.f32 %v566, %v608
      %v637 = vmul.f32 %v571, %v608
      %v638 = vmul.f32 %v576, %v608
      %v639 = vmul.f32 %v581, %v608
      %v640 = vmul.f32 %v586, %v608
      %v641 = vmul.f32 %v591, %v608
      %v642 = vmul.f32 %v596, %v608
      %v643 = vmul.f32 %v601, %v608
      %v644 = vmul.f32 %v606, %v608
      %v645 = vadd.f32 %v609, 0.0
      %v646 = vadd.f32 %v610, 0.0
      %v647 = vadd.f32 %v611, 0.0
      %v648 = vadd.f32 %v612, 0.0
      %v649 = vadd.f32 %v613, 0.0
      %v650 = vadd.f32 %v614, 0.0
      %v651 = vadd.f32 %v615, 0.0
      %v652 = vadd.f32 %v616, 0.0
      %v653 = vadd.f32 %v617, 0.0
      %v654 = vadd.f32 %v618, 0.0
      %v655 = vadd.f32 %v619, 0.0
      %v656 = vadd.f32 %v620, 0.0
      %v657 = vadd.f32 %v621, 0.0
      %v658 = vadd.f32 %v622, 0.0
      %v659 = vadd.f32 %v623, 0.0
      %v660 = vadd.f32 %v624, 0.0
      %v661 = vadd.f32 %v625, 0.0
      %v662 = vadd.f32 %v626, 0.0
      %v663 = vadd.f32 %v627, 0.0
      %v664 = vadd.f32 %v628, 0.0
      %v665 = vadd.f32 %v629, 0.0
      %v666 = vadd.f32 %v630, 0.0
      %v667 = vadd.f32 %v631, 0.0
      %v668 = vadd.f32 %v632, 0.0
      %v669 = vadd.f32 %v633, 0.0
      %v670 = vadd.f32 %v634, 0.0
      %v671 = vadd.f32 %v635, 0.0
      %v672 = vadd.f32 %v636, 0.0
      %v673 = vadd.f32 %v637, 0.0
      %v674 = vadd.f32 %v638, 0.0
      %v675 = vadd.f32 %v639, 0.0
      %v676 = vadd.f32 %v640, 0.0
      %v677 = vadd.f32 %v641, 0.0
      %v678 = vadd.f32 %v642, 0.0
      %v679 = vadd.f32 %v643, 0.0
      %v680 = vadd.f32 %v644, 0.0
      %v681 = vld [vmem:[%s382 + $0x1] sm:$0xff]
      %v682 = vld [vmem:[%s382 + $0x9] sm:$0xff]
      %v683 = vld [vmem:[%s382 + $0x11] sm:$0xff]
      %v684 = vld [vmem:[%s382 + $0x19] sm:$0xff]
      %v685 = vld [vmem:[%s382 + $0x21] sm:$0xff]
      %v686 = vld [vmem:[%s382 + $0x29] sm:$0xff]
      %v687 = vld [vmem:[%s382 + $0x31] sm:$0xff]
      %v688 = vld [vmem:[%s382 + $0x39] sm:$0xff]
      %v689 = vld [vmem:[%s382 + $0x41] sm:$0xff]
      %v690 = vld [vmem:[%s382 + $0x49] sm:$0xff]
      %v691 = vld [vmem:[%s382 + $0x51] sm:$0xff]
      %v692 = vld [vmem:[%s382 + $0x59] sm:$0xff]
      %v693 = vld [vmem:[%s382 + $0x61] sm:$0xff]
      %v694 = vld [vmem:[%s382 + $0x69] sm:$0xff]
      %v695 = vld [vmem:[%s382 + $0x71] sm:$0xff]
      %v696 = vld [vmem:[%s382 + $0x79] sm:$0xff]
      %v697 = vld [vmem:[%s382 + $0x81] sm:$0xff]
      %v698 = vld [vmem:[%s382 + $0x89] sm:$0xff]
      %v699 = vld [vmem:[%s382 + $0x91] sm:$0xff]
      %v700 = vld [vmem:[%s382 + $0x99] sm:$0xff]
      %v701 = vld [vmem:[%s382 + $0xa1] sm:$0xff]
      %v702 = vld [vmem:[%s382 + $0xa9] sm:$0xff]
      %v703 = vld [vmem:[%s382 + $0xb1] sm:$0xff]
      %v704 = vld [vmem:[%s382 + $0xb9] sm:$0xff]
      %v705 = vld [vmem:[%s382 + $0xc1] sm:$0xff]
      %v706 = vld [vmem:[%s382 + $0xc9] sm:$0xff]
      %v707 = vld [vmem:[%s382 + $0xd1] sm:$0xff]
      %v708 = vld [vmem:[%s382 + $0xd9] sm:$0xff]
      %v709 = vld [vmem:[%s382 + $0xe1] sm:$0xff]
      %v710 = vld [vmem:[%s382 + $0xe9] sm:$0xff]
      %v711 = vld [vmem:[%s382 + $0xf1] sm:$0xff]
      %v712 = vld [vmem:[%s382 + $0xf9] sm:$0xff]
      %v713 = vld [vmem:[%s382 + $0x101] sm:$0xff]
      %v714 = vld [vmem:[%s382 + $0x109] sm:$0xff]
      %v715 = vld [vmem:[%s382 + $0x111] sm:$0xff]
      %v716 = vld [vmem:[%s382 + $0x119] sm:$0xff]
      %v717 = vld [vmem:[%s1 + $0x1] sm:$0x1]
      %719 = vset.pattern.permute.xlu0 0
      %720 = vperm.xlu0 %719, %v681
      %v721 = vpop.permute.xlu0 %720
      %724 = vset.pattern.permute.xlu0 0
      %725 = vperm.xlu0 %724, %v682
      %v726 = vpop.permute.xlu0 %725
      %729 = vset.pattern.permute.xlu0 0
      %730 = vperm.xlu0 %729, %v683
      %v731 = vpop.permute.xlu0 %730
      %734 = vset.pattern.permute.xlu0 0
      %735 = vperm.xlu0 %734, %v684
      %v736 = vpop.permute.xlu0 %735
      %739 = vset.pattern.permute.xlu0 0
      %740 = vperm.xlu0 %739, %v685
      %v741 = vpop.permute.xlu0 %740
      %744 = vset.pattern.permute.xlu0 0
      %745 = vperm.xlu0 %744, %v686
      %v746 = vpop.permute.xlu0 %745
      %749 = vset.pattern.permute.xlu0 0
      %750 = vperm.xlu0 %749, %v687
      %v751 = vpop.permute.xlu0 %750
      %754 = vset.pattern.permute.xlu0 0
      %755 = vperm.xlu0 %754, %v688
      %v756 = vpop.permute.xlu0 %755
      %759 = vset.pattern.permute.xlu0 0
      %760 = vperm.xlu0 %759, %v689
      %v761 = vpop.permute.xlu0 %760
      %764 = vset.pattern.permute.xlu0 0
      %765 = vperm.xlu0 %764, %v690
      %v766 = vpop.permute.xlu0 %765
      %769 = vset.pattern.permute.xlu0 0
      %770 = vperm.xlu0 %769, %v691
      %v771 = vpop.permute.xlu0 %770
      %774 = vset.pattern.permute.xlu0 0
      %775 = vperm.xlu0 %774, %v692
      %v776 = vpop.permute.xlu0 %775
      %779 = vset.pattern.permute.xlu0 0
      %780 = vperm.xlu0 %779, %v693
      %v781 = vpop.permute.xlu0 %780
      %784 = vset.pattern.permute.xlu0 0
      %785 = vperm.xlu0 %784, %v694
      %v786 = vpop.permute.xlu0 %785
      %789 = vset.pattern.permute.xlu0 0
      %790 = vperm.xlu0 %789, %v695
      %v791 = vpop.permute.xlu0 %790
      %794 = vset.pattern.permute.xlu0 0
      %795 = vperm.xlu0 %794, %v696
      %v796 = vpop.permute.xlu0 %795
      %799 = vset.pattern.permute.xlu0 0
      %800 = vperm.xlu0 %799, %v697
      %v801 = vpop.permute.xlu0 %800
      %804 = vset.pattern.permute.xlu0 0
      %805 = vperm.xlu0 %804, %v698
      %v806 = vpop.permute.xlu0 %805
      %809 = vset.pattern.permute.xlu0 0
      %810 = vperm.xlu0 %809, %v699
      %v811 = vpop.permute.xlu0 %810
      %814 = vset.pattern.permute.xlu0 0
      %815 = vperm.xlu0 %814, %v700
      %v816 = vpop.permute.xlu0 %815
      %819 = vset.pattern.permute.xlu0 0
      %820 = vperm.xlu0 %819, %v701
      %v821 = vpop.permute.xlu0 %820
      %824 = vset.pattern.permute.xlu0 0
      %825 = vperm.xlu0 %824, %v702
      %v826 = vpop.permute.xlu0 %825
      %829 = vset.pattern.permute.xlu0 0
      %830 = vperm.xlu0 %829, %v703
      %v831 = vpop.permute.xlu0 %830
      %834 = vset.pattern.permute.xlu0 0
      %835 = vperm.xlu0 %834, %v704
      %v836 = vpop.permute.xlu0 %835
      %839 = vset.pattern.permute.xlu0 0
      %840 = vperm.xlu0 %839, %v705
      %v841 = vpop.permute.xlu0 %840
      %844 = vset.pattern.permute.xlu0 0
      %845 = vperm.xlu0 %844, %v706
      %v846 = vpop.permute.xlu0 %845
      %849 = vset.pattern.permute.xlu0 0
      %850 = vperm.xlu0 %849, %v707
      %v851 = vpop.permute.xlu0 %850
      %854 = vset.pattern.permute.xlu0 0
      %855 = vperm.xlu0 %854, %v708
      %v856 = vpop.permute.xlu0 %855
      %859 = vset.pattern.permute.xlu0 0
      %860 = vperm.xlu0 %859, %v709
      %v861 = vpop.permute.xlu0 %860
      %864 = vset.pattern.permute.xlu0 0
      %865 = vperm.xlu0 %864, %v710
      %v866 = vpop.permute.xlu0 %865
      %869 = vset.pattern.permute.xlu0 0
      %870 = vperm.xlu0 %869, %v711
      %v871 = vpop.permute.xlu0 %870
      %874 = vset.pattern.permute.xlu0 0
      %875 = vperm.xlu0 %874, %v712
      %v876 = vpop.permute.xlu0 %875
      %879 = vset.pattern.permute.xlu0 0
      %880 = vperm.xlu0 %879, %v713
      %v881 = vpop.permute.xlu0 %880
      %884 = vset.pattern.permute.xlu0 0
      %885 = vperm.xlu0 %884, %v714
      %v886 = vpop.permute.xlu0 %885
      %889 = vset.pattern.permute.xlu0 0
      %890 = vperm.xlu0 %889, %v715
      %v891 = vpop.permute.xlu0 %890
      %894 = vset.pattern.permute.xlu0 0
      %895 = vperm.xlu0 %894, %v716
      %v896 = vpop.permute.xlu0 %895
      %v898 = vperm.slane %v717, 0
      %v899 = vmul.f32 %v721, %v898
      %v900 = vmul.f32 %v726, %v898
      %v901 = vmul.f32 %v731, %v898
      %v902 = vmul.f32 %v736, %v898
      %v903 = vmul.f32 %v741, %v898
      %v904 = vmul.f32 %v746, %v898
      %v905 = vmul.f32 %v751, %v898
      %v906 = vmul.f32 %v756, %v898
      %v907 = vmul.f32 %v761, %v898
      %v908 = vmul.f32 %v766, %v898
      %v909 = vmul.f32 %v771, %v898
      %v910 = vmul.f32 %v776, %v898
      %v911 = vmul.f32 %v781, %v898
      %v912 = vmul.f32 %v786, %v898
      %v913 = vmul.f32 %v791, %v898
      %v914 = vmul.f32 %v796, %v898
      %v915 = vmul.f32 %v801, %v898
      %v916 = vmul.f32 %v806, %v898
      %v917 = vmul.f32 %v811, %v898
      %v918 = vmul.f32 %v816, %v898
      %v919 = vmul.f32 %v821, %v898
      %v920 = vmul.f32 %v826, %v898
      %v921 = vmul.f32 %v831, %v898
      %v922 = vmul.f32 %v836, %v898
      %v923 = vmul.f32 %v841, %v898
      %v924 = vmul.f32 %v846, %v898
      %v925 = vmul.f32 %v851, %v898
      %v926 = vmul.f32 %v856, %v898
      %v927 = vmul.f32 %v861, %v898
      %v928 = vmul.f32 %v866, %v898
      %v929 = vmul.f32 %v871, %v898
      %v930 = vmul.f32 %v876, %v898
      %v931 = vmul.f32 %v881, %v898
      %v932 = vmul.f32 %v886, %v898
      %v933 = vmul.f32 %v891, %v898
      %v934 = vmul.f32 %v896, %v898
      %v935 = vadd.f32 %v645, %v899
      %v936 = vadd.f32 %v646, %v900
      %v937 = vadd.f32 %v647, %v901
      %v938 = vadd.f32 %v648, %v902
      %v939 = vadd.f32 %v649, %v903
      %v940 = vadd.f32 %v650, %v904
      %v941 = vadd.f32 %v651, %v905
      %v942 = vadd.f32 %v652, %v906
      %v943 = vadd.f32 %v653, %v907
      %v944 = vadd.f32 %v654, %v908
      %v945 = vadd.f32 %v655, %v909
      %v946 = vadd.f32 %v656, %v910
      %v947 = vadd.f32 %v657, %v911
      %v948 = vadd.f32 %v658, %v912
      %v949 = vadd.f32 %v659, %v913
      %v950 = vadd.f32 %v660, %v914
      %v951 = vadd.f32 %v661, %v915
      %v952 = vadd.f32 %v662, %v916
      %v953 = vadd.f32 %v663, %v917
      %v954 = vadd.f32 %v664, %v918
      %v955 = vadd.f32 %v665, %v919
      %v956 = vadd.f32 %v666, %v920
      %v957 = vadd.f32 %v667, %v921
      %v958 = vadd.f32 %v668, %v922
      %v959 = vadd.f32 %v669, %v923
      %v960 = vadd.f32 %v670, %v924
      %v961 = vadd.f32 %v671, %v925
      %v962 = vadd.f32 %v672, %v926
      %v963 = vadd.f32 %v673, %v927
      %v964 = vadd.f32 %v674, %v928
      %v965 = vadd.f32 %v675, %v929
      %v966 = vadd.f32 %v676, %v930
      %v967 = vadd.f32 %v677, %v931
      %v968 = vadd.f32 %v678, %v932
      %v969 = vadd.f32 %v679, %v933
      %v970 = vadd.f32 %v680, %v934
      %v971 = vld [vmem:[%s382 + $0x2] sm:$0xff]
      %v972 = vld [vmem:[%s382 + $0xa] sm:$0xff]
      %v973 = vld [vmem:[%s382 + $0x12] sm:$0xff]
      %v974 = vld [vmem:[%s382 + $0x1a] sm:$0xff]
      %v975 = vld [vmem:[%s382 + $0x22] sm:$0xff]
      %v976 = vld [vmem:[%s382 + $0x2a] sm:$0xff]
      %v977 = vld [vmem:[%s382 + $0x32] sm:$0xff]
      %v978 = vld [vmem:[%s382 + $0x3a] sm:$0xff]
      %v979 = vld [vmem:[%s382 + $0x42] sm:$0xff]
      %v980 = vld [vmem:[%s382 + $0x4a] sm:$0xff]
      %v981 = vld [vmem:[%s382 + $0x52] sm:$0xff]
      %v982 = vld [vmem:[%s382 + $0x5a] sm:$0xff]
      %v983 = vld [vmem:[%s382 + $0x62] sm:$0xff]
      %v984 = vld [vmem:[%s382 + $0x6a] sm:$0xff]
      %v985 = vld [vmem:[%s382 + $0x72] sm:$0xff]
      %v986 = vld [vmem:[%s382 + $0x7a] sm:$0xff]
      %v987 = vld [vmem:[%s382 + $0x82] sm:$0xff]
      %v988 = vld [vmem:[%s382 + $0x8a] sm:$0xff]
      %v989 = vld [vmem:[%s382 + $0x92] sm:$0xff]
      %v990 = vld [vmem:[%s382 + $0x9a] sm:$0xff]
      %v991 = vld [vmem:[%s382 + $0xa2] sm:$0xff]
      %v992 = vld [vmem:[%s382 + $0xaa] sm:$0xff]
      %v993 = vld [vmem:[%s382 + $0xb2] sm:$0xff]
      %v994 = vld [vmem:[%s382 + $0xba] sm:$0xff]
      %v995 = vld [vmem:[%s382 + $0xc2] sm:$0xff]
      %v996 = vld [vmem:[%s382 + $0xca] sm:$0xff]
      %v997 = vld [vmem:[%s382 + $0xd2] sm:$0xff]
      %v998 = vld [vmem:[%s382 + $0xda] sm:$0xff]
      %v999 = vld [vmem:[%s382 + $0xe2] sm:$0xff]
      %v1000 = vld [vmem:[%s382 + $0xea] sm:$0xff]
      %v1001 = vld [vmem:[%s382 + $0xf2] sm:$0xff]
      %v1002 = vld [vmem:[%s382 + $0xfa] sm:$0xff]
      %v1003 = vld [vmem:[%s382 + $0x102] sm:$0xff]
      %v1004 = vld [vmem:[%s382 + $0x10a] sm:$0xff]
      %v1005 = vld [vmem:[%s382 + $0x112] sm:$0xff]
      %v1006 = vld [vmem:[%s382 + $0x11a] sm:$0xff]
      %v1007 = vld [vmem:[%s1 + $0x2] sm:$0x1]
      %1009 = vset.pattern.permute.xlu0 0
      %1010 = vperm.xlu0 %1009, %v971
      %v1011 = vpop.permute.xlu0 %1010
      %1014 = vset.pattern.permute.xlu0 0
      %1015 = vperm.xlu0 %1014, %v972
      %v1016 = vpop.permute.xlu0 %1015
      %1019 = vset.pattern.permute.xlu0 0
      %1020 = vperm.xlu0 %1019, %v973
      %v1021 = vpop.permute.xlu0 %1020
      %1024 = vset.pattern.permute.xlu0 0
      %1025 = vperm.xlu0 %1024, %v974
      %v1026 = vpop.permute.xlu0 %1025
      %1029 = vset.pattern.permute.xlu0 0
      %1030 = vperm.xlu0 %1029, %v975
      %v1031 = vpop.permute.xlu0 %1030
      %1034 = vset.pattern.permute.xlu0 0
      %1035 = vperm.xlu0 %1034, %v976
      %v1036 = vpop.permute.xlu0 %1035
      %1039 = vset.pattern.permute.xlu0 0
      %1040 = vperm.xlu0 %1039, %v977
      %v1041 = vpop.permute.xlu0 %1040
      %1044 = vset.pattern.permute.xlu0 0
      %1045 = vperm.xlu0 %1044, %v978
      %v1046 = vpop.permute.xlu0 %1045
      %1049 = vset.pattern.permute.xlu0 0
      %1050 = vperm.xlu0 %1049, %v979
      %v1051 = vpop.permute.xlu0 %1050
      %1054 = vset.pattern.permute.xlu0 0
      %1055 = vperm.xlu0 %1054, %v980
      %v1056 = vpop.permute.xlu0 %1055
      %1059 = vset.pattern.permute.xlu0 0
      %1060 = vperm.xlu0 %1059, %v981
      %v1061 = vpop.permute.xlu0 %1060
      %1064 = vset.pattern.permute.xlu0 0
      %1065 = vperm.xlu0 %1064, %v982
      %v1066 = vpop.permute.xlu0 %1065
      %1069 = vset.pattern.permute.xlu0 0
      %1070 = vperm.xlu0 %1069, %v983
      %v1071 = vpop.permute.xlu0 %1070
      %1074 = vset.pattern.permute.xlu0 0
      %1075 = vperm.xlu0 %1074, %v984
      %v1076 = vpop.permute.xlu0 %1075
      %1079 = vset.pattern.permute.xlu0 0
      %1080 = vperm.xlu0 %1079, %v985
      %v1081 = vpop.permute.xlu0 %1080
      %1084 = vset.pattern.permute.xlu0 0
      %1085 = vperm.xlu0 %1084, %v986
      %v1086 = vpop.permute.xlu0 %1085
      %1089 = vset.pattern.permute.xlu0 0
      %1090 = vperm.xlu0 %1089, %v987
      %v1091 = vpop.permute.xlu0 %1090
      %1094 = vset.pattern.permute.xlu0 0
      %1095 = vperm.xlu0 %1094, %v988
      %v1096 = vpop.permute.xlu0 %1095
      %1099 = vset.pattern.permute.xlu0 0
      %1100 = vperm.xlu0 %1099, %v989
      %v1101 = vpop.permute.xlu0 %1100
      %1104 = vset.pattern.permute.xlu0 0
      %1105 = vperm.xlu0 %1104, %v990
      %v1106 = vpop.permute.xlu0 %1105
      %1109 = vset.pattern.permute.xlu0 0
      %1110 = vperm.xlu0 %1109, %v991
      %v1111 = vpop.permute.xlu0 %1110
      %1114 = vset.pattern.permute.xlu0 0
      %1115 = vperm.xlu0 %1114, %v992
      %v1116 = vpop.permute.xlu0 %1115
      %1119 = vset.pattern.permute.xlu0 0
      %1120 = vperm.xlu0 %1119, %v993
      %v1121 = vpop.permute.xlu0 %1120
      %1124 = vset.pattern.permute.xlu0 0
      %1125 = vperm.xlu0 %1124, %v994
      %v1126 = vpop.permute.xlu0 %1125
      %1129 = vset.pattern.permute.xlu0 0
      %1130 = vperm.xlu0 %1129, %v995
      %v1131 = vpop.permute.xlu0 %1130
      %1134 = vset.pattern.permute.xlu0 0
      %1135 = vperm.xlu0 %1134, %v996
      %v1136 = vpop.permute.xlu0 %1135
      %1139 = vset.pattern.permute.xlu0 0
      %1140 = vperm.xlu0 %1139, %v997
      %v1141 = vpop.permute.xlu0 %1140
      %1144 = vset.pattern.permute.xlu0 0
      %1145 = vperm.xlu0 %1144, %v998
      %v1146 = vpop.permute.xlu0 %1145
      %1149 = vset.pattern.permute.xlu0 0
      %1150 = vperm.xlu0 %1149, %v999
      %v1151 = vpop.permute.xlu0 %1150
      %1154 = vset.pattern.permute.xlu0 0
      %1155 = vperm.xlu0 %1154, %v1000
      %v1156 = vpop.permute.xlu0 %1155
      %1159 = vset.pattern.permute.xlu0 0
      %1160 = vperm.xlu0 %1159, %v1001
      %v1161 = vpop.permute.xlu0 %1160
      %1164 = vset.pattern.permute.xlu0 0
      %1165 = vperm.xlu0 %1164, %v1002
      %v1166 = vpop.permute.xlu0 %1165
      %1169 = vset.pattern.permute.xlu0 0
      %1170 = vperm.xlu0 %1169, %v1003
      %v1171 = vpop.permute.xlu0 %1170
      %1174 = vset.pattern.permute.xlu0 0
      %1175 = vperm.xlu0 %1174, %v1004
      %v1176 = vpop.permute.xlu0 %1175
      %1179 = vset.pattern.permute.xlu0 0
      %1180 = vperm.xlu0 %1179, %v1005
      %v1181 = vpop.permute.xlu0 %1180
      %1184 = vset.pattern.permute.xlu0 0
      %1185 = vperm.xlu0 %1184, %v1006
      %v1186 = vpop.permute.xlu0 %1185
      %v1188 = vperm.slane %v1007, 0
      %v1189 = vmul.f32 %v1011, %v1188
      %v1190 = vmul.f32 %v1016, %v1188
      %v1191 = vmul.f32 %v1021, %v1188
      %v1192 = vmul.f32 %v1026, %v1188
      %v1193 = vmul.f32 %v1031, %v1188
      %v1194 = vmul.f32 %v1036, %v1188
      %v1195 = vmul.f32 %v1041, %v1188
      %v1196 = vmul.f32 %v1046, %v1188
      %v1197 = vmul.f32 %v1051, %v1188
      %v1198 = vmul.f32 %v1056, %v1188
      %v1199 = vmul.f32 %v1061, %v1188
      %v1200 = vmul.f32 %v1066, %v1188
      %v1201 = vmul.f32 %v1071, %v1188
      %v1202 = vmul.f32 %v1076, %v1188
      %v1203 = vmul.f32 %v1081, %v1188
      %v1204 = vmul.f32 %v1086, %v1188
      %v1205 = vmul.f32 %v1091, %v1188
      %v1206 = vmul.f32 %v1096, %v1188
      %v1207 = vmul.f32 %v1101, %v1188
      %v1208 = vmul.f32 %v1106, %v1188
      %v1209 = vmul.f32 %v1111, %v1188
      %v1210 = vmul.f32 %v1116, %v1188
      %v1211 = vmul.f32 %v1121, %v1188
      %v1212 = vmul.f32 %v1126, %v1188
      %v1213 = vmul.f32 %v1131, %v1188
      %v1214 = vmul.f32 %v1136, %v1188
      %v1215 = vmul.f32 %v1141, %v1188
      %v1216 = vmul.f32 %v1146, %v1188
      %v1217 = vmul.f32 %v1151, %v1188
      %v1218 = vmul.f32 %v1156, %v1188
      %v1219 = vmul.f32 %v1161, %v1188
      %v1220 = vmul.f32 %v1166, %v1188
      %v1221 = vmul.f32 %v1171, %v1188
      %v1222 = vmul.f32 %v1176, %v1188
      %v1223 = vmul.f32 %v1181, %v1188
      %v1224 = vmul.f32 %v1186, %v1188
      %v1225 = vadd.f32 %v935, %v1189
      %v1226 = vadd.f32 %v936, %v1190
      %v1227 = vadd.f32 %v937, %v1191
      %v1228 = vadd.f32 %v938, %v1192
      %v1229 = vadd.f32 %v939, %v1193
      %v1230 = vadd.f32 %v940, %v1194
      %v1231 = vadd.f32 %v941, %v1195
      %v1232 = vadd.f32 %v942, %v1196
      %v1233 = vadd.f32 %v943, %v1197
      %v1234 = vadd.f32 %v944, %v1198
      %v1235 = vadd.f32 %v945, %v1199
      %v1236 = vadd.f32 %v946, %v1200
      %v1237 = vadd.f32 %v947, %v1201
      %v1238 = vadd.f32 %v948, %v1202
      %v1239 = vadd.f32 %v949, %v1203
      %v1240 = vadd.f32 %v950, %v1204
      %v1241 = vadd.f32 %v951, %v1205
      %v1242 = vadd.f32 %v952, %v1206
      %v1243 = vadd.f32 %v953, %v1207
      %v1244 = vadd.f32 %v954, %v1208
      %v1245 = vadd.f32 %v955, %v1209
      %v1246 = vadd.f32 %v956, %v1210
      %v1247 = vadd.f32 %v957, %v1211
      %v1248 = vadd.f32 %v958, %v1212
      %v1249 = vadd.f32 %v959, %v1213
      %v1250 = vadd.f32 %v960, %v1214
      %v1251 = vadd.f32 %v961, %v1215
      %v1252 = vadd.f32 %v962, %v1216
      %v1253 = vadd.f32 %v963, %v1217
      %v1254 = vadd.f32 %v964, %v1218
      %v1255 = vadd.f32 %v965, %v1219
      %v1256 = vadd.f32 %v966, %v1220
      %v1257 = vadd.f32 %v967, %v1221
      %v1258 = vadd.f32 %v968, %v1222
      %v1259 = vadd.f32 %v969, %v1223
      %v1260 = vadd.f32 %v970, %v1224
      %v1261 = vld [vmem:[%s382 + $0x12] sm:$0xff]
      %v1262 = vld [vmem:[%s382 + $0x1a] sm:$0xff]
      %v1263 = vld [vmem:[%s382 + $0x22] sm:$0xff]
      %v1264 = vld [vmem:[%s382 + $0x2a] sm:$0xff]
      %v1265 = vld [vmem:[%s382 + $0x32] sm:$0xff]
      %v1266 = vld [vmem:[%s382 + $0x3a] sm:$0xff]
      %v1267 = vld [vmem:[%s382 + $0x42] sm:$0xff]
      %v1268 = vld [vmem:[%s382 + $0x4a] sm:$0xff]
      %v1269 = vld [vmem:[%s382 + $0x52] sm:$0xff]
      %v1270 = vld [vmem:[%s382 + $0x5a] sm:$0xff]
      %v1271 = vld [vmem:[%s382 + $0x62] sm:$0xff]
      %v1272 = vld [vmem:[%s382 + $0x6a] sm:$0xff]
      %v1273 = vld [vmem:[%s382 + $0x72] sm:$0xff]
      %v1274 = vld [vmem:[%s382 + $0x7a] sm:$0xff]
      %v1275 = vld [vmem:[%s382 + $0x82] sm:$0xff]
      %v1276 = vld [vmem:[%s382 + $0x8a] sm:$0xff]
      %v1277 = vld [vmem:[%s382 + $0x92] sm:$0xff]
      %v1278 = vld [vmem:[%s382 + $0x9a] sm:$0xff]
      %v1279 = vld [vmem:[%s382 + $0xa2] sm:$0xff]
      %v1280 = vld [vmem:[%s382 + $0xaa] sm:$0xff]
      %v1281 = vld [vmem:[%s382 + $0xb2] sm:$0xff]
      %v1282 = vld [vmem:[%s382 + $0xba] sm:$0xff]
      %v1283 = vld [vmem:[%s382 + $0xc2] sm:$0xff]
      %v1284 = vld [vmem:[%s382 + $0xca] sm:$0xff]
      %v1285 = vld [vmem:[%s382 + $0xd2] sm:$0xff]
      %v1286 = vld [vmem:[%s382 + $0xda] sm:$0xff]
      %v1287 = vld [vmem:[%s382 + $0xe2] sm:$0xff]
      %v1288 = vld [vmem:[%s382 + $0xea] sm:$0xff]
      %v1289 = vld [vmem:[%s382 + $0xf2] sm:$0xff]
      %v1290 = vld [vmem:[%s382 + $0xfa] sm:$0xff]
      %v1291 = vld [vmem:[%s382 + $0x102] sm:$0xff]
      %v1292 = vld [vmem:[%s382 + $0x10a] sm:$0xff]
      %v1293 = vld [vmem:[%s382 + $0x112] sm:$0xff]
      %v1294 = vld [vmem:[%s382 + $0x11a] sm:$0xff]
      %v1295 = vld [vmem:[%s382 + $0x122] sm:$0xff]
      %v1296 = vld [vmem:[%s382 + $0x12a] sm:$0xff]
      %v1297 = vld [vmem:[%s1 + $0x3] sm:$0x1]
      %1299 = vset.pattern.permute.xlu0 0
      %1300 = vperm.xlu0 %1299, %v1261
      %v1301 = vpop.permute.xlu0 %1300
      %1304 = vset.pattern.permute.xlu0 0
      %1305 = vperm.xlu0 %1304, %v1262
      %v1306 = vpop.permute.xlu0 %1305
      %1309 = vset.pattern.permute.xlu0 0
      %1310 = vperm.xlu0 %1309, %v1263
      %v1311 = vpop.permute.xlu0 %1310
      %1314 = vset.pattern.permute.xlu0 0
      %1315 = vperm.xlu0 %1314, %v1264
      %v1316 = vpop.permute.xlu0 %1315
      %1319 = vset.pattern.permute.xlu0 0
      %1320 = vperm.xlu0 %1319, %v1265
      %v1321 = vpop.permute.xlu0 %1320
      %1324 = vset.pattern.permute.xlu0 0
      %1325 = vperm.xlu0 %1324, %v1266
      %v1326 = vpop.permute.xlu0 %1325
      %1329 = vset.pattern.permute.xlu0 0
      %1330 = vperm.xlu0 %1329, %v1267
      %v1331 = vpop.permute.xlu0 %1330
      %1334 = vset.pattern.permute.xlu0 0
      %1335 = vperm.xlu0 %1334, %v1268
      %v1336 = vpop.permute.xlu0 %1335
      %1339 = vset.pattern.permute.xlu0 0
      %1340 = vperm.xlu0 %1339, %v1269
      %v1341 = vpop.permute.xlu0 %1340
      %1344 = vset.pattern.permute.xlu0 0
      %1345 = vperm.xlu0 %1344, %v1270
      %v1346 = vpop.permute.xlu0 %1345
      %1349 = vset.pattern.permute.xlu0 0
      %1350 = vperm.xlu0 %1349, %v1271
      %v1351 = vpop.permute.xlu0 %1350
      %1354 = vset.pattern.permute.xlu0 0
      %1355 = vperm.xlu0 %1354, %v1272
      %v1356 = vpop.permute.xlu0 %1355
      %1359 = vset.pattern.permute.xlu0 0
      %1360 = vperm.xlu0 %1359, %v1273
      %v1361 = vpop.permute.xlu0 %1360
      %1364 = vset.pattern.permute.xlu0 0
      %1365 = vperm.xlu0 %1364, %v1274
      %v1366 = vpop.permute.xlu0 %1365
      %1369 = vset.pattern.permute.xlu0 0
      %1370 = vperm.xlu0 %1369, %v1275
      %v1371 = vpop.permute.xlu0 %1370
      %1374 = vset.pattern.permute.xlu0 0
      %1375 = vperm.xlu0 %1374, %v1276
      %v1376 = vpop.permute.xlu0 %1375
      %1379 = vset.pattern.permute.xlu0 0
      %1380 = vperm.xlu0 %1379, %v1277
      %v1381 = vpop.permute.xlu0 %1380
      %1384 = vset.pattern.permute.xlu0 0
      %1385 = vperm.xlu0 %1384, %v1278
      %v1386 = vpop.permute.xlu0 %1385
      %1389 = vset.pattern.permute.xlu0 0
      %1390 = vperm.xlu0 %1389, %v1279
      %v1391 = vpop.permute.xlu0 %1390
      %1394 = vset.pattern.permute.xlu0 0
      %1395 = vperm.xlu0 %1394, %v1280
      %v1396 = vpop.permute.xlu0 %1395
      %1399 = vset.pattern.permute.xlu0 0
      %1400 = vperm.xlu0 %1399, %v1281
      %v1401 = vpop.permute.xlu0 %1400
      %1404 = vset.pattern.permute.xlu0 0
      %1405 = vperm.xlu0 %1404, %v1282
      %v1406 = vpop.permute.xlu0 %1405
      %1409 = vset.pattern.permute.xlu0 0
      %1410 = vperm.xlu0 %1409, %v1283
      %v1411 = vpop.permute.xlu0 %1410
      %1414 = vset.pattern.permute.xlu0 0
      %1415 = vperm.xlu0 %1414, %v1284
      %v1416 = vpop.permute.xlu0 %1415
      %1419 = vset.pattern.permute.xlu0 0
      %1420 = vperm.xlu0 %1419, %v1285
      %v1421 = vpop.permute.xlu0 %1420
      %1424 = vset.pattern.permute.xlu0 0
      %1425 = vperm.xlu0 %1424, %v1286
      %v1426 = vpop.permute.xlu0 %1425
      %1429 = vset.pattern.permute.xlu0 0
      %1430 = vperm.xlu0 %1429, %v1287
      %v1431 = vpop.permute.xlu0 %1430
      %1434 = vset.pattern.permute.xlu0 0
      %1435 = vperm.xlu0 %1434, %v1288
      %v1436 = vpop.permute.xlu0 %1435
      %1439 = vset.pattern.permute.xlu0 0
      %1440 = vperm.xlu0 %1439, %v1289
      %v1441 = vpop.permute.xlu0 %1440
      %1444 = vset.pattern.permute.xlu0 0
      %1445 = vperm.xlu0 %1444, %v1290
      %v1446 = vpop.permute.xlu0 %1445
      %1449 = vset.pattern.permute.xlu0 0
      %1450 = vperm.xlu0 %1449, %v1291
      %v1451 = vpop.permute.xlu0 %1450
      %1454 = vset.pattern.permute.xlu0 0
      %1455 = vperm.xlu0 %1454, %v1292
      %v1456 = vpop.permute.xlu0 %1455
      %1459 = vset.pattern.permute.xlu0 0
      %1460 = vperm.xlu0 %1459, %v1293
      %v1461 = vpop.permute.xlu0 %1460
      %1464 = vset.pattern.permute.xlu0 0
      %1465 = vperm.xlu0 %1464, %v1294
      %v1466 = vpop.permute.xlu0 %1465
      %1469 = vset.pattern.permute.xlu0 0
      %1470 = vperm.xlu0 %1469, %v1295
      %v1471 = vpop.permute.xlu0 %1470
      %1474 = vset.pattern.permute.xlu0 0
      %1475 = vperm.xlu0 %1474, %v1296
      %v1476 = vpop.permute.xlu0 %1475
      %v1478 = vperm.slane %v1297, 0
      %v1479 = vmul.f32 %v1301, %v1478
      %v1480 = vmul.f32 %v1306, %v1478
      %v1481 = vmul.f32 %v1311, %v1478
      %v1482 = vmul.f32 %v1316, %v1478
      %v1483 = vmul.f32 %v1321, %v1478
      %v1484 = vmul.f32 %v1326, %v1478
      %v1485 = vmul.f32 %v1331, %v1478
      %v1486 = vmul.f32 %v1336, %v1478
      %v1487 = vmul.f32 %v1341, %v1478
      %v1488 = vmul.f32 %v1346, %v1478
      %v1489 = vmul.f32 %v1351, %v1478
      %v1490 = vmul.f32 %v1356, %v1478
      %v1491 = vmul.f32 %v1361, %v1478
      %v1492 = vmul.f32 %v1366, %v1478
      %v1493 = vmul.f32 %v1371, %v1478
      %v1494 = vmul.f32 %v1376, %v1478
      %v1495 = vmul.f32 %v1381, %v1478
      %v1496 = vmul.f32 %v1386, %v1478
      %v1497 = vmul.f32 %v1391, %v1478
      %v1498 = vmul.f32 %v1396, %v1478
      %v1499 = vmul.f32 %v1401, %v1478
      %v1500 = vmul.f32 %v1406, %v1478
      %v1501 = vmul.f32 %v1411, %v1478
      %v1502 = vmul.f32 %v1416, %v1478
      %v1503 = vmul.f32 %v1421, %v1478
      %v1504 = vmul.f32 %v1426, %v1478
      %v1505 = vmul.f32 %v1431, %v1478
      %v1506 = vmul.f32 %v1436, %v1478
      %v1507 = vmul.f32 %v1441, %v1478
      %v1508 = vmul.f32 %v1446, %v1478
      %v1509 = vmul.f32 %v1451, %v1478
      %v1510 = vmul.f32 %v1456, %v1478
      %v1511 = vmul.f32 %v1461, %v1478
      %v1512 = vmul.f32 %v1466, %v1478
      %v1513 = vmul.f32 %v1471, %v1478
      %v1514 = vmul.f32 %v1476, %v1478
      %v1515 = vadd.f32 %v1225, %v1479
      %v1516 = vadd.f32 %v1226, %v1480
      %v1517 = vadd.f32 %v1227, %v1481
      %v1518 = vadd.f32 %v1228, %v1482
      %v1519 = vadd.f32 %v1229, %v1483
      %v1520 = vadd.f32 %v1230, %v1484
      %v1521 = vadd.f32 %v1231, %v1485
      %v1522 = vadd.f32 %v1232, %v1486
      %v1523 = vadd.f32 %v1233, %v1487
      %v1524 = vadd.f32 %v1234, %v1488
      %v1525 = vadd.f32 %v1235, %v1489
      %v1526 = vadd.f32 %v1236, %v1490
      %v1527 = vadd.f32 %v1237, %v1491
      %v1528 = vadd.f32 %v1238, %v1492
      %v1529 = vadd.f32 %v1239, %v1493
      %v1530 = vadd.f32 %v1240, %v1494
      %v1531 = vadd.f32 %v1241, %v1495
      %v1532 = vadd.f32 %v1242, %v1496
      %v1533 = vadd.f32 %v1243, %v1497
      %v1534 = vadd.f32 %v1244, %v1498
      %v1535 = vadd.f32 %v1245, %v1499
      %v1536 = vadd.f32 %v1246, %v1500
      %v1537 = vadd.f32 %v1247, %v1501
      %v1538 = vadd.f32 %v1248, %v1502
      %v1539 = vadd.f32 %v1249, %v1503
      %v1540 = vadd.f32 %v1250, %v1504
      %v1541 = vadd.f32 %v1251, %v1505
      %v1542 = vadd.f32 %v1252, %v1506
      %v1543 = vadd.f32 %v1253, %v1507
      %v1544 = vadd.f32 %v1254, %v1508
      %v1545 = vadd.f32 %v1255, %v1509
      %v1546 = vadd.f32 %v1256, %v1510
      %v1547 = vadd.f32 %v1257, %v1511
      %v1548 = vadd.f32 %v1258, %v1512
      %v1549 = vadd.f32 %v1259, %v1513
      %v1550 = vadd.f32 %v1260, %v1514
      %v1551 = vld [vmem:[%s382 + $0x13] sm:$0xff]
      %v1552 = vld [vmem:[%s382 + $0x1b] sm:$0xff]
      %v1553 = vld [vmem:[%s382 + $0x23] sm:$0xff]
      %v1554 = vld [vmem:[%s382 + $0x2b] sm:$0xff]
      %v1555 = vld [vmem:[%s382 + $0x33] sm:$0xff]
      %v1556 = vld [vmem:[%s382 + $0x3b] sm:$0xff]
      %v1557 = vld [vmem:[%s382 + $0x43] sm:$0xff]
      %v1558 = vld [vmem:[%s382 + $0x4b] sm:$0xff]
      %v1559 = vld [vmem:[%s382 + $0x53] sm:$0xff]
      %v1560 = vld [vmem:[%s382 + $0x5b] sm:$0xff]
      %v1561 = vld [vmem:[%s382 + $0x63] sm:$0xff]
      %v1562 = vld [vmem:[%s382 + $0x6b] sm:$0xff]
      %v1563 = vld [vmem:[%s382 + $0x73] sm:$0xff]
      %v1564 = vld [vmem:[%s382 + $0x7b] sm:$0xff]
      %v1565 = vld [vmem:[%s382 + $0x83] sm:$0xff]
      %v1566 = vld [vmem:[%s382 + $0x8b] sm:$0xff]
      %v1567 = vld [vmem:[%s382 + $0x93] sm:$0xff]
      %v1568 = vld [vmem:[%s382 + $0x9b] sm:$0xff]
      %v1569 = vld [vmem:[%s382 + $0xa3] sm:$0xff]
      %v1570 = vld [vmem:[%s382 + $0xab] sm:$0xff]
      %v1571 = vld [vmem:[%s382 + $0xb3] sm:$0xff]
      %v1572 = vld [vmem:[%s382 + $0xbb] sm:$0xff]
      %v1573 = vld [vmem:[%s382 + $0xc3] sm:$0xff]
      %v1574 = vld [vmem:[%s382 + $0xcb] sm:$0xff]
      %v1575 = vld [vmem:[%s382 + $0xd3] sm:$0xff]
      %v1576 = vld [vmem:[%s382 + $0xdb] sm:$0xff]
      %v1577 = vld [vmem:[%s382 + $0xe3] sm:$0xff]
      %v1578 = vld [vmem:[%s382 + $0xeb] sm:$0xff]
      %v1579 = vld [vmem:[%s382 + $0xf3] sm:$0xff]
      %v1580 = vld [vmem:[%s382 + $0xfb] sm:$0xff]
      %v1581 = vld [vmem:[%s382 + $0x103] sm:$0xff]
      %v1582 = vld [vmem:[%s382 + $0x10b] sm:$0xff]
      %v1583 = vld [vmem:[%s382 + $0x113] sm:$0xff]
      %v1584 = vld [vmem:[%s382 + $0x11b] sm:$0xff]
      %v1585 = vld [vmem:[%s382 + $0x123] sm:$0xff]
      %v1586 = vld [vmem:[%s382 + $0x12b] sm:$0xff]
      %v1587 = vld [vmem:[%s1 + $0x4] sm:$0x1]
      %1589 = vset.pattern.permute.xlu0 0
      %1590 = vperm.xlu0 %1589, %v1551
      %v1591 = vpop.permute.xlu0 %1590
      %1594 = vset.pattern.permute.xlu0 0
      %1595 = vperm.xlu0 %1594, %v1552
      %v1596 = vpop.permute.xlu0 %1595
      %1599 = vset.pattern.permute.xlu0 0
      %1600 = vperm.xlu0 %1599, %v1553
      %v1601 = vpop.permute.xlu0 %1600
      %1604 = vset.pattern.permute.xlu0 0
      %1605 = vperm.xlu0 %1604, %v1554
      %v1606 = vpop.permute.xlu0 %1605
      %1609 = vset.pattern.permute.xlu0 0
      %1610 = vperm.xlu0 %1609, %v1555
      %v1611 = vpop.permute.xlu0 %1610
      %1614 = vset.pattern.permute.xlu0 0
      %1615 = vperm.xlu0 %1614, %v1556
      %v1616 = vpop.permute.xlu0 %1615
      %1619 = vset.pattern.permute.xlu0 0
      %1620 = vperm.xlu0 %1619, %v1557
      %v1621 = vpop.permute.xlu0 %1620
      %1624 = vset.pattern.permute.xlu0 0
      %1625 = vperm.xlu0 %1624, %v1558
      %v1626 = vpop.permute.xlu0 %1625
      %1629 = vset.pattern.permute.xlu0 0
      %1630 = vperm.xlu0 %1629, %v1559
      %v1631 = vpop.permute.xlu0 %1630
      %1634 = vset.pattern.permute.xlu0 0
      %1635 = vperm.xlu0 %1634, %v1560
      %v1636 = vpop.permute.xlu0 %1635
      %1639 = vset.pattern.permute.xlu0 0
      %1640 = vperm.xlu0 %1639, %v1561
      %v1641 = vpop.permute.xlu0 %1640
      %1644 = vset.pattern.permute.xlu0 0
      %1645 = vperm.xlu0 %1644, %v1562
      %v1646 = vpop.permute.xlu0 %1645
      %1649 = vset.pattern.permute.xlu0 0
      %1650 = vperm.xlu0 %1649, %v1563
      %v1651 = vpop.permute.xlu0 %1650
      %1654 = vset.pattern.permute.xlu0 0
      %1655 = vperm.xlu0 %1654, %v1564
      %v1656 = vpop.permute.xlu0 %1655
      %1659 = vset.pattern.permute.xlu0 0
      %1660 = vperm.xlu0 %1659, %v1565
      %v1661 = vpop.permute.xlu0 %1660
      %1664 = vset.pattern.permute.xlu0 0
      %1665 = vperm.xlu0 %1664, %v1566
      %v1666 = vpop.permute.xlu0 %1665
      %1669 = vset.pattern.permute.xlu0 0
      %1670 = vperm.xlu0 %1669, %v1567
      %v1671 = vpop.permute.xlu0 %1670
      %1674 = vset.pattern.permute.xlu0 0
      %1675 = vperm.xlu0 %1674, %v1568
      %v1676 = vpop.permute.xlu0 %1675
      %1679 = vset.pattern.permute.xlu0 0
      %1680 = vperm.xlu0 %1679, %v1569
      %v1681 = vpop.permute.xlu0 %1680
      %1684 = vset.pattern.permute.xlu0 0
      %1685 = vperm.xlu0 %1684, %v1570
      %v1686 = vpop.permute.xlu0 %1685
      %1689 = vset.pattern.permute.xlu0 0
      %1690 = vperm.xlu0 %1689, %v1571
      %v1691 = vpop.permute.xlu0 %1690
      %1694 = vset.pattern.permute.xlu0 0
      %1695 = vperm.xlu0 %1694, %v1572
      %v1696 = vpop.permute.xlu0 %1695
      %1699 = vset.pattern.permute.xlu0 0
      %1700 = vperm.xlu0 %1699, %v1573
      %v1701 = vpop.permute.xlu0 %1700
      %1704 = vset.pattern.permute.xlu0 0
      %1705 = vperm.xlu0 %1704, %v1574
      %v1706 = vpop.permute.xlu0 %1705
      %1709 = vset.pattern.permute.xlu0 0
      %1710 = vperm.xlu0 %1709, %v1575
      %v1711 = vpop.permute.xlu0 %1710
      %1714 = vset.pattern.permute.xlu0 0
      %1715 = vperm.xlu0 %1714, %v1576
      %v1716 = vpop.permute.xlu0 %1715
      %1719 = vset.pattern.permute.xlu0 0
      %1720 = vperm.xlu0 %1719, %v1577
      %v1721 = vpop.permute.xlu0 %1720
      %1724 = vset.pattern.permute.xlu0 0
      %1725 = vperm.xlu0 %1724, %v1578
      %v1726 = vpop.permute.xlu0 %1725
      %1729 = vset.pattern.permute.xlu0 0
      %1730 = vperm.xlu0 %1729, %v1579
      %v1731 = vpop.permute.xlu0 %1730
      %1734 = vset.pattern.permute.xlu0 0
      %1735 = vperm.xlu0 %1734, %v1580
      %v1736 = vpop.permute.xlu0 %1735
      %1739 = vset.pattern.permute.xlu0 0
      %1740 = vperm.xlu0 %1739, %v1581
      %v1741 = vpop.permute.xlu0 %1740
      %1744 = vset.pattern.permute.xlu0 0
      %1745 = vperm.xlu0 %1744, %v1582
      %v1746 = vpop.permute.xlu0 %1745
      %1749 = vset.pattern.permute.xlu0 0
      %1750 = vperm.xlu0 %1749, %v1583
      %v1751 = vpop.permute.xlu0 %1750
      %1754 = vset.pattern.permute.xlu0 0
      %1755 = vperm.xlu0 %1754, %v1584
      %v1756 = vpop.permute.xlu0 %1755
      %1759 = vset.pattern.permute.xlu0 0
      %1760 = vperm.xlu0 %1759, %v1585
      %v1761 = vpop.permute.xlu0 %1760
      %1764 = vset.pattern.permute.xlu0 0
      %1765 = vperm.xlu0 %1764, %v1586
      %v1766 = vpop.permute.xlu0 %1765
      %v1768 = vperm.slane %v1587, 0
      %v1769 = vmul.f32 %v1591, %v1768
      %v1770 = vmul.f32 %v1596, %v1768
      %v1771 = vmul.f32 %v1601, %v1768
      %v1772 = vmul.f32 %v1606, %v1768
      %v1773 = vmul.f32 %v1611, %v1768
      %v1774 = vmul.f32 %v1616, %v1768
      %v1775 = vmul.f32 %v1621, %v1768
      %v1776 = vmul.f32 %v1626, %v1768
      %v1777 = vmul.f32 %v1631, %v1768
      %v1778 = vmul.f32 %v1636, %v1768
      %v1779 = vmul.f32 %v1641, %v1768
      %v1780 = vmul.f32 %v1646, %v1768
      %v1781 = vmul.f32 %v1651, %v1768
      %v1782 = vmul.f32 %v1656, %v1768
      %v1783 = vmul.f32 %v1661, %v1768
      %v1784 = vmul.f32 %v1666, %v1768
      %v1785 = vmul.f32 %v1671, %v1768
      %v1786 = vmul.f32 %v1676, %v1768
      %v1787 = vmul.f32 %v1681, %v1768
      %v1788 = vmul.f32 %v1686, %v1768
      %v1789 = vmul.f32 %v1691, %v1768
      %v1790 = vmul.f32 %v1696, %v1768
      %v1791 = vmul.f32 %v1701, %v1768
      %v1792 = vmul.f32 %v1706, %v1768
      %v1793 = vmul.f32 %v1711, %v1768
      %v1794 = vmul.f32 %v1716, %v1768
      %v1795 = vmul.f32 %v1721, %v1768
      %v1796 = vmul.f32 %v1726, %v1768
      %v1797 = vmul.f32 %v1731, %v1768
      %v1798 = vmul.f32 %v1736, %v1768
      %v1799 = vmul.f32 %v1741, %v1768
      %v1800 = vmul.f32 %v1746, %v1768
      %v1801 = vmul.f32 %v1751, %v1768
      %v1802 = vmul.f32 %v1756, %v1768
      %v1803 = vmul.f32 %v1761, %v1768
      %v1804 = vmul.f32 %v1766, %v1768
      %v1805 = vadd.f32 %v1515, %v1769
      %v1806 = vadd.f32 %v1516, %v1770
      %v1807 = vadd.f32 %v1517, %v1771
      %v1808 = vadd.f32 %v1518, %v1772
      %v1809 = vadd.f32 %v1519, %v1773
      %v1810 = vadd.f32 %v1520, %v1774
      %v1811 = vadd.f32 %v1521, %v1775
      %v1812 = vadd.f32 %v1522, %v1776
      %v1813 = vadd.f32 %v1523, %v1777
      %v1814 = vadd.f32 %v1524, %v1778
      %v1815 = vadd.f32 %v1525, %v1779
      %v1816 = vadd.f32 %v1526, %v1780
      %v1817 = vadd.f32 %v1527, %v1781
      %v1818 = vadd.f32 %v1528, %v1782
      %v1819 = vadd.f32 %v1529, %v1783
      %v1820 = vadd.f32 %v1530, %v1784
      %v1821 = vadd.f32 %v1531, %v1785
      %v1822 = vadd.f32 %v1532, %v1786
      %v1823 = vadd.f32 %v1533, %v1787
      %v1824 = vadd.f32 %v1534, %v1788
      %v1825 = vadd.f32 %v1535, %v1789
      %v1826 = vadd.f32 %v1536, %v1790
      %v1827 = vadd.f32 %v1537, %v1791
      %v1828 = vadd.f32 %v1538, %v1792
      %v1829 = vadd.f32 %v1539, %v1793
      %v1830 = vadd.f32 %v1540, %v1794
      %v1831 = vadd.f32 %v1541, %v1795
      %v1832 = vadd.f32 %v1542, %v1796
      %v1833 = vadd.f32 %v1543, %v1797
      %v1834 = vadd.f32 %v1544, %v1798
      %v1835 = vadd.f32 %v1545, %v1799
      %v1836 = vadd.f32 %v1546, %v1800
      %v1837 = vadd.f32 %v1547, %v1801
      %v1838 = vadd.f32 %v1548, %v1802
      %v1839 = vadd.f32 %v1549, %v1803
      %v1840 = vadd.f32 %v1550, %v1804
      %v1841 = vld [vmem:[%s382 + $0x14] sm:$0xff]
      %v1842 = vld [vmem:[%s382 + $0x1c] sm:$0xff]
      %v1843 = vld [vmem:[%s382 + $0x24] sm:$0xff]
      %v1844 = vld [vmem:[%s382 + $0x2c] sm:$0xff]
      %v1845 = vld [vmem:[%s382 + $0x34] sm:$0xff]
      %v1846 = vld [vmem:[%s382 + $0x3c] sm:$0xff]
      %v1847 = vld [vmem:[%s382 + $0x44] sm:$0xff]
      %v1848 = vld [vmem:[%s382 + $0x4c] sm:$0xff]
      %v1849 = vld [vmem:[%s382 + $0x54] sm:$0xff]
      %v1850 = vld [vmem:[%s382 + $0x5c] sm:$0xff]
      %v1851 = vld [vmem:[%s382 + $0x64] sm:$0xff]
      %v1852 = vld [vmem:[%s382 + $0x6c] sm:$0xff]
      %v1853 = vld [vmem:[%s382 + $0x74] sm:$0xff]
      %v1854 = vld [vmem:[%s382 + $0x7c] sm:$0xff]
      %v1855 = vld [vmem:[%s382 + $0x84] sm:$0xff]
      %v1856 = vld [vmem:[%s382 + $0x8c] sm:$0xff]
      %v1857 = vld [vmem:[%s382 + $0x94] sm:$0xff]
      %v1858 = vld [vmem:[%s382 + $0x9c] sm:$0xff]
      %v1859 = vld [vmem:[%s382 + $0xa4] sm:$0xff]
      %v1860 = vld [vmem:[%s382 + $0xac] sm:$0xff]
      %v1861 = vld [vmem:[%s382 + $0xb4] sm:$0xff]
      %v1862 = vld [vmem:[%s382 + $0xbc] sm:$0xff]
      %v1863 = vld [vmem:[%s382 + $0xc4] sm:$0xff]
      %v1864 = vld [vmem:[%s382 + $0xcc] sm:$0xff]
      %v1865 = vld [vmem:[%s382 + $0xd4] sm:$0xff]
      %v1866 = vld [vmem:[%s382 + $0xdc] sm:$0xff]
      %v1867 = vld [vmem:[%s382 + $0xe4] sm:$0xff]
      %v1868 = vld [vmem:[%s382 + $0xec] sm:$0xff]
      %v1869 = vld [vmem:[%s382 + $0xf4] sm:$0xff]
      %v1870 = vld [vmem:[%s382 + $0xfc] sm:$0xff]
      %v1871 = vld [vmem:[%s382 + $0x104] sm:$0xff]
      %v1872 = vld [vmem:[%s382 + $0x10c] sm:$0xff]
      %v1873 = vld [vmem:[%s382 + $0x114] sm:$0xff]
      %v1874 = vld [vmem:[%s382 + $0x11c] sm:$0xff]
      %v1875 = vld [vmem:[%s382 + $0x124] sm:$0xff]
      %v1876 = vld [vmem:[%s382 + $0x12c] sm:$0xff]
      %v1877 = vld [vmem:[%s1 + $0x5] sm:$0x1]
      %1879 = vset.pattern.permute.xlu0 0
      %1880 = vperm.xlu0 %1879, %v1841
      %v1881 = vpop.permute.xlu0 %1880
      %1884 = vset.pattern.permute.xlu0 0
      %1885 = vperm.xlu0 %1884, %v1842
      %v1886 = vpop.permute.xlu0 %1885
      %1889 = vset.pattern.permute.xlu0 0
      %1890 = vperm.xlu0 %1889, %v1843
      %v1891 = vpop.permute.xlu0 %1890
      %1894 = vset.pattern.permute.xlu0 0
      %1895 = vperm.xlu0 %1894, %v1844
      %v1896 = vpop.permute.xlu0 %1895
      %1899 = vset.pattern.permute.xlu0 0
      %1900 = vperm.xlu0 %1899, %v1845
      %v1901 = vpop.permute.xlu0 %1900
      %1904 = vset.pattern.permute.xlu0 0
      %1905 = vperm.xlu0 %1904, %v1846
      %v1906 = vpop.permute.xlu0 %1905
      %1909 = vset.pattern.permute.xlu0 0
      %1910 = vperm.xlu0 %1909, %v1847
      %v1911 = vpop.permute.xlu0 %1910
      %1914 = vset.pattern.permute.xlu0 0
      %1915 = vperm.xlu0 %1914, %v1848
      %v1916 = vpop.permute.xlu0 %1915
      %1919 = vset.pattern.permute.xlu0 0
      %1920 = vperm.xlu0 %1919, %v1849
      %v1921 = vpop.permute.xlu0 %1920
      %1924 = vset.pattern.permute.xlu0 0
      %1925 = vperm.xlu0 %1924, %v1850
      %v1926 = vpop.permute.xlu0 %1925
      %1929 = vset.pattern.permute.xlu0 0
      %1930 = vperm.xlu0 %1929, %v1851
      %v1931 = vpop.permute.xlu0 %1930
      %1934 = vset.pattern.permute.xlu0 0
      %1935 = vperm.xlu0 %1934, %v1852
      %v1936 = vpop.permute.xlu0 %1935
      %1939 = vset.pattern.permute.xlu0 0
      %1940 = vperm.xlu0 %1939, %v1853
      %v1941 = vpop.permute.xlu0 %1940
      %1944 = vset.pattern.permute.xlu0 0
      %1945 = vperm.xlu0 %1944, %v1854
      %v1946 = vpop.permute.xlu0 %1945
      %1949 = vset.pattern.permute.xlu0 0
      %1950 = vperm.xlu0 %1949, %v1855
      %v1951 = vpop.permute.xlu0 %1950
      %1954 = vset.pattern.permute.xlu0 0
      %1955 = vperm.xlu0 %1954, %v1856
      %v1956 = vpop.permute.xlu0 %1955
      %1959 = vset.pattern.permute.xlu0 0
      %1960 = vperm.xlu0 %1959, %v1857
      %v1961 = vpop.permute.xlu0 %1960
      %1964 = vset.pattern.permute.xlu0 0
      %1965 = vperm.xlu0 %1964, %v1858
      %v1966 = vpop.permute.xlu0 %1965
      %1969 = vset.pattern.permute.xlu0 0
      %1970 = vperm.xlu0 %1969, %v1859
      %v1971 = vpop.permute.xlu0 %1970
      %1974 = vset.pattern.permute.xlu0 0
      %1975 = vperm.xlu0 %1974, %v1860
      %v1976 = vpop.permute.xlu0 %1975
      %1979 = vset.pattern.permute.xlu0 0
      %1980 = vperm.xlu0 %1979, %v1861
      %v1981 = vpop.permute.xlu0 %1980
      %1984 = vset.pattern.permute.xlu0 0
      %1985 = vperm.xlu0 %1984, %v1862
      %v1986 = vpop.permute.xlu0 %1985
      %1989 = vset.pattern.permute.xlu0 0
      %1990 = vperm.xlu0 %1989, %v1863
      %v1991 = vpop.permute.xlu0 %1990
      %1994 = vset.pattern.permute.xlu0 0
      %1995 = vperm.xlu0 %1994, %v1864
      %v1996 = vpop.permute.xlu0 %1995
      %1999 = vset.pattern.permute.xlu0 0
      %2000 = vperm.xlu0 %1999, %v1865
      %v2001 = vpop.permute.xlu0 %2000
      %2004 = vset.pattern.permute.xlu0 0
      %2005 = vperm.xlu0 %2004, %v1866
      %v2006 = vpop.permute.xlu0 %2005
      %2009 = vset.pattern.permute.xlu0 0
      %2010 = vperm.xlu0 %2009, %v1867
      %v2011 = vpop.permute.xlu0 %2010
      %2014 = vset.pattern.permute.xlu0 0
      %2015 = vperm.xlu0 %2014, %v1868
      %v2016 = vpop.permute.xlu0 %2015
      %2019 = vset.pattern.permute.xlu0 0
      %2020 = vperm.xlu0 %2019, %v1869
      %v2021 = vpop.permute.xlu0 %2020
      %2024 = vset.pattern.permute.xlu0 0
      %2025 = vperm.xlu0 %2024, %v1870
      %v2026 = vpop.permute.xlu0 %2025
      %2029 = vset.pattern.permute.xlu0 0
      %2030 = vperm.xlu0 %2029, %v1871
      %v2031 = vpop.permute.xlu0 %2030
      %2034 = vset.pattern.permute.xlu0 0
      %2035 = vperm.xlu0 %2034, %v1872
      %v2036 = vpop.permute.xlu0 %2035
      %2039 = vset.pattern.permute.xlu0 0
      %2040 = vperm.xlu0 %2039, %v1873
      %v2041 = vpop.permute.xlu0 %2040
      %2044 = vset.pattern.permute.xlu0 0
      %2045 = vperm.xlu0 %2044, %v1874
      %v2046 = vpop.permute.xlu0 %2045
      %2049 = vset.pattern.permute.xlu0 0
      %2050 = vperm.xlu0 %2049, %v1875
      %v2051 = vpop.permute.xlu0 %2050
      %2054 = vset.pattern.permute.xlu0 0
      %2055 = vperm.xlu0 %2054, %v1876
      %v2056 = vpop.permute.xlu0 %2055
      %v2058 = vperm.slane %v1877, 0
      %v2059 = vmul.f32 %v1881, %v2058
      %v2060 = vmul.f32 %v1886, %v2058
      %v2061 = vmul.f32 %v1891, %v2058
      %v2062 = vmul.f32 %v1896, %v2058
      %v2063 = vmul.f32 %v1901, %v2058
      %v2064 = vmul.f32 %v1906, %v2058
      %v2065 = vmul.f32 %v1911, %v2058
      %v2066 = vmul.f32 %v1916, %v2058
      %v2067 = vmul.f32 %v1921, %v2058
      %v2068 = vmul.f32 %v1926, %v2058
      %v2069 = vmul.f32 %v1931, %v2058
      %v2070 = vmul.f32 %v1936, %v2058
      %v2071 = vmul.f32 %v1941, %v2058
      %v2072 = vmul.f32 %v1946, %v2058
      %v2073 = vmul.f32 %v1951, %v2058
      %v2074 = vmul.f32 %v1956, %v2058
      %v2075 = vmul.f32 %v1961, %v2058
      %v2076 = vmul.f32 %v1966, %v2058
      %v2077 = vmul.f32 %v1971, %v2058
      %v2078 = vmul.f32 %v1976, %v2058
      %v2079 = vmul.f32 %v1981, %v2058
      %v2080 = vmul.f32 %v1986, %v2058
      %v2081 = vmul.f32 %v1991, %v2058
      %v2082 = vmul.f32 %v1996, %v2058
      %v2083 = vmul.f32 %v2001, %v2058
      %v2084 = vmul.f32 %v2006, %v2058
      %v2085 = vmul.f32 %v2011, %v2058
      %v2086 = vmul.f32 %v2016, %v2058
      %v2087 = vmul.f32 %v2021, %v2058
      %v2088 = vmul.f32 %v2026, %v2058
      %v2089 = vmul.f32 %v2031, %v2058
      %v2090 = vmul.f32 %v2036, %v2058
      %v2091 = vmul.f32 %v2041, %v2058
      %v2092 = vmul.f32 %v2046, %v2058
      %v2093 = vmul.f32 %v2051, %v2058
      %v2094 = vmul.f32 %v2056, %v2058
      %v2095 = vadd.f32 %v1805, %v2059
      %v2096 = vadd.f32 %v1806, %v2060
      %v2097 = vadd.f32 %v1807, %v2061
      %v2098 = vadd.f32 %v1808, %v2062
      %v2099 = vadd.f32 %v1809, %v2063
      %v2100 = vadd.f32 %v1810, %v2064
      %v2101 = vadd.f32 %v1811, %v2065
      %v2102 = vadd.f32 %v1812, %v2066
      %v2103 = vadd.f32 %v1813, %v2067
      %v2104 = vadd.f32 %v1814, %v2068
      %v2105 = vadd.f32 %v1815, %v2069
      %v2106 = vadd.f32 %v1816, %v2070
      %v2107 = vadd.f32 %v1817, %v2071
      %v2108 = vadd.f32 %v1818, %v2072
      %v2109 = vadd.f32 %v1819, %v2073
      %v2110 = vadd.f32 %v1820, %v2074
      %v2111 = vadd.f32 %v1821, %v2075
      %v2112 = vadd.f32 %v1822, %v2076
      %v2113 = vadd.f32 %v1823, %v2077
      %v2114 = vadd.f32 %v1824, %v2078
      %v2115 = vadd.f32 %v1825, %v2079
      %v2116 = vadd.f32 %v1826, %v2080
      %v2117 = vadd.f32 %v1827, %v2081
      %v2118 = vadd.f32 %v1828, %v2082
      %v2119 = vadd.f32 %v1829, %v2083
      %v2120 = vadd.f32 %v1830, %v2084
      %v2121 = vadd.f32 %v1831, %v2085
      %v2122 = vadd.f32 %v1832, %v2086
      %v2123 = vadd.f32 %v1833, %v2087
      %v2124 = vadd.f32 %v1834, %v2088
      %v2125 = vadd.f32 %v1835, %v2089
      %v2126 = vadd.f32 %v1836, %v2090
      %v2127 = vadd.f32 %v1837, %v2091
      %v2128 = vadd.f32 %v1838, %v2092
      %v2129 = vadd.f32 %v1839, %v2093
      %v2130 = vadd.f32 %v1840, %v2094
      %v2131 = vld [vmem:[%s382 + $0x24] sm:$0xff]
      %v2132 = vld [vmem:[%s382 + $0x2c] sm:$0xff]
      %v2133 = vld [vmem:[%s382 + $0x34] sm:$0xff]
      %v2134 = vld [vmem:[%s382 + $0x3c] sm:$0xff]
      %v2135 = vld [vmem:[%s382 + $0x44] sm:$0xff]
      %v2136 = vld [vmem:[%s382 + $0x4c] sm:$0xff]
      %v2137 = vld [vmem:[%s382 + $0x54] sm:$0xff]
      %v2138 = vld [vmem:[%s382 + $0x5c] sm:$0xff]
      %v2139 = vld [vmem:[%s382 + $0x64] sm:$0xff]
      %v2140 = vld [vmem:[%s382 + $0x6c] sm:$0xff]
      %v2141 = vld [vmem:[%s382 + $0x74] sm:$0xff]
      %v2142 = vld [vmem:[%s382 + $0x7c] sm:$0xff]
      %v2143 = vld [vmem:[%s382 + $0x84] sm:$0xff]
      %v2144 = vld [vmem:[%s382 + $0x8c] sm:$0xff]
      %v2145 = vld [vmem:[%s382 + $0x94] sm:$0xff]
      %v2146 = vld [vmem:[%s382 + $0x9c] sm:$0xff]
      %v2147 = vld [vmem:[%s382 + $0xa4] sm:$0xff]
      %v2148 = vld [vmem:[%s382 + $0xac] sm:$0xff]
      %v2149 = vld [vmem:[%s382 + $0xb4] sm:$0xff]
      %v2150 = vld [vmem:[%s382 + $0xbc] sm:$0xff]
      %v2151 = vld [vmem:[%s382 + $0xc4] sm:$0xff]
      %v2152 = vld [vmem:[%s382 + $0xcc] sm:$0xff]
      %v2153 = vld [vmem:[%s382 + $0xd4] sm:$0xff]
      %v2154 = vld [vmem:[%s382 + $0xdc] sm:$0xff]
      %v2155 = vld [vmem:[%s382 + $0xe4] sm:$0xff]
      %v2156 = vld [vmem:[%s382 + $0xec] sm:$0xff]
      %v2157 = vld [vmem:[%s382 + $0xf4] sm:$0xff]
      %v2158 = vld [vmem:[%s382 + $0xfc] sm:$0xff]
      %v2159 = vld [vmem:[%s382 + $0x104] sm:$0xff]
      %v2160 = vld [vmem:[%s382 + $0x10c] sm:$0xff]
      %v2161 = vld [vmem:[%s382 + $0x114] sm:$0xff]
      %v2162 = vld [vmem:[%s382 + $0x11c] sm:$0xff]
      %v2163 = vld [vmem:[%s382 + $0x124] sm:$0xff]
      %v2164 = vld [vmem:[%s382 + $0x12c] sm:$0xff]
      %v2165 = vld [vmem:[%s382 + $0x134] sm:$0xff]
      %v2166 = vld [vmem:[%s382 + $0x13c] sm:$0xff]
      %v2167 = vld [vmem:[%s1 + $0x6] sm:$0x1]
      %2169 = vset.pattern.permute.xlu0 0
      %2170 = vperm.xlu0 %2169, %v2131
      %v2171 = vpop.permute.xlu0 %2170
      %2174 = vset.pattern.permute.xlu0 0
      %2175 = vperm.xlu0 %2174, %v2132
      %v2176 = vpop.permute.xlu0 %2175
      %2179 = vset.pattern.permute.xlu0 0
      %2180 = vperm.xlu0 %2179, %v2133
      %v2181 = vpop.permute.xlu0 %2180
      %2184 = vset.pattern.permute.xlu0 0
      %2185 = vperm.xlu0 %2184, %v2134
      %v2186 = vpop.permute.xlu0 %2185
      %2189 = vset.pattern.permute.xlu0 0
      %2190 = vperm.xlu0 %2189, %v2135
      %v2191 = vpop.permute.xlu0 %2190
      %2194 = vset.pattern.permute.xlu0 0
      %2195 = vperm.xlu0 %2194, %v2136
      %v2196 = vpop.permute.xlu0 %2195
      %2199 = vset.pattern.permute.xlu0 0
      %2200 = vperm.xlu0 %2199, %v2137
      %v2201 = vpop.permute.xlu0 %2200
      %2204 = vset.pattern.permute.xlu0 0
      %2205 = vperm.xlu0 %2204, %v2138
      %v2206 = vpop.permute.xlu0 %2205
      %2209 = vset.pattern.permute.xlu0 0
      %2210 = vperm.xlu0 %2209, %v2139
      %v2211 = vpop.permute.xlu0 %2210
      %2214 = vset.pattern.permute.xlu0 0
      %2215 = vperm.xlu0 %2214, %v2140
      %v2216 = vpop.permute.xlu0 %2215
      %2219 = vset.pattern.permute.xlu0 0
      %2220 = vperm.xlu0 %2219, %v2141
      %v2221 = vpop.permute.xlu0 %2220
      %2224 = vset.pattern.permute.xlu0 0
      %2225 = vperm.xlu0 %2224, %v2142
      %v2226 = vpop.permute.xlu0 %2225
      %2229 = vset.pattern.permute.xlu0 0
      %2230 = vperm.xlu0 %2229, %v2143
      %v2231 = vpop.permute.xlu0 %2230
      %2234 = vset.pattern.permute.xlu0 0
      %2235 = vperm.xlu0 %2234, %v2144
      %v2236 = vpop.permute.xlu0 %2235
      %2239 = vset.pattern.permute.xlu0 0
      %2240 = vperm.xlu0 %2239, %v2145
      %v2241 = vpop.permute.xlu0 %2240
      %2244 = vset.pattern.permute.xlu0 0
      %2245 = vperm.xlu0 %2244, %v2146
      %v2246 = vpop.permute.xlu0 %2245
      %2249 = vset.pattern.permute.xlu0 0
      %2250 = vperm.xlu0 %2249, %v2147
      %v2251 = vpop.permute.xlu0 %2250
      %2254 = vset.pattern.permute.xlu0 0
      %2255 = vperm.xlu0 %2254, %v2148
      %v2256 = vpop.permute.xlu0 %2255
      %2259 = vset.pattern.permute.xlu0 0
      %2260 = vperm.xlu0 %2259, %v2149
      %v2261 = vpop.permute.xlu0 %2260
      %2264 = vset.pattern.permute.xlu0 0
      %2265 = vperm.xlu0 %2264, %v2150
      %v2266 = vpop.permute.xlu0 %2265
      %2269 = vset.pattern.permute.xlu0 0
      %2270 = vperm.xlu0 %2269, %v2151
      %v2271 = vpop.permute.xlu0 %2270
      %2274 = vset.pattern.permute.xlu0 0
      %2275 = vperm.xlu0 %2274, %v2152
      %v2276 = vpop.permute.xlu0 %2275
      %2279 = vset.pattern.permute.xlu0 0
      %2280 = vperm.xlu0 %2279, %v2153
      %v2281 = vpop.permute.xlu0 %2280
      %2284 = vset.pattern.permute.xlu0 0
      %2285 = vperm.xlu0 %2284, %v2154
      %v2286 = vpop.permute.xlu0 %2285
      %2289 = vset.pattern.permute.xlu0 0
      %2290 = vperm.xlu0 %2289, %v2155
      %v2291 = vpop.permute.xlu0 %2290
      %2294 = vset.pattern.permute.xlu0 0
      %2295 = vperm.xlu0 %2294, %v2156
      %v2296 = vpop.permute.xlu0 %2295
      %2299 = vset.pattern.permute.xlu0 0
      %2300 = vperm.xlu0 %2299, %v2157
      %v2301 = vpop.permute.xlu0 %2300
      %2304 = vset.pattern.permute.xlu0 0
      %2305 = vperm.xlu0 %2304, %v2158
      %v2306 = vpop.permute.xlu0 %2305
      %2309 = vset.pattern.permute.xlu0 0
      %2310 = vperm.xlu0 %2309, %v2159
      %v2311 = vpop.permute.xlu0 %2310
      %2314 = vset.pattern.permute.xlu0 0
      %2315 = vperm.xlu0 %2314, %v2160
      %v2316 = vpop.permute.xlu0 %2315
      %2319 = vset.pattern.permute.xlu0 0
      %2320 = vperm.xlu0 %2319, %v2161
      %v2321 = vpop.permute.xlu0 %2320
      %2324 = vset.pattern.permute.xlu0 0
      %2325 = vperm.xlu0 %2324, %v2162
      %v2326 = vpop.permute.xlu0 %2325
      %2329 = vset.pattern.permute.xlu0 0
      %2330 = vperm.xlu0 %2329, %v2163
      %v2331 = vpop.permute.xlu0 %2330
      %2334 = vset.pattern.permute.xlu0 0
      %2335 = vperm.xlu0 %2334, %v2164
      %v2336 = vpop.permute.xlu0 %2335
      %2339 = vset.pattern.permute.xlu0 0
      %2340 = vperm.xlu0 %2339, %v2165
      %v2341 = vpop.permute.xlu0 %2340
      %2344 = vset.pattern.permute.xlu0 0
      %2345 = vperm.xlu0 %2344, %v2166
      %v2346 = vpop.permute.xlu0 %2345
      %v2348 = vperm.slane %v2167, 0
      %v2349 = vmul.f32 %v2171, %v2348
      %v2350 = vmul.f32 %v2176, %v2348
      %v2351 = vmul.f32 %v2181, %v2348
      %v2352 = vmul.f32 %v2186, %v2348
      %v2353 = vmul.f32 %v2191, %v2348
      %v2354 = vmul.f32 %v2196, %v2348
      %v2355 = vmul.f32 %v2201, %v2348
      %v2356 = vmul.f32 %v2206, %v2348
      %v2357 = vmul.f32 %v2211, %v2348
      %v2358 = vmul.f32 %v2216, %v2348
      %v2359 = vmul.f32 %v2221, %v2348
      %v2360 = vmul.f32 %v2226, %v2348
      %v2361 = vmul.f32 %v2231, %v2348
      %v2362 = vmul.f32 %v2236, %v2348
      %v2363 = vmul.f32 %v2241, %v2348
      %v2364 = vmul.f32 %v2246, %v2348
      %v2365 = vmul.f32 %v2251, %v2348
      %v2366 = vmul.f32 %v2256, %v2348
      %v2367 = vmul.f32 %v2261, %v2348
      %v2368 = vmul.f32 %v2266, %v2348
      %v2369 = vmul.f32 %v2271, %v2348
      %v2370 = vmul.f32 %v2276, %v2348
      %v2371 = vmul.f32 %v2281, %v2348
      %v2372 = vmul.f32 %v2286, %v2348
      %v2373 = vmul.f32 %v2291, %v2348
      %v2374 = vmul.f32 %v2296, %v2348
      %v2375 = vmul.f32 %v2301, %v2348
      %v2376 = vmul.f32 %v2306, %v2348
      %v2377 = vmul.f32 %v2311, %v2348
      %v2378 = vmul.f32 %v2316, %v2348
      %v2379 = vmul.f32 %v2321, %v2348
      %v2380 = vmul.f32 %v2326, %v2348
      %v2381 = vmul.f32 %v2331, %v2348
      %v2382 = vmul.f32 %v2336, %v2348
      %v2383 = vmul.f32 %v2341, %v2348
      %v2384 = vmul.f32 %v2346, %v2348
      %v2385 = vadd.f32 %v2095, %v2349
      %v2386 = vadd.f32 %v2096, %v2350
      %v2387 = vadd.f32 %v2097, %v2351
      %v2388 = vadd.f32 %v2098, %v2352
      %v2389 = vadd.f32 %v2099, %v2353
      %v2390 = vadd.f32 %v2100, %v2354
      %v2391 = vadd.f32 %v2101, %v2355
      %v2392 = vadd.f32 %v2102, %v2356
      %v2393 = vadd.f32 %v2103, %v2357
      %v2394 = vadd.f32 %v2104, %v2358
      %v2395 = vadd.f32 %v2105, %v2359
      %v2396 = vadd.f32 %v2106, %v2360
      %v2397 = vadd.f32 %v2107, %v2361
      %v2398 = vadd.f32 %v2108, %v2362
      %v2399 = vadd.f32 %v2109, %v2363
      %v2400 = vadd.f32 %v2110, %v2364
      %v2401 = vadd.f32 %v2111, %v2365
      %v2402 = vadd.f32 %v2112, %v2366
      %v2403 = vadd.f32 %v2113, %v2367
      %v2404 = vadd.f32 %v2114, %v2368
      %v2405 = vadd.f32 %v2115, %v2369
      %v2406 = vadd.f32 %v2116, %v2370
      %v2407 = vadd.f32 %v2117, %v2371
      %v2408 = vadd.f32 %v2118, %v2372
      %v2409 = vadd.f32 %v2119, %v2373
      %v2410 = vadd.f32 %v2120, %v2374
      %v2411 = vadd.f32 %v2121, %v2375
      %v2412 = vadd.f32 %v2122, %v2376
      %v2413 = vadd.f32 %v2123, %v2377
      %v2414 = vadd.f32 %v2124, %v2378
      %v2415 = vadd.f32 %v2125, %v2379
      %v2416 = vadd.f32 %v2126, %v2380
      %v2417 = vadd.f32 %v2127, %v2381
      %v2418 = vadd.f32 %v2128, %v2382
      %v2419 = vadd.f32 %v2129, %v2383
      %v2420 = vadd.f32 %v2130, %v2384
      %v2421 = vld [vmem:[%s382 + $0x25] sm:$0xff]
      %v2422 = vld [vmem:[%s382 + $0x2d] sm:$0xff]
      %v2423 = vld [vmem:[%s382 + $0x35] sm:$0xff]
      %v2424 = vld [vmem:[%s382 + $0x3d] sm:$0xff]
      %v2425 = vld [vmem:[%s382 + $0x45] sm:$0xff]
      %v2426 = vld [vmem:[%s382 + $0x4d] sm:$0xff]
      %v2427 = vld [vmem:[%s382 + $0x55] sm:$0xff]
      %v2428 = vld [vmem:[%s382 + $0x5d] sm:$0xff]
      %v2429 = vld [vmem:[%s382 + $0x65] sm:$0xff]
      %v2430 = vld [vmem:[%s382 + $0x6d] sm:$0xff]
      %v2431 = vld [vmem:[%s382 + $0x75] sm:$0xff]
      %v2432 = vld [vmem:[%s382 + $0x7d] sm:$0xff]
      %v2433 = vld [vmem:[%s382 + $0x85] sm:$0xff]
      %v2434 = vld [vmem:[%s382 + $0x8d] sm:$0xff]
      %v2435 = vld [vmem:[%s382 + $0x95] sm:$0xff]
      %v2436 = vld [vmem:[%s382 + $0x9d] sm:$0xff]
      %v2437 = vld [vmem:[%s382 + $0xa5] sm:$0xff]
      %v2438 = vld [vmem:[%s382 + $0xad] sm:$0xff]
      %v2439 = vld [vmem:[%s382 + $0xb5] sm:$0xff]
      %v2440 = vld [vmem:[%s382 + $0xbd] sm:$0xff]
      %v2441 = vld [vmem:[%s382 + $0xc5] sm:$0xff]
      %v2442 = vld [vmem:[%s382 + $0xcd] sm:$0xff]
      %v2443 = vld [vmem:[%s382 + $0xd5] sm:$0xff]
      %v2444 = vld [vmem:[%s382 + $0xdd] sm:$0xff]
      %v2445 = vld [vmem:[%s382 + $0xe5] sm:$0xff]
      %v2446 = vld [vmem:[%s382 + $0xed] sm:$0xff]
      %v2447 = vld [vmem:[%s382 + $0xf5] sm:$0xff]
      %v2448 = vld [vmem:[%s382 + $0xfd] sm:$0xff]
      %v2449 = vld [vmem:[%s382 + $0x105] sm:$0xff]
      %v2450 = vld [vmem:[%s382 + $0x10d] sm:$0xff]
      %v2451 = vld [vmem:[%s382 + $0x115] sm:$0xff]
      %v2452 = vld [vmem:[%s382 + $0x11d] sm:$0xff]
      %v2453 = vld [vmem:[%s382 + $0x125] sm:$0xff]
      %v2454 = vld [vmem:[%s382 + $0x12d] sm:$0xff]
      %v2455 = vld [vmem:[%s382 + $0x135] sm:$0xff]
      %v2456 = vld [vmem:[%s382 + $0x13d] sm:$0xff]
      %v2457 = vld [vmem:[%s1 + $0x7] sm:$0x1]
      %2459 = vset.pattern.permute.xlu0 0
      %2460 = vperm.xlu0 %2459, %v2421
      %v2461 = vpop.permute.xlu0 %2460
      %2464 = vset.pattern.permute.xlu0 0
      %2465 = vperm.xlu0 %2464, %v2422
      %v2466 = vpop.permute.xlu0 %2465
      %2469 = vset.pattern.permute.xlu0 0
      %2470 = vperm.xlu0 %2469, %v2423
      %v2471 = vpop.permute.xlu0 %2470
      %2474 = vset.pattern.permute.xlu0 0
      %2475 = vperm.xlu0 %2474, %v2424
      %v2476 = vpop.permute.xlu0 %2475
      %2479 = vset.pattern.permute.xlu0 0
      %2480 = vperm.xlu0 %2479, %v2425
      %v2481 = vpop.permute.xlu0 %2480
      %2484 = vset.pattern.permute.xlu0 0
      %2485 = vperm.xlu0 %2484, %v2426
      %v2486 = vpop.permute.xlu0 %2485
      %2489 = vset.pattern.permute.xlu0 0
      %2490 = vperm.xlu0 %2489, %v2427
      %v2491 = vpop.permute.xlu0 %2490
      %2494 = vset.pattern.permute.xlu0 0
      %2495 = vperm.xlu0 %2494, %v2428
      %v2496 = vpop.permute.xlu0 %2495
      %2499 = vset.pattern.permute.xlu0 0
      %2500 = vperm.xlu0 %2499, %v2429
      %v2501 = vpop.permute.xlu0 %2500
      %2504 = vset.pattern.permute.xlu0 0
      %2505 = vperm.xlu0 %2504, %v2430
      %v2506 = vpop.permute.xlu0 %2505
      %2509 = vset.pattern.permute.xlu0 0
      %2510 = vperm.xlu0 %2509, %v2431
      %v2511 = vpop.permute.xlu0 %2510
      %2514 = vset.pattern.permute.xlu0 0
      %2515 = vperm.xlu0 %2514, %v2432
      %v2516 = vpop.permute.xlu0 %2515
      %2519 = vset.pattern.permute.xlu0 0
      %2520 = vperm.xlu0 %2519, %v2433
      %v2521 = vpop.permute.xlu0 %2520
      %2524 = vset.pattern.permute.xlu0 0
      %2525 = vperm.xlu0 %2524, %v2434
      %v2526 = vpop.permute.xlu0 %2525
      %2529 = vset.pattern.permute.xlu0 0
      %2530 = vperm.xlu0 %2529, %v2435
      %v2531 = vpop.permute.xlu0 %2530
      %2534 = vset.pattern.permute.xlu0 0
      %2535 = vperm.xlu0 %2534, %v2436
      %v2536 = vpop.permute.xlu0 %2535
      %2539 = vset.pattern.permute.xlu0 0
      %2540 = vperm.xlu0 %2539, %v2437
      %v2541 = vpop.permute.xlu0 %2540
      %2544 = vset.pattern.permute.xlu0 0
      %2545 = vperm.xlu0 %2544, %v2438
      %v2546 = vpop.permute.xlu0 %2545
      %2549 = vset.pattern.permute.xlu0 0
      %2550 = vperm.xlu0 %2549, %v2439
      %v2551 = vpop.permute.xlu0 %2550
      %2554 = vset.pattern.permute.xlu0 0
      %2555 = vperm.xlu0 %2554, %v2440
      %v2556 = vpop.permute.xlu0 %2555
      %2559 = vset.pattern.permute.xlu0 0
      %2560 = vperm.xlu0 %2559, %v2441
      %v2561 = vpop.permute.xlu0 %2560
      %2564 = vset.pattern.permute.xlu0 0
      %2565 = vperm.xlu0 %2564, %v2442
      %v2566 = vpop.permute.xlu0 %2565
      %2569 = vset.pattern.permute.xlu0 0
      %2570 = vperm.xlu0 %2569, %v2443
      %v2571 = vpop.permute.xlu0 %2570
      %2574 = vset.pattern.permute.xlu0 0
      %2575 = vperm.xlu0 %2574, %v2444
      %v2576 = vpop.permute.xlu0 %2575
      %2579 = vset.pattern.permute.xlu0 0
      %2580 = vperm.xlu0 %2579, %v2445
      %v2581 = vpop.permute.xlu0 %2580
      %2584 = vset.pattern.permute.xlu0 0
      %2585 = vperm.xlu0 %2584, %v2446
      %v2586 = vpop.permute.xlu0 %2585
      %2589 = vset.pattern.permute.xlu0 0
      %2590 = vperm.xlu0 %2589, %v2447
      %v2591 = vpop.permute.xlu0 %2590
      %2594 = vset.pattern.permute.xlu0 0
      %2595 = vperm.xlu0 %2594, %v2448
      %v2596 = vpop.permute.xlu0 %2595
      %2599 = vset.pattern.permute.xlu0 0
      %2600 = vperm.xlu0 %2599, %v2449
      %v2601 = vpop.permute.xlu0 %2600
      %2604 = vset.pattern.permute.xlu0 0
      %2605 = vperm.xlu0 %2604, %v2450
      %v2606 = vpop.permute.xlu0 %2605
      %2609 = vset.pattern.permute.xlu0 0
      %2610 = vperm.xlu0 %2609, %v2451
      %v2611 = vpop.permute.xlu0 %2610
      %2614 = vset.pattern.permute.xlu0 0
      %2615 = vperm.xlu0 %2614, %v2452
      %v2616 = vpop.permute.xlu0 %2615
      %2619 = vset.pattern.permute.xlu0 0
      %2620 = vperm.xlu0 %2619, %v2453
      %v2621 = vpop.permute.xlu0 %2620
      %2624 = vset.pattern.permute.xlu0 0
      %2625 = vperm.xlu0 %2624, %v2454
      %v2626 = vpop.permute.xlu0 %2625
      %2629 = vset.pattern.permute.xlu0 0
      %2630 = vperm.xlu0 %2629, %v2455
      %v2631 = vpop.permute.xlu0 %2630
      %2634 = vset.pattern.permute.xlu0 0
      %2635 = vperm.xlu0 %2634, %v2456
      %v2636 = vpop.permute.xlu0 %2635
      %v2638 = vperm.slane %v2457, 0
      %v2639 = vmul.f32 %v2461, %v2638
      %v2640 = vmul.f32 %v2466, %v2638
      %v2641 = vmul.f32 %v2471, %v2638
      %v2642 = vmul.f32 %v2476, %v2638
      %v2643 = vmul.f32 %v2481, %v2638
      %v2644 = vmul.f32 %v2486, %v2638
      %v2645 = vmul.f32 %v2491, %v2638
      %v2646 = vmul.f32 %v2496, %v2638
      %v2647 = vmul.f32 %v2501, %v2638
      %v2648 = vmul.f32 %v2506, %v2638
      %v2649 = vmul.f32 %v2511, %v2638
      %v2650 = vmul.f32 %v2516, %v2638
      %v2651 = vmul.f32 %v2521, %v2638
      %v2652 = vmul.f32 %v2526, %v2638
      %v2653 = vmul.f32 %v2531, %v2638
      %v2654 = vmul.f32 %v2536, %v2638
      %v2655 = vmul.f32 %v2541, %v2638
      %v2656 = vmul.f32 %v2546, %v2638
      %v2657 = vmul.f32 %v2551, %v2638
      %v2658 = vmul.f32 %v2556, %v2638
      %v2659 = vmul.f32 %v2561, %v2638
      %v2660 = vmul.f32 %v2566, %v2638
      %v2661 = vmul.f32 %v2571, %v2638
      %v2662 = vmul.f32 %v2576, %v2638
      %v2663 = vmul.f32 %v2581, %v2638
      %v2664 = vmul.f32 %v2586, %v2638
      %v2665 = vmul.f32 %v2591, %v2638
      %v2666 = vmul.f32 %v2596, %v2638
      %v2667 = vmul.f32 %v2601, %v2638
      %v2668 = vmul.f32 %v2606, %v2638
      %v2669 = vmul.f32 %v2611, %v2638
      %v2670 = vmul.f32 %v2616, %v2638
      %v2671 = vmul.f32 %v2621, %v2638
      %v2672 = vmul.f32 %v2626, %v2638
      %v2673 = vmul.f32 %v2631, %v2638
      %v2674 = vmul.f32 %v2636, %v2638
      %v2675 = vadd.f32 %v2385, %v2639
      %v2676 = vadd.f32 %v2386, %v2640
      %v2677 = vadd.f32 %v2387, %v2641
      %v2678 = vadd.f32 %v2388, %v2642
      %v2679 = vadd.f32 %v2389, %v2643
      %v2680 = vadd.f32 %v2390, %v2644
      %v2681 = vadd.f32 %v2391, %v2645
      %v2682 = vadd.f32 %v2392, %v2646
      %v2683 = vadd.f32 %v2393, %v2647
      %v2684 = vadd.f32 %v2394, %v2648
      %v2685 = vadd.f32 %v2395, %v2649
      %v2686 = vadd.f32 %v2396, %v2650
      %v2687 = vadd.f32 %v2397, %v2651
      %v2688 = vadd.f32 %v2398, %v2652
      %v2689 = vadd.f32 %v2399, %v2653
      %v2690 = vadd.f32 %v2400, %v2654
      %v2691 = vadd.f32 %v2401, %v2655
      %v2692 = vadd.f32 %v2402, %v2656
      %v2693 = vadd.f32 %v2403, %v2657
      %v2694 = vadd.f32 %v2404, %v2658
      %v2695 = vadd.f32 %v2405, %v2659
      %v2696 = vadd.f32 %v2406, %v2660
      %v2697 = vadd.f32 %v2407, %v2661
      %v2698 = vadd.f32 %v2408, %v2662
      %v2699 = vadd.f32 %v2409, %v2663
      %v2700 = vadd.f32 %v2410, %v2664
      %v2701 = vadd.f32 %v2411, %v2665
      %v2702 = vadd.f32 %v2412, %v2666
      %v2703 = vadd.f32 %v2413, %v2667
      %v2704 = vadd.f32 %v2414, %v2668
      %v2705 = vadd.f32 %v2415, %v2669
      %v2706 = vadd.f32 %v2416, %v2670
      %v2707 = vadd.f32 %v2417, %v2671
      %v2708 = vadd.f32 %v2418, %v2672
      %v2709 = vadd.f32 %v2419, %v2673
      %v2710 = vadd.f32 %v2420, %v2674
      %v2711 = vld [vmem:[%s382 + $0x26] sm:$0xff]
      %v2712 = vld [vmem:[%s382 + $0x2e] sm:$0xff]
      %v2713 = vld [vmem:[%s382 + $0x36] sm:$0xff]
      %v2714 = vld [vmem:[%s382 + $0x3e] sm:$0xff]
      %v2715 = vld [vmem:[%s382 + $0x46] sm:$0xff]
      %v2716 = vld [vmem:[%s382 + $0x4e] sm:$0xff]
      %v2717 = vld [vmem:[%s382 + $0x56] sm:$0xff]
      %v2718 = vld [vmem:[%s382 + $0x5e] sm:$0xff]
      %v2719 = vld [vmem:[%s382 + $0x66] sm:$0xff]
      %v2720 = vld [vmem:[%s382 + $0x6e] sm:$0xff]
      %v2721 = vld [vmem:[%s382 + $0x76] sm:$0xff]
      %v2722 = vld [vmem:[%s382 + $0x7e] sm:$0xff]
      %v2723 = vld [vmem:[%s382 + $0x86] sm:$0xff]
      %v2724 = vld [vmem:[%s382 + $0x8e] sm:$0xff]
      %v2725 = vld [vmem:[%s382 + $0x96] sm:$0xff]
      %v2726 = vld [vmem:[%s382 + $0x9e] sm:$0xff]
      %v2727 = vld [vmem:[%s382 + $0xa6] sm:$0xff]
      %v2728 = vld [vmem:[%s382 + $0xae] sm:$0xff]
      %v2729 = vld [vmem:[%s382 + $0xb6] sm:$0xff]
      %v2730 = vld [vmem:[%s382 + $0xbe] sm:$0xff]
      %v2731 = vld [vmem:[%s382 + $0xc6] sm:$0xff]
      %v2732 = vld [vmem:[%s382 + $0xce] sm:$0xff]
      %v2733 = vld [vmem:[%s382 + $0xd6] sm:$0xff]
      %v2734 = vld [vmem:[%s382 + $0xde] sm:$0xff]
      %v2735 = vld [vmem:[%s382 + $0xe6] sm:$0xff]
      %v2736 = vld [vmem:[%s382 + $0xee] sm:$0xff]
      %v2737 = vld [vmem:[%s382 + $0xf6] sm:$0xff]
      %v2738 = vld [vmem:[%s382 + $0xfe] sm:$0xff]
      %v2739 = vld [vmem:[%s382 + $0x106] sm:$0xff]
      %v2740 = vld [vmem:[%s382 + $0x10e] sm:$0xff]
      %v2741 = vld [vmem:[%s382 + $0x116] sm:$0xff]
      %v2742 = vld [vmem:[%s382 + $0x11e] sm:$0xff]
      %v2743 = vld [vmem:[%s382 + $0x126] sm:$0xff]
      %v2744 = vld [vmem:[%s382 + $0x12e] sm:$0xff]
      %v2745 = vld [vmem:[%s382 + $0x136] sm:$0xff]
      %v2746 = vld [vmem:[%s382 + $0x13e] sm:$0xff]
      %v2747 = vld [vmem:[%s1 + $0x8] sm:$0x1]
      %2749 = vset.pattern.permute.xlu0 0
      %2750 = vperm.xlu0 %2749, %v2711
      %v2751 = vpop.permute.xlu0 %2750
      %2754 = vset.pattern.permute.xlu0 0
      %2755 = vperm.xlu0 %2754, %v2712
      %v2756 = vpop.permute.xlu0 %2755
      %2759 = vset.pattern.permute.xlu0 0
      %2760 = vperm.xlu0 %2759, %v2713
      %v2761 = vpop.permute.xlu0 %2760
      %2764 = vset.pattern.permute.xlu0 0
      %2765 = vperm.xlu0 %2764, %v2714
      %v2766 = vpop.permute.xlu0 %2765
      %2769 = vset.pattern.permute.xlu0 0
      %2770 = vperm.xlu0 %2769, %v2715
      %v2771 = vpop.permute.xlu0 %2770
      %2774 = vset.pattern.permute.xlu0 0
      %2775 = vperm.xlu0 %2774, %v2716
      %v2776 = vpop.permute.xlu0 %2775
      %2779 = vset.pattern.permute.xlu0 0
      %2780 = vperm.xlu0 %2779, %v2717
      %v2781 = vpop.permute.xlu0 %2780
      %2784 = vset.pattern.permute.xlu0 0
      %2785 = vperm.xlu0 %2784, %v2718
      %v2786 = vpop.permute.xlu0 %2785
      %2789 = vset.pattern.permute.xlu0 0
      %2790 = vperm.xlu0 %2789, %v2719
      %v2791 = vpop.permute.xlu0 %2790
      %2794 = vset.pattern.permute.xlu0 0
      %2795 = vperm.xlu0 %2794, %v2720
      %v2796 = vpop.permute.xlu0 %2795
      %2799 = vset.pattern.permute.xlu0 0
      %2800 = vperm.xlu0 %2799, %v2721
      %v2801 = vpop.permute.xlu0 %2800
      %2804 = vset.pattern.permute.xlu0 0
      %2805 = vperm.xlu0 %2804, %v2722
      %v2806 = vpop.permute.xlu0 %2805
      %2809 = vset.pattern.permute.xlu0 0
      %2810 = vperm.xlu0 %2809, %v2723
      %v2811 = vpop.permute.xlu0 %2810
      %2814 = vset.pattern.permute.xlu0 0
      %2815 = vperm.xlu0 %2814, %v2724
      %v2816 = vpop.permute.xlu0 %2815
      %2819 = vset.pattern.permute.xlu0 0
      %2820 = vperm.xlu0 %2819, %v2725
      %v2821 = vpop.permute.xlu0 %2820
      %2824 = vset.pattern.permute.xlu0 0
      %2825 = vperm.xlu0 %2824, %v2726
      %v2826 = vpop.permute.xlu0 %2825
      %2829 = vset.pattern.permute.xlu0 0
      %2830 = vperm.xlu0 %2829, %v2727
      %v2831 = vpop.permute.xlu0 %2830
      %2834 = vset.pattern.permute.xlu0 0
      %2835 = vperm.xlu0 %2834, %v2728
      %v2836 = vpop.permute.xlu0 %2835
      %2839 = vset.pattern.permute.xlu0 0
      %2840 = vperm.xlu0 %2839, %v2729
      %v2841 = vpop.permute.xlu0 %2840
      %2844 = vset.pattern.permute.xlu0 0
      %2845 = vperm.xlu0 %2844, %v2730
      %v2846 = vpop.permute.xlu0 %2845
      %2849 = vset.pattern.permute.xlu0 0
      %2850 = vperm.xlu0 %2849, %v2731
      %v2851 = vpop.permute.xlu0 %2850
      %2854 = vset.pattern.permute.xlu0 0
      %2855 = vperm.xlu0 %2854, %v2732
      %v2856 = vpop.permute.xlu0 %2855
      %2859 = vset.pattern.permute.xlu0 0
      %2860 = vperm.xlu0 %2859, %v2733
      %v2861 = vpop.permute.xlu0 %2860
      %2864 = vset.pattern.permute.xlu0 0
      %2865 = vperm.xlu0 %2864, %v2734
      %v2866 = vpop.permute.xlu0 %2865
      %2869 = vset.pattern.permute.xlu0 0
      %2870 = vperm.xlu0 %2869, %v2735
      %v2871 = vpop.permute.xlu0 %2870
      %2874 = vset.pattern.permute.xlu0 0
      %2875 = vperm.xlu0 %2874, %v2736
      %v2876 = vpop.permute.xlu0 %2875
      %2879 = vset.pattern.permute.xlu0 0
      %2880 = vperm.xlu0 %2879, %v2737
      %v2881 = vpop.permute.xlu0 %2880
      %2884 = vset.pattern.permute.xlu0 0
      %2885 = vperm.xlu0 %2884, %v2738
      %v2886 = vpop.permute.xlu0 %2885
      %2889 = vset.pattern.permute.xlu0 0
      %2890 = vperm.xlu0 %2889, %v2739
      %v2891 = vpop.permute.xlu0 %2890
      %2894 = vset.pattern.permute.xlu0 0
      %2895 = vperm.xlu0 %2894, %v2740
      %v2896 = vpop.permute.xlu0 %2895
      %2899 = vset.pattern.permute.xlu0 0
      %2900 = vperm.xlu0 %2899, %v2741
      %v2901 = vpop.permute.xlu0 %2900
      %2904 = vset.pattern.permute.xlu0 0
      %2905 = vperm.xlu0 %2904, %v2742
      %v2906 = vpop.permute.xlu0 %2905
      %2909 = vset.pattern.permute.xlu0 0
      %2910 = vperm.xlu0 %2909, %v2743
      %v2911 = vpop.permute.xlu0 %2910
      %2914 = vset.pattern.permute.xlu0 0
      %2915 = vperm.xlu0 %2914, %v2744
      %v2916 = vpop.permute.xlu0 %2915
      %2919 = vset.pattern.permute.xlu0 0
      %2920 = vperm.xlu0 %2919, %v2745
      %v2921 = vpop.permute.xlu0 %2920
      %2924 = vset.pattern.permute.xlu0 0
      %2925 = vperm.xlu0 %2924, %v2746
      %v2926 = vpop.permute.xlu0 %2925
      %v2928 = vperm.slane %v2747, 0
      %v2929 = vmul.f32 %v2751, %v2928
      %v2930 = vmul.f32 %v2756, %v2928
      %v2931 = vmul.f32 %v2761, %v2928
      %v2932 = vmul.f32 %v2766, %v2928
      %v2933 = vmul.f32 %v2771, %v2928
      %v2934 = vmul.f32 %v2776, %v2928
      %v2935 = vmul.f32 %v2781, %v2928
      %v2936 = vmul.f32 %v2786, %v2928
      %v2937 = vmul.f32 %v2791, %v2928
      %v2938 = vmul.f32 %v2796, %v2928
      %v2939 = vmul.f32 %v2801, %v2928
      %v2940 = vmul.f32 %v2806, %v2928
      %v2941 = vmul.f32 %v2811, %v2928
      %v2942 = vmul.f32 %v2816, %v2928
      %v2943 = vmul.f32 %v2821, %v2928
      %v2944 = vmul.f32 %v2826, %v2928
      %v2945 = vmul.f32 %v2831, %v2928
      %v2946 = vmul.f32 %v2836, %v2928
      %v2947 = vmul.f32 %v2841, %v2928
      %v2948 = vmul.f32 %v2846, %v2928
      %v2949 = vmul.f32 %v2851, %v2928
      %v2950 = vmul.f32 %v2856, %v2928
      %v2951 = vmul.f32 %v2861, %v2928
      %v2952 = vmul.f32 %v2866, %v2928
      %v2953 = vmul.f32 %v2871, %v2928
      %v2954 = vmul.f32 %v2876, %v2928
      %v2955 = vmul.f32 %v2881, %v2928
      %v2956 = vmul.f32 %v2886, %v2928
      %v2957 = vmul.f32 %v2891, %v2928
      %v2958 = vmul.f32 %v2896, %v2928
      %v2959 = vmul.f32 %v2901, %v2928
      %v2960 = vmul.f32 %v2906, %v2928
      %v2961 = vmul.f32 %v2911, %v2928
      %v2962 = vmul.f32 %v2916, %v2928
      %v2963 = vmul.f32 %v2921, %v2928
      %v2964 = vmul.f32 %v2926, %v2928
      %v2965 = vadd.f32 %v2675, %v2929
      %v2966 = vadd.f32 %v2676, %v2930
      %v2967 = vadd.f32 %v2677, %v2931
      %v2968 = vadd.f32 %v2678, %v2932
      %v2969 = vadd.f32 %v2679, %v2933
      %v2970 = vadd.f32 %v2680, %v2934
      %v2971 = vadd.f32 %v2681, %v2935
      %v2972 = vadd.f32 %v2682, %v2936
      %v2973 = vadd.f32 %v2683, %v2937
      %v2974 = vadd.f32 %v2684, %v2938
      %v2975 = vadd.f32 %v2685, %v2939
      %v2976 = vadd.f32 %v2686, %v2940
      %v2977 = vadd.f32 %v2687, %v2941
      %v2978 = vadd.f32 %v2688, %v2942
      %v2979 = vadd.f32 %v2689, %v2943
      %v2980 = vadd.f32 %v2690, %v2944
      %v2981 = vadd.f32 %v2691, %v2945
      %v2982 = vadd.f32 %v2692, %v2946
      %v2983 = vadd.f32 %v2693, %v2947
      %v2984 = vadd.f32 %v2694, %v2948
      %v2985 = vadd.f32 %v2695, %v2949
      %v2986 = vadd.f32 %v2696, %v2950
      %v2987 = vadd.f32 %v2697, %v2951
      %v2988 = vadd.f32 %v2698, %v2952
      %v2989 = vadd.f32 %v2699, %v2953
      %v2990 = vadd.f32 %v2700, %v2954
      %v2991 = vadd.f32 %v2701, %v2955
      %v2992 = vadd.f32 %v2702, %v2956
      %v2993 = vadd.f32 %v2703, %v2957
      %v2994 = vadd.f32 %v2704, %v2958
      %v2995 = vadd.f32 %v2705, %v2959
      %v2996 = vadd.f32 %v2706, %v2960
      %v2997 = vadd.f32 %v2707, %v2961
      %v2998 = vadd.f32 %v2708, %v2962
      %v2999 = vadd.f32 %v2709, %v2963
      %v3000 = vadd.f32 %v2710, %v2964
      %v3001 = vld [vmem:[%s2] sm:$0x1]
      %v3003 = vperm.slane %v3001, 0
      %v3005 = vadd.f32 %v2965, %v3003
      %v3006 = vadd.f32 %v2966, %v3003
      %v3007 = vadd.f32 %v2967, %v3003
      %v3008 = vadd.f32 %v2968, %v3003
      %v3009 = vadd.f32 %v2969, %v3003
      %v3010 = vadd.f32 %v2970, %v3003
      %v3011 = vadd.f32 %v2971, %v3003
      %v3012 = vadd.f32 %v2972, %v3003
      %v3013 = vadd.f32 %v2973, %v3003
      %v3014 = vadd.f32 %v2974, %v3003
      %v3015 = vadd.f32 %v2975, %v3003
      %v3016 = vadd.f32 %v2976, %v3003
      %v3017 = vadd.f32 %v2977, %v3003
      %v3018 = vadd.f32 %v2978, %v3003
      %v3019 = vadd.f32 %v2979, %v3003
      %v3020 = vadd.f32 %v2980, %v3003
      %v3021 = vadd.f32 %v2981, %v3003
      %v3022 = vadd.f32 %v2982, %v3003
      %v3023 = vadd.f32 %v2983, %v3003
      %v3024 = vadd.f32 %v2984, %v3003
      %v3025 = vadd.f32 %v2985, %v3003
      %v3026 = vadd.f32 %v2986, %v3003
      %v3027 = vadd.f32 %v2987, %v3003
      %v3028 = vadd.f32 %v2988, %v3003
      %v3029 = vadd.f32 %v2989, %v3003
      %v3030 = vadd.f32 %v2990, %v3003
      %v3031 = vadd.f32 %v2991, %v3003
      %v3032 = vadd.f32 %v2992, %v3003
      %v3033 = vadd.f32 %v2993, %v3003
      %v3034 = vadd.f32 %v2994, %v3003
      %v3035 = vadd.f32 %v2995, %v3003
      %v3036 = vadd.f32 %v2996, %v3003
      %v3037 = vadd.f32 %v2997, %v3003
      %v3038 = vadd.f32 %v2998, %v3003
      %v3039 = vadd.f32 %v2999, %v3003
      %v3040 = vadd.f32 %v3000, %v3003
      %v3041 = vmax.f32 %v3005, 0.0
      %v3042 = vmax.f32 %v3006, 0.0
      %v3043 = vmax.f32 %v3007, 0.0
      %v3044 = vmax.f32 %v3008, 0.0
      %v3045 = vmax.f32 %v3009, 0.0
      %v3046 = vmax.f32 %v3010, 0.0
      %v3047 = vmax.f32 %v3011, 0.0
      %v3048 = vmax.f32 %v3012, 0.0
      %v3049 = vmax.f32 %v3013, 0.0
      %v3050 = vmax.f32 %v3014, 0.0
      %v3051 = vmax.f32 %v3015, 0.0
      %v3052 = vmax.f32 %v3016, 0.0
      %v3053 = vmax.f32 %v3017, 0.0
      %v3054 = vmax.f32 %v3018, 0.0
      %v3055 = vmax.f32 %v3019, 0.0
      %v3056 = vmax.f32 %v3020, 0.0
      %v3057 = vmax.f32 %v3021, 0.0
      %v3058 = vmax.f32 %v3022, 0.0
      %v3059 = vmax.f32 %v3023, 0.0
      %v3060 = vmax.f32 %v3024, 0.0
      %v3061 = vmax.f32 %v3025, 0.0
      %v3062 = vmax.f32 %v3026, 0.0
      %v3063 = vmax.f32 %v3027, 0.0
      %v3064 = vmax.f32 %v3028, 0.0
      %v3065 = vmax.f32 %v3029, 0.0
      %v3066 = vmax.f32 %v3030, 0.0
      %v3067 = vmax.f32 %v3031, 0.0
      %v3068 = vmax.f32 %v3032, 0.0
      %v3069 = vmax.f32 %v3033, 0.0
      %v3070 = vmax.f32 %v3034, 0.0
      %v3071 = vmax.f32 %v3035, 0.0
      %v3072 = vmax.f32 %v3036, 0.0
      %v3073 = vmax.f32 %v3037, 0.0
      %v3074 = vmax.f32 %v3038, 0.0
      %v3075 = vmax.f32 %v3039, 0.0
      %v3076 = vmax.f32 %v3040, 0.0
      %vm3077 = vcmask 130048
      %3078 = vst.msk [vmem:[#allocation2] sm:$0xff] %vm3077, %v3041
      %3079 = vst.msk [vmem:[#allocation2 + $0x8] sm:$0xff] %vm3077, %v3042
      %3080 = vst.msk [vmem:[#allocation2 + $0x10] sm:$0xff] %vm3077, %v3043
      %3081 = vst.msk [vmem:[#allocation2 + $0x18] sm:$0xff] %vm3077, %v3044
      %3082 = vst.msk [vmem:[#allocation2 + $0x20] sm:$0xff] %vm3077, %v3045
      %3083 = vst.msk [vmem:[#allocation2 + $0x28] sm:$0xff] %vm3077, %v3046
      %3084 = vst.msk [vmem:[#allocation2 + $0x30] sm:$0xff] %vm3077, %v3047
      %3085 = vst.msk [vmem:[#allocation2 + $0x38] sm:$0xff] %vm3077, %v3048
      %3086 = vst.msk [vmem:[#allocation2 + $0x40] sm:$0xff] %vm3077, %v3049
      %3087 = vst.msk [vmem:[#allocation2 + $0x48] sm:$0xff] %vm3077, %v3050
      %3088 = vst.msk [vmem:[#allocation2 + $0x50] sm:$0xff] %vm3077, %v3051
      %3089 = vst.msk [vmem:[#allocation2 + $0x58] sm:$0xff] %vm3077, %v3052
      %3090 = vst.msk [vmem:[#allocation2 + $0x60] sm:$0xff] %vm3077, %v3053
      %3091 = vst.msk [vmem:[#allocation2 + $0x68] sm:$0xff] %vm3077, %v3054
      %3092 = vst.msk [vmem:[#allocation2 + $0x70] sm:$0xff] %vm3077, %v3055
      %3093 = vst.msk [vmem:[#allocation2 + $0x78] sm:$0xff] %vm3077, %v3056
      %3094 = vst.msk [vmem:[#allocation2 + $0x80] sm:$0xff] %vm3077, %v3057
      %3095 = vst.msk [vmem:[#allocation2 + $0x88] sm:$0xff] %vm3077, %v3058
      %3096 = vst.msk [vmem:[#allocation2 + $0x90] sm:$0xff] %vm3077, %v3059
      %3097 = vst.msk [vmem:[#allocation2 + $0x98] sm:$0xff] %vm3077, %v3060
      %3098 = vst.msk [vmem:[#allocation2 + $0xa0] sm:$0xff] %vm3077, %v3061
      %3099 = vst.msk [vmem:[#allocation2 + $0xa8] sm:$0xff] %vm3077, %v3062
      %3100 = vst.msk [vmem:[#allocation2 + $0xb0] sm:$0xff] %vm3077, %v3063
      %3101 = vst.msk [vmem:[#allocation2 + $0xb8] sm:$0xff] %vm3077, %v3064
      %3102 = vst.msk [vmem:[#allocation2 + $0xc0] sm:$0xff] %vm3077, %v3065
      %3103 = vst.msk [vmem:[#allocation2 + $0xc8] sm:$0xff] %vm3077, %v3066
      %3104 = vst.msk [vmem:[#allocation2 + $0xd0] sm:$0xff] %vm3077, %v3067
      %3105 = vst.msk [vmem:[#allocation2 + $0xd8] sm:$0xff] %vm3077, %v3068
      %3106 = vst.msk [vmem:[#allocation2 + $0xe0] sm:$0xff] %vm3077, %v3069
      %3107 = vst.msk [vmem:[#allocation2 + $0xe8] sm:$0xff] %vm3077, %v3070
      %3108 = vst.msk [vmem:[#allocation2 + $0xf0] sm:$0xff] %vm3077, %v3071
      %3109 = vst.msk [vmem:[#allocation2 + $0xf8] sm:$0xff] %vm3077, %v3072
      %3110 = vst.msk [vmem:[#allocation2 + $0x100] sm:$0xff] %vm3077, %v3073
      %3111 = vst.msk [vmem:[#allocation2 + $0x108] sm:$0xff] %vm3077, %v3074
      %3112 = vst.msk [vmem:[#allocation2 + $0x110] sm:$0xff] %vm3077, %v3075
      %3113 = vst.msk [vmem:[#allocation2 + $0x118] sm:$0xff] %vm3077, %v3076
      %v3114 = vld [vmem:[#allocation2] sm:$0xff]
      %v3115 = vld [vmem:[#allocation2 + $0x8] sm:$0xff]
      %v3116 = vld [vmem:[#allocation2 + $0x10] sm:$0xff]
      %v3117 = vld [vmem:[#allocation2 + $0x18] sm:$0xff]
      %v3118 = vld [vmem:[#allocation2 + $0x20] sm:$0xff]
      %v3119 = vld [vmem:[#allocation2 + $0x28] sm:$0xff]
      %v3120 = vld [vmem:[#allocation2 + $0x30] sm:$0xff]
      %v3121 = vld [vmem:[#allocation2 + $0x38] sm:$0xff]
      %v3122 = vld [vmem:[#allocation2 + $0x40] sm:$0xff]
      %v3123 = vld [vmem:[#allocation2 + $0x48] sm:$0xff]
      %v3124 = vld [vmem:[#allocation2 + $0x50] sm:$0xff]
      %v3125 = vld [vmem:[#allocation2 + $0x58] sm:$0xff]
      %v3126 = vld [vmem:[#allocation2 + $0x60] sm:$0xff]
      %v3127 = vld [vmem:[#allocation2 + $0x68] sm:$0xff]
      %v3128 = vld [vmem:[#allocation2 + $0x70] sm:$0xff]
      %v3129 = vld [vmem:[#allocation2 + $0x78] sm:$0xff]
      %v3130 = vld [vmem:[#allocation2 + $0x80] sm:$0xff]
      %v3131 = vld [vmem:[#allocation2 + $0x88] sm:$0xff]
      %v3132 = vld [vmem:[#allocation2 + $0x90] sm:$0xff]
      %v3133 = vld [vmem:[#allocation2 + $0x98] sm:$0xff]
      %v3134 = vld [vmem:[#allocation2 + $0xa0] sm:$0xff]
      %v3135 = vld [vmem:[#allocation2 + $0xa8] sm:$0xff]
      %v3136 = vld [vmem:[#allocation2 + $0xb0] sm:$0xff]
      %v3137 = vld [vmem:[#allocation2 + $0xb8] sm:$0xff]
      %v3138 = vld [vmem:[#allocation2 + $0xc0] sm:$0xff]
      %v3139 = vld [vmem:[#allocation2 + $0xc8] sm:$0xff]
      %v3140 = vld [vmem:[#allocation2 + $0xd0] sm:$0xff]
      %v3141 = vld [vmem:[#allocation2 + $0xd8] sm:$0xff]
      %v3142 = vld [vmem:[#allocation2 + $0xe0] sm:$0xff]
      %v3143 = vld [vmem:[#allocation2 + $0xe8] sm:$0xff]
      %v3144 = vld [vmem:[#allocation2 + $0xf0] sm:$0xff]
      %v3145 = vld [vmem:[#allocation2 + $0xf8] sm:$0xff]
      %v3146 = vld [vmem:[#allocation2 + $0x100] sm:$0xff]
      %v3147 = vld [vmem:[#allocation2 + $0x108] sm:$0x1f]
      %v3148 = vld [vmem:[#allocation2 + $0x1] sm:$0xff]
      %v3149 = vld [vmem:[#allocation2 + $0x9] sm:$0xff]
      %v3150 = vld [vmem:[#allocation2 + $0x11] sm:$0xff]
      %v3151 = vld [vmem:[#allocation2 + $0x19] sm:$0xff]
      %v3152 = vld [vmem:[#allocation2 + $0x21] sm:$0xff]
      %v3153 = vld [vmem:[#allocation2 + $0x29] sm:$0xff]
      %v3154 = vld [vmem:[#allocation2 + $0x31] sm:$0xff]
      %v3155 = vld [vmem:[#allocation2 + $0x39] sm:$0xff]
      %v3156 = vld [vmem:[#allocation2 + $0x41] sm:$0xff]
      %v3157 = vld [vmem:[#allocation2 + $0x49] sm:$0xff]
      %v3158 = vld [vmem:[#allocation2 + $0x51] sm:$0xff]
      %v3159 = vld [vmem:[#allocation2 + $0x59] sm:$0xff]
      %v3160 = vld [vmem:[#allocation2 + $0x61] sm:$0xff]
      %v3161 = vld [vmem:[#allocation2 + $0x69] sm:$0xff]
      %v3162 = vld [vmem:[#allocation2 + $0x71] sm:$0xff]
      %v3163 = vld [vmem:[#allocation2 + $0x79] sm:$0xff]
      %v3164 = vld [vmem:[#allocation2 + $0x81] sm:$0xff]
      %v3165 = vld [vmem:[#allocation2 + $0x89] sm:$0xff]
      %v3166 = vld [vmem:[#allocation2 + $0x91] sm:$0xff]
      %v3167 = vld [vmem:[#allocation2 + $0x99] sm:$0xff]
      %v3168 = vld [vmem:[#allocation2 + $0xa1] sm:$0xff]
      %v3169 = vld [vmem:[#allocation2 + $0xa9] sm:$0xff]
      %v3170 = vld [vmem:[#allocation2 + $0xb1] sm:$0xff]
      %v3171 = vld [vmem:[#allocation2 + $0xb9] sm:$0xff]
      %v3172 = vld [vmem:[#allocation2 + $0xc1] sm:$0xff]
      %v3173 = vld [vmem:[#allocation2 + $0xc9] sm:$0xff]
      %v3174 = vld [vmem:[#allocation2 + $0xd1] sm:$0xff]
      %v3175 = vld [vmem:[#allocation2 + $0xd9] sm:$0xff]
      %v3176 = vld [vmem:[#allocation2 + $0xe1] sm:$0xff]
      %v3177 = vld [vmem:[#allocation2 + $0xe9] sm:$0xff]
      %v3178 = vld [vmem:[#allocation2 + $0xf1] sm:$0xff]
      %v3179 = vld [vmem:[#allocation2 + $0xf9] sm:$0xff]
      %v3180 = vld [vmem:[#allocation2 + $0x101] sm:$0xff]
      %v3181 = vld [vmem:[#allocation2 + $0x109] sm:$0x1f]
      %v3182 = vmax.f32 %v3114, %v3148
      %v3183 = vmax.f32 %v3115, %v3149
      %v3184 = vmax.f32 %v3116, %v3150
      %v3185 = vmax.f32 %v3117, %v3151
      %v3186 = vmax.f32 %v3118, %v3152
      %v3187 = vmax.f32 %v3119, %v3153
      %v3188 = vmax.f32 %v3120, %v3154
      %v3189 = vmax.f32 %v3121, %v3155
      %v3190 = vmax.f32 %v3122, %v3156
      %v3191 = vmax.f32 %v3123, %v3157
      %v3192 = vmax.f32 %v3124, %v3158
      %v3193 = vmax.f32 %v3125, %v3159
      %v3194 = vmax.f32 %v3126, %v3160
      %v3195 = vmax.f32 %v3127, %v3161
      %v3196 = vmax.f32 %v3128, %v3162
      %v3197 = vmax.f32 %v3129, %v3163
      %v3198 = vmax.f32 %v3130, %v3164
      %v3199 = vmax.f32 %v3131, %v3165
      %v3200 = vmax.f32 %v3132, %v3166
      %v3201 = vmax.f32 %v3133, %v3167
      %v3202 = vmax.f32 %v3134, %v3168
      %v3203 = vmax.f32 %v3135, %v3169
      %v3204 = vmax.f32 %v3136, %v3170
      %v3205 = vmax.f32 %v3137, %v3171
      %v3206 = vmax.f32 %v3138, %v3172
      %v3207 = vmax.f32 %v3139, %v3173
      %v3208 = vmax.f32 %v3140, %v3174
      %v3209 = vmax.f32 %v3141, %v3175
      %v3210 = vmax.f32 %v3142, %v3176
      %v3211 = vmax.f32 %v3143, %v3177
      %v3212 = vmax.f32 %v3144, %v3178
      %v3213 = vmax.f32 %v3145, %v3179
      %v3214 = vmax.f32 %v3146, %v3180
      %v3215 = vmax.f32 %v3147, %v3181
      %v3216 = vld [vmem:[#allocation2 + $0x12] sm:$0xff]
      %v3217 = vld [vmem:[#allocation2 + $0x1a] sm:$0xff]
      %v3218 = vld [vmem:[#allocation2 + $0x22] sm:$0xff]
      %v3219 = vld [vmem:[#allocation2 + $0x2a] sm:$0xff]
      %v3220 = vld [vmem:[#allocation2 + $0x32] sm:$0xff]
      %v3221 = vld [vmem:[#allocation2 + $0x3a] sm:$0xff]
      %v3222 = vld [vmem:[#allocation2 + $0x42] sm:$0xff]
      %v3223 = vld [vmem:[#allocation2 + $0x4a] sm:$0xff]
      %v3224 = vld [vmem:[#allocation2 + $0x52] sm:$0xff]
      %v3225 = vld [vmem:[#allocation2 + $0x5a] sm:$0xff]
      %v3226 = vld [vmem:[#allocation2 + $0x62] sm:$0xff]
      %v3227 = vld [vmem:[#allocation2 + $0x6a] sm:$0xff]
      %v3228 = vld [vmem:[#allocation2 + $0x72] sm:$0xff]
      %v3229 = vld [vmem:[#allocation2 + $0x7a] sm:$0xff]
      %v3230 = vld [vmem:[#allocation2 + $0x82] sm:$0xff]
      %v3231 = vld [vmem:[#allocation2 + $0x8a] sm:$0xff]
      %v3232 = vld [vmem:[#allocation2 + $0x92] sm:$0xff]
      %v3233 = vld [vmem:[#allocation2 + $0x9a] sm:$0xff]
      %v3234 = vld [vmem:[#allocation2 + $0xa2] sm:$0xff]
      %v3235 = vld [vmem:[#allocation2 + $0xaa] sm:$0xff]
      %v3236 = vld [vmem:[#allocation2 + $0xb2] sm:$0xff]
      %v3237 = vld [vmem:[#allocation2 + $0xba] sm:$0xff]
      %v3238 = vld [vmem:[#allocation2 + $0xc2] sm:$0xff]
      %v3239 = vld [vmem:[#allocation2 + $0xca] sm:$0xff]
      %v3240 = vld [vmem:[#allocation2 + $0xd2] sm:$0xff]
      %v3241 = vld [vmem:[#allocation2 + $0xda] sm:$0xff]
      %v3242 = vld [vmem:[#allocation2 + $0xe2] sm:$0xff]
      %v3243 = vld [vmem:[#allocation2 + $0xea] sm:$0xff]
      %v3244 = vld [vmem:[#allocation2 + $0xf2] sm:$0xff]
      %v3245 = vld [vmem:[#allocation2 + $0xfa] sm:$0xff]
      %v3246 = vld [vmem:[#allocation2 + $0x102] sm:$0xff]
      %v3247 = vld [vmem:[#allocation2 + $0x10a] sm:$0xff]
      %v3248 = vld [vmem:[#allocation2 + $0x112] sm:$0xff]
      %v3249 = vld [vmem:[#allocation2 + $0x11a] sm:$0x1f]
      %v3250 = vld [vmem:[#allocation2 + $0x13] sm:$0xff]
      %v3251 = vld [vmem:[#allocation2 + $0x1b] sm:$0xff]
      %v3252 = vld [vmem:[#allocation2 + $0x23] sm:$0xff]
      %v3253 = vld [vmem:[#allocation2 + $0x2b] sm:$0xff]
      %v3254 = vld [vmem:[#allocation2 + $0x33] sm:$0xff]
      %v3255 = vld [vmem:[#allocation2 + $0x3b] sm:$0xff]
      %v3256 = vld [vmem:[#allocation2 + $0x43] sm:$0xff]
      %v3257 = vld [vmem:[#allocation2 + $0x4b] sm:$0xff]
      %v3258 = vld [vmem:[#allocation2 + $0x53] sm:$0xff]
      %v3259 = vld [vmem:[#allocation2 + $0x5b] sm:$0xff]
      %v3260 = vld [vmem:[#allocation2 + $0x63] sm:$0xff]
      %v3261 = vld [vmem:[#allocation2 + $0x6b] sm:$0xff]
      %v3262 = vld [vmem:[#allocation2 + $0x73] sm:$0xff]
      %v3263 = vld [vmem:[#allocation2 + $0x7b] sm:$0xff]
      %v3264 = vld [vmem:[#allocation2 + $0x83] sm:$0xff]
      %v3265 = vld [vmem:[#allocation2 + $0x8b] sm:$0xff]
      %v3266 = vld [vmem:[#allocation2 + $0x93] sm:$0xff]
      %v3267 = vld [vmem:[#allocation2 + $0x9b] sm:$0xff]
      %v3268 = vld [vmem:[#allocation2 + $0xa3] sm:$0xff]
      %v3269 = vld [vmem:[#allocation2 + $0xab] sm:$0xff]
      %v3270 = vld [vmem:[#allocation2 + $0xb3] sm:$0xff]
      %v3271 = vld [vmem:[#allocation2 + $0xbb] sm:$0xff]
      %v3272 = vld [vmem:[#allocation2 + $0xc3] sm:$0xff]
      %v3273 = vld [vmem:[#allocation2 + $0xcb] sm:$0xff]
      %v3274 = vld [vmem:[#allocation2 + $0xd3] sm:$0xff]
      %v3275 = vld [vmem:[#allocation2 + $0xdb] sm:$0xff]
      %v3276 = vld [vmem:[#allocation2 + $0xe3] sm:$0xff]
      %v3277 = vld [vmem:[#allocation2 + $0xeb] sm:$0xff]
      %v3278 = vld [vmem:[#allocation2 + $0xf3] sm:$0xff]
      %v3279 = vld [vmem:[#allocation2 + $0xfb] sm:$0xff]
      %v3280 = vld [vmem:[#allocation2 + $0x103] sm:$0xff]
      %v3281 = vld [vmem:[#allocation2 + $0x10b] sm:$0xff]
      %v3282 = vld [vmem:[#allocation2 + $0x113] sm:$0xff]
      %v3283 = vld [vmem:[#allocation2 + $0x11b] sm:$0x1f]
      %v3284 = vmax.f32 %v3216, %v3250
      %v3285 = vmax.f32 %v3217, %v3251
      %v3286 = vmax.f32 %v3218, %v3252
      %v3287 = vmax.f32 %v3219, %v3253
      %v3288 = vmax.f32 %v3220, %v3254
      %v3289 = vmax.f32 %v3221, %v3255
      %v3290 = vmax.f32 %v3222, %v3256
      %v3291 = vmax.f32 %v3223, %v3257
      %v3292 = vmax.f32 %v3224, %v3258
      %v3293 = vmax.f32 %v3225, %v3259
      %v3294 = vmax.f32 %v3226, %v3260
      %v3295 = vmax.f32 %v3227, %v3261
      %v3296 = vmax.f32 %v3228, %v3262
      %v3297 = vmax.f32 %v3229, %v3263
      %v3298 = vmax.f32 %v3230, %v3264
      %v3299 = vmax.f32 %v3231, %v3265
      %v3300 = vmax.f32 %v3232, %v3266
      %v3301 = vmax.f32 %v3233, %v3267
      %v3302 = vmax.f32 %v3234, %v3268
      %v3303 = vmax.f32 %v3235, %v3269
      %v3304 = vmax.f32 %v3236, %v3270
      %v3305 = vmax.f32 %v3237, %v3271
      %v3306 = vmax.f32 %v3238, %v3272
      %v3307 = vmax.f32 %v3239, %v3273
      %v3308 = vmax.f32 %v3240, %v3274
      %v3309 = vmax.f32 %v3241, %v3275
      %v3310 = vmax.f32 %v3242, %v3276
      %v3311 = vmax.f32 %v3243, %v3277
      %v3312 = vmax.f32 %v3244, %v3278
      %v3313 = vmax.f32 %v3245, %v3279
      %v3314 = vmax.f32 %v3246, %v3280
      %v3315 = vmax.f32 %v3247, %v3281
      %v3316 = vmax.f32 %v3248, %v3282
      %v3317 = vmax.f32 %v3249, %v3283
      %v3318 = vmax.f32 %v3182, %v3284
      %v3319 = vmax.f32 %v3183, %v3285
      %v3320 = vmax.f32 %v3184, %v3286
      %v3321 = vmax.f32 %v3185, %v3287
      %v3322 = vmax.f32 %v3186, %v3288
      %v3323 = vmax.f32 %v3187, %v3289
      %v3324 = vmax.f32 %v3188, %v3290
      %v3325 = vmax.f32 %v3189, %v3291
      %v3326 = vmax.f32 %v3190, %v3292
      %v3327 = vmax.f32 %v3191, %v3293
      %v3328 = vmax.f32 %v3192, %v3294
      %v3329 = vmax.f32 %v3193, %v3295
      %v3330 = vmax.f32 %v3194, %v3296
      %v3331 = vmax.f32 %v3195, %v3297
      %v3332 = vmax.f32 %v3196, %v3298
      %v3333 = vmax.f32 %v3197, %v3299
      %v3334 = vmax.f32 %v3198, %v3300
      %v3335 = vmax.f32 %v3199, %v3301
      %v3336 = vmax.f32 %v3200, %v3302
      %v3337 = vmax.f32 %v3201, %v3303
      %v3338 = vmax.f32 %v3202, %v3304
      %v3339 = vmax.f32 %v3203, %v3305
      %v3340 = vmax.f32 %v3204, %v3306
      %v3341 = vmax.f32 %v3205, %v3307
      %v3342 = vmax.f32 %v3206, %v3308
      %v3343 = vmax.f32 %v3207, %v3309
      %v3344 = vmax.f32 %v3208, %v3310
      %v3345 = vmax.f32 %v3209, %v3311
      %v3346 = vmax.f32 %v3210, %v3312
      %v3347 = vmax.f32 %v3211, %v3313
      %v3348 = vmax.f32 %v3212, %v3314
      %v3349 = vmax.f32 %v3213, %v3315
      %v3350 = vmax.f32 %v3214, %v3316
      %v3351 = vmax.f32 %v3215, %v3317
      %v3352 = vld [vmem:[%s3] sm:$0xff]
      %v3353 = vld [vmem:[%s3 + $0x8] sm:$0xff]
      %v3354 = vld [vmem:[%s3 + $0x10] sm:$0xff]
      %v3355 = vld [vmem:[%s3 + $0x18] sm:$0xff]
      %v3356 = vld [vmem:[%s3 + $0x20] sm:$0xff]
      %v3357 = vld [vmem:[%s3 + $0x28] sm:$0xff]
      %v3358 = vld [vmem:[%s3 + $0x30] sm:$0xff]
      %v3359 = vld [vmem:[%s3 + $0x38] sm:$0xff]
      %v3360 = vld [vmem:[%s3 + $0x40] sm:$0xff]
      %v3361 = vld [vmem:[%s3 + $0x48] sm:$0xff]
      %v3362 = vld [vmem:[%s3 + $0x50] sm:$0xff]
      %v3363 = vld [vmem:[%s3 + $0x58] sm:$0xff]
      %v3364 = vld [vmem:[%s3 + $0x60] sm:$0xff]
      %v3365 = vld [vmem:[%s3 + $0x68] sm:$0xff]
      %v3366 = vld [vmem:[%s3 + $0x70] sm:$0xff]
      %v3367 = vld [vmem:[%s3 + $0x78] sm:$0xff]
      %v3368 = vld [vmem:[%s3 + $0x80] sm:$0xff]
      %v3369 = vld [vmem:[%s3 + $0x88] sm:$0xff]
      %v3370 = vld [vmem:[%s3 + $0x90] sm:$0xff]
      %v3371 = vld [vmem:[%s3 + $0x98] sm:$0xff]
      %v3372 = vld [vmem:[%s3 + $0xa0] sm:$0xff]
      %v3373 = vld [vmem:[%s3 + $0xa8] sm:$0xff]
      %v3374 = vld [vmem:[%s3 + $0xb0] sm:$0xff]
      %v3375 = vld [vmem:[%s3 + $0xb8] sm:$0xff]
      %v3376 = vld [vmem:[%s3 + $0xc0] sm:$0xff]
      %v3377 = vld [vmem:[%s3 + $0xc8] sm:$0xff]
      %v3378 = vld [vmem:[%s3 + $0xd0] sm:$0xff]
      %v3379 = vld [vmem:[%s3 + $0xd8] sm:$0xff]
      %v3380 = vld [vmem:[%s3 + $0xe0] sm:$0xff]
      %v3381 = vld [vmem:[%s3 + $0xe8] sm:$0xff]
      %v3382 = vld [vmem:[%s3 + $0xf0] sm:$0xff]
      %v3383 = vld [vmem:[%s3 + $0xf8] sm:$0xff]
      %v3384 = vld [vmem:[%s3 + $0x100] sm:$0xff]
      %v3385 = vld [vmem:[%s3 + $0x108] sm:$0xff]
      %v3386 = vld [vmem:[%s3 + $0x110] sm:$0xff]
      %v3387 = vld [vmem:[%s3 + $0x118] sm:$0xff]
      %v3388 = vld [vmem:[%s3 + $0x120] sm:$0xff]
      %v3389 = vld [vmem:[%s3 + $0x128] sm:$0xff]
      %v3390 = vld [vmem:[%s3 + $0x130] sm:$0xff]
      %vm3391 = vcmask 105472
      %v3393 = vsel %vm3391, %v3354, 0
      %v3396 = vsel %vm3391, %v3357, 0
      %v3399 = vsel %vm3391, %v3360, 0
      %v3402 = vsel %vm3391, %v3363, 0
      %v3405 = vsel %vm3391, %v3366, 0
      %v3408 = vsel %vm3391, %v3369, 0
      %v3411 = vsel %vm3391, %v3372, 0
      %v3414 = vsel %vm3391, %v3375, 0
      %v3417 = vsel %vm3391, %v3378, 0
      %v3420 = vsel %vm3391, %v3381, 0
      %v3423 = vsel %vm3391, %v3384, 0
      %v3426 = vsel %vm3391, %v3387, 0
      %v3429 = vsel %vm3391, %v3390, 0
      %vm3431 = vcmask 1044480
      %v3433 = vsel %vm3431, %v3351, 0
      %3435 = vmatpush.msra.mxu0 %v3333
      %3436 = vmatpush.msra.mxu0 %v3332
      %3437 = vmatpush.msra.mxu0 %v3331
      %3438 = vmatpush.msra.mxu0 %v3330
      %3439 = vmatpush.msra.mxu0 %v3329
      %3440 = vmatpush.msra.mxu0 %v3328
      %3441 = vmatpush.msra.mxu0 %v3327
      %3442 = vmatpush.msra.mxu0 %v3326
      %3443 = vmatpush.msra.mxu0 %v3325
      %3444 = vmatpush.msra.mxu0 %v3324
      %3445 = vmatpush.msra.mxu0 %v3323
      %3446 = vmatpush.msra.mxu0 %v3322
      %3447 = vmatpush.msra.mxu0 %v3321
      %3448 = vmatpush.msra.mxu0 %v3320
      %3449 = vmatpush.msra.mxu0 %v3319
      %3450 = vmatpush.msra.mxu0 %v3318
      %3451 = vmatmul.f32.gmra.mxu0 %v3352
      %v3452 = vpop.f32.mrf.mxu0
      %v3453 = vadd.f32 0.0, %v3452
      %3454 = vmatmul.f32.gmra.mxu0 %v3355
      %v3455 = vpop.f32.mrf.mxu0
      %v3456 = vadd.f32 0.0, %v3455
      %3457 = vmatmul.f32.gmra.mxu0 %v3358
      %v3458 = vpop.f32.mrf.mxu0
      %v3459 = vadd.f32 0.0, %v3458
      %3460 = vmatmul.f32.gmra.mxu0 %v3361
      %v3461 = vpop.f32.mrf.mxu0
      %v3462 = vadd.f32 0.0, %v3461
      %3463 = vmatmul.f32.gmra.mxu0 %v3364
      %v3464 = vpop.f32.mrf.mxu0
      %v3465 = vadd.f32 0.0, %v3464
      %3466 = vmatmul.f32.gmra.mxu0 %v3367
      %v3467 = vpop.f32.mrf.mxu0
      %v3468 = vadd.f32 0.0, %v3467
      %3469 = vmatmul.f32.gmra.mxu0 %v3370
      %v3470 = vpop.f32.mrf.mxu0
      %v3471 = vadd.f32 0.0, %v3470
      %3472 = vmatmul.f32.gmra.mxu0 %v3373
      %v3473 = vpop.f32.mrf.mxu0
      %v3474 = vadd.f32 0.0, %v3473
      %3475 = vmatmul.f32.gmra.mxu0 %v3376
      %v3476 = vpop.f32.mrf.mxu0
      %v3477 = vadd.f32 0.0, %v3476
      %3478 = vmatmul.f32.gmra.mxu0 %v3379
      %v3479 = vpop.f32.mrf.mxu0
      %v3480 = vadd.f32 0.0, %v3479
      %3481 = vmatmul.f32.gmra.mxu0 %v3382
      %v3482 = vpop.f32.mrf.mxu0
      %v3483 = vadd.f32 0.0, %v3482
      %3484 = vmatmul.f32.gmra.mxu0 %v3385
      %v3485 = vpop.f32.mrf.mxu0
      %v3486 = vadd.f32 0.0, %v3485
      %3487 = vmatmul.f32.gmra.mxu0 %v3388
      %v3488 = vpop.f32.mrf.mxu0
      %v3489 = vadd.f32 0.0, %v3488
      %3490 = vdwg.mxu0
      %3491 = vmatpush.msra.mxu0 %v3349
      %3492 = vmatpush.msra.mxu0 %v3348
      %3493 = vmatpush.msra.mxu0 %v3347
      %3494 = vmatpush.msra.mxu0 %v3346
      %3495 = vmatpush.msra.mxu0 %v3345
      %3496 = vmatpush.msra.mxu0 %v3344
      %3497 = vmatpush.msra.mxu0 %v3343
      %3498 = vmatpush.msra.mxu0 %v3342
      %3499 = vmatpush.msra.mxu0 %v3341
      %3500 = vmatpush.msra.mxu0 %v3340
      %3501 = vmatpush.msra.mxu0 %v3339
      %3502 = vmatpush.msra.mxu0 %v3338
      %3503 = vmatpush.msra.mxu0 %v3337
      %3504 = vmatpush.msra.mxu0 %v3336
      %3505 = vmatpush.msra.mxu0 %v3335
      %3506 = vmatpush.msra.mxu0 %v3334
      %3507 = vmatmul.f32.gmra.mxu0 %v3353
      %v3508 = vpop.f32.mrf.mxu0
      %v3509 = vadd.f32 %v3453, %v3508
      %3510 = vmatmul.f32.gmra.mxu0 %v3356
      %v3511 = vpop.f32.mrf.mxu0
      %v3512 = vadd.f32 %v3456, %v3511
      %3513 = vmatmul.f32.gmra.mxu0 %v3359
      %v3514 = vpop.f32.mrf.mxu0
      %v3515 = vadd.f32 %v3459, %v3514
      %3516 = vmatmul.f32.gmra.mxu0 %v3362
      %v3517 = vpop.f32.mrf.mxu0
      %v3518 = vadd.f32 %v3462, %v3517
      %3519 = vmatmul.f32.gmra.mxu0 %v3365
      %v3520 = vpop.f32.mrf.mxu0
      %v3521 = vadd.f32 %v3465, %v3520
      %3522 = vmatmul.f32.gmra.mxu0 %v3368
      %v3523 = vpop.f32.mrf.mxu0
      %v3524 = vadd.f32 %v3468, %v3523
      %3525 = vmatmul.f32.gmra.mxu0 %v3371
      %v3526 = vpop.f32.mrf.mxu0
      %v3527 = vadd.f32 %v3471, %v3526
      %3528 = vmatmul.f32.gmra.mxu0 %v3374
      %v3529 = vpop.f32.mrf.mxu0
      %v3530 = vadd.f32 %v3474, %v3529
      %3531 = vmatmul.f32.gmra.mxu0 %v3377
      %v3532 = vpop.f32.mrf.mxu0
      %v3533 = vadd.f32 %v3477, %v3532
      %3534 = vmatmul.f32.gmra.mxu0 %v3380
      %v3535 = vpop.f32.mrf.mxu0
      %v3536 = vadd.f32 %v3480, %v3535
      %3537 = vmatmul.f32.gmra.mxu0 %v3383
      %v3538 = vpop.f32.mrf.mxu0
      %v3539 = vadd.f32 %v3483, %v3538
      %3540 = vmatmul.f32.gmra.mxu0 %v3386
      %v3541 = vpop.f32.mrf.mxu0
      %v3542 = vadd.f32 %v3486, %v3541
      %3543 = vmatmul.f32.gmra.mxu0 %v3389
      %v3544 = vpop.f32.mrf.mxu0
      %v3545 = vadd.f32 %v3489, %v3544
      %3546 = vdwg.mxu0
      %3547 = vmatpush.msra.mxu0 0.0
      %3548 = vmatpush.msra.mxu0 0.0
      %3549 = vmatpush.msra.mxu0 0.0
      %3550 = vmatpush.msra.mxu0 0.0
      %3551 = vmatpush.msra.mxu0 0.0
      %3552 = vmatpush.msra.mxu0 0.0
      %3553 = vmatpush.msra.mxu0 0.0
      %3554 = vmatpush.msra.mxu0 0.0
      %3555 = vmatpush.msra.mxu0 0.0
      %3556 = vmatpush.msra.mxu0 0.0
      %3557 = vmatpush.msra.mxu0 0.0
      %3558 = vmatpush.msra.mxu0 0.0
      %3559 = vmatpush.msra.mxu0 0.0
      %3560 = vmatpush.msra.mxu0 0.0
      %3561 = vmatpush.msra.mxu0 %v3433
      %3562 = vmatpush.msra.mxu0 %v3350
      %3563 = vmatmul.f32.gmra.mxu0 %v3393
      %v3564 = vpop.f32.mrf.mxu0
      %v3565 = vadd.f32 %v3509, %v3564
      %3566 = vmatmul.f32.gmra.mxu0 %v3396
      %v3567 = vpop.f32.mrf.mxu0
      %v3568 = vadd.f32 %v3512, %v3567
      %3569 = vmatmul.f32.gmra.mxu0 %v3399
      %v3570 = vpop.f32.mrf.mxu0
      %v3571 = vadd.f32 %v3515, %v3570
      %3572 = vmatmul.f32.gmra.mxu0 %v3402
      %v3573 = vpop.f32.mrf.mxu0
      %v3574 = vadd.f32 %v3518, %v3573
      %3575 = vmatmul.f32.gmra.mxu0 %v3405
      %v3576 = vpop.f32.mrf.mxu0
      %v3577 = vadd.f32 %v3521, %v3576
      %3578 = vmatmul.f32.gmra.mxu0 %v3408
      %v3579 = vpop.f32.mrf.mxu0
      %v3580 = vadd.f32 %v3524, %v3579
      %3581 = vmatmul.f32.gmra.mxu0 %v3411
      %v3582 = vpop.f32.mrf.mxu0
      %v3583 = vadd.f32 %v3527, %v3582
      %3584 = vmatmul.f32.gmra.mxu0 %v3414
      %v3585 = vpop.f32.mrf.mxu0
      %v3586 = vadd.f32 %v3530, %v3585
      %3587 = vmatmul.f32.gmra.mxu0 %v3417
      %v3588 = vpop.f32.mrf.mxu0
      %v3589 = vadd.f32 %v3533, %v3588
      %3590 = vmatmul.f32.gmra.mxu0 %v3420
      %v3591 = vpop.f32.mrf.mxu0
      %v3592 = vadd.f32 %v3536, %v3591
      %3593 = vmatmul.f32.gmra.mxu0 %v3423
      %v3594 = vpop.f32.mrf.mxu0
      %v3595 = vadd.f32 %v3539, %v3594
      %3596 = vmatmul.f32.gmra.mxu0 %v3426
      %v3597 = vpop.f32.mrf.mxu0
      %v3598 = vadd.f32 %v3542, %v3597
      %3599 = vmatmul.f32.gmra.mxu0 %v3429
      %v3600 = vpop.f32.mrf.mxu0
      %v3601 = vadd.f32 %v3545, %v3600
      %3602 = vdwg.mxu0
      %3603 = vst.msk [vmem:[#allocation3] sm:$0xff] %vm3077, %v3565
      %3604 = vst.msk [vmem:[#allocation3 + $0x8] sm:$0xff] %vm3077, %v3568
      %3605 = vst.msk [vmem:[#allocation3 + $0x10] sm:$0xff] %vm3077, %v3571
      %3606 = vst.msk [vmem:[#allocation3 + $0x18] sm:$0xff] %vm3077, %v3574
      %3607 = vst.msk [vmem:[#allocation3 + $0x20] sm:$0xff] %vm3077, %v3577
      %3608 = vst.msk [vmem:[#allocation3 + $0x28] sm:$0xff] %vm3077, %v3580
      %3609 = vst.msk [vmem:[#allocation3 + $0x30] sm:$0xff] %vm3077, %v3583
      %3610 = vst.msk [vmem:[#allocation3 + $0x38] sm:$0xff] %vm3077, %v3586
      %3611 = vst.msk [vmem:[#allocation3 + $0x40] sm:$0xff] %vm3077, %v3589
      %3612 = vst.msk [vmem:[#allocation3 + $0x48] sm:$0xff] %vm3077, %v3592
      %3613 = vst.msk [vmem:[#allocation3 + $0x50] sm:$0xff] %vm3077, %v3595
      %3614 = vst.msk [vmem:[#allocation3 + $0x58] sm:$0xff] %vm3077, %v3598
      %3615 = vst.msk [vmem:[#allocation3 + $0x60] sm:$0xff] %vm3077, %v3601
      %v3616 = vld [vmem:[#allocation3] sm:$0xff]
      %v3617 = vld [vmem:[#allocation3 + $0x8] sm:$0xff]
      %v3618 = vld [vmem:[#allocation3 + $0x10] sm:$0xff]
      %v3619 = vld [vmem:[#allocation3 + $0x18] sm:$0xff]
      %v3620 = vld [vmem:[#allocation3 + $0x20] sm:$0xff]
      %v3621 = vld [vmem:[#allocation3 + $0x28] sm:$0xff]
      %v3622 = vld [vmem:[#allocation3 + $0x30] sm:$0xff]
      %v3623 = vld [vmem:[#allocation3 + $0x38] sm:$0xff]
      %v3624 = vld [vmem:[#allocation3 + $0x40] sm:$0xff]
      %v3625 = vld [vmem:[#allocation3 + $0x48] sm:$0xff]
      %3626 = vst.msk [vmem:[#allocation4] sm:$0xff] %vm3077, %v3616
      %3627 = vst.msk [vmem:[#allocation4 + $0x10] sm:$0xff] %vm3077, %v3617
      %3628 = vst.msk [vmem:[#allocation4 + $0x20] sm:$0xff] %vm3077, %v3618
      %3629 = vst.msk [vmem:[#allocation4 + $0x30] sm:$0xff] %vm3077, %v3619
      %3630 = vst.msk [vmem:[#allocation4 + $0x40] sm:$0xff] %vm3077, %v3620
      %3631 = vst.msk [vmem:[#allocation4 + $0x50] sm:$0xff] %vm3077, %v3621
      %3632 = vst.msk [vmem:[#allocation4 + $0x60] sm:$0xff] %vm3077, %v3622
      %3633 = vst.msk [vmem:[#allocation4 + $0x70] sm:$0xff] %vm3077, %v3623
      %3634 = vst.msk [vmem:[#allocation4 + $0x80] sm:$0xff] %vm3077, %v3624
      %3635 = vst.msk [vmem:[#allocation4 + $0x90] sm:$0xff] %vm3077, %v3625
      %v3636 = vld [vmem:[#allocation3 + $0x1] sm:$0xff]
      %v3637 = vld [vmem:[#allocation3 + $0x9] sm:$0xff]
      %v3638 = vld [vmem:[#allocation3 + $0x11] sm:$0xff]
      %v3639 = vld [vmem:[#allocation3 + $0x19] sm:$0xff]
      %v3640 = vld [vmem:[#allocation3 + $0x21] sm:$0xff]
      %v3641 = vld [vmem:[#allocation3 + $0x29] sm:$0xff]
      %v3642 = vld [vmem:[#allocation3 + $0x31] sm:$0xff]
      %v3643 = vld [vmem:[#allocation3 + $0x39] sm:$0xff]
      %v3644 = vld [vmem:[#allocation3 + $0x41] sm:$0xff]
      %v3645 = vld [vmem:[#allocation3 + $0x49] sm:$0xff]
      %3656 = vrot.lane.b32.xlu0 %v3636, 16
      %v3657 = vpop.permute.xlu0 %3656
      %3658 = vrot.lane.b32.xlu0 %v3637, 16
      %v3659 = vpop.permute.xlu0 %3658
      %3660 = vrot.lane.b32.xlu0 %v3638, 16
      %v3661 = vpop.permute.xlu0 %3660
      %3662 = vrot.lane.b32.xlu0 %v3639, 16
      %v3663 = vpop.permute.xlu0 %3662
      %3664 = vrot.lane.b32.xlu0 %v3640, 16
      %v3665 = vpop.permute.xlu0 %3664
      %3666 = vrot.lane.b32.xlu0 %v3641, 16
      %v3667 = vpop.permute.xlu0 %3666
      %3668 = vrot.lane.b32.xlu0 %v3642, 16
      %v3669 = vpop.permute.xlu0 %3668
      %3670 = vrot.lane.b32.xlu0 %v3643, 16
      %v3671 = vpop.permute.xlu0 %3670
      %3672 = vrot.lane.b32.xlu0 %v3644, 16
      %v3673 = vpop.permute.xlu0 %3672
      %3674 = vrot.lane.b32.xlu0 %v3645, 16
      %v3675 = vpop.permute.xlu0 %3674
      %vm3686 = vcmask 261248
      %3687 = vst.msk [vmem:[#allocation4] sm:$0xff] %vm3686, %v3657
      %3688 = vst.msk [vmem:[#allocation4 + $0x10] sm:$0xff] %vm3686, %v3659
      %3689 = vst.msk [vmem:[#allocation4 + $0x20] sm:$0xff] %vm3686, %v3661
      %3690 = vst.msk [vmem:[#allocation4 + $0x30] sm:$0xff] %vm3686, %v3663
      %3691 = vst.msk [vmem:[#allocation4 + $0x40] sm:$0xff] %vm3686, %v3665
      %3692 = vst.msk [vmem:[#allocation4 + $0x50] sm:$0xff] %vm3686, %v3667
      %3693 = vst.msk [vmem:[#allocation4 + $0x60] sm:$0xff] %vm3686, %v3669
      %3694 = vst.msk [vmem:[#allocation4 + $0x70] sm:$0xff] %vm3686, %v3671
      %3695 = vst.msk [vmem:[#allocation4 + $0x80] sm:$0xff] %vm3686, %v3673
      %3696 = vst.msk [vmem:[#allocation4 + $0x90] sm:$0xff] %vm3686, %v3675
      %v3697 = vld [vmem:[#allocation3 + $0x2] sm:$0xff]
      %v3698 = vld [vmem:[#allocation3 + $0xa] sm:$0xff]
      %v3699 = vld [vmem:[#allocation3 + $0x12] sm:$0xff]
      %v3700 = vld [vmem:[#allocation3 + $0x1a] sm:$0xff]
      %v3701 = vld [vmem:[#allocation3 + $0x22] sm:$0xff]
      %v3702 = vld [vmem:[#allocation3 + $0x2a] sm:$0xff]
      %v3703 = vld [vmem:[#allocation3 + $0x32] sm:$0xff]
      %v3704 = vld [vmem:[#allocation3 + $0x3a] sm:$0xff]
      %v3705 = vld [vmem:[#allocation3 + $0x42] sm:$0xff]
      %v3706 = vld [vmem:[#allocation3 + $0x4a] sm:$0xff]
      %3717 = vrot.lane.b32.xlu0 %v3697, 32
      %v3718 = vpop.permute.xlu0 %3717
      %3719 = vrot.lane.b32.xlu0 %v3698, 32
      %v3720 = vpop.permute.xlu0 %3719
      %3721 = vrot.lane.b32.xlu0 %v3699, 32
      %v3722 = vpop.permute.xlu0 %3721
      %3723 = vrot.lane.b32.xlu0 %v3700, 32
      %v3724 = vpop.permute.xlu0 %3723
      %3725 = vrot.lane.b32.xlu0 %v3701, 32
      %v3726 = vpop.permute.xlu0 %3725
      %3727 = vrot.lane.b32.xlu0 %v3702, 32
      %v3728 = vpop.permute.xlu0 %3727
      %3729 = vrot.lane.b32.xlu0 %v3703, 32
      %v3730 = vpop.permute.xlu0 %3729
      %3731 = vrot.lane.b32.xlu0 %v3704, 32
      %v3732 = vpop.permute.xlu0 %3731
      %3733 = vrot.lane.b32.xlu0 %v3705, 32
      %v3734 = vpop.permute.xlu0 %3733
      %3735 = vrot.lane.b32.xlu0 %v3706, 32
      %v3736 = vpop.permute.xlu0 %3735
      %vm3747 = vcmask 392448
      %3748 = vst.msk [vmem:[#allocation4] sm:$0xff] %vm3747, %v3718
      %3749 = vst.msk [vmem:[#allocation4 + $0x10] sm:$0xff] %vm3747, %v3720
      %3750 = vst.msk [vmem:[#allocation4 + $0x20] sm:$0xff] %vm3747, %v3722
      %3751 = vst.msk [vmem:[#allocation4 + $0x30] sm:$0xff] %vm3747, %v3724
      %3752 = vst.msk [vmem:[#allocation4 + $0x40] sm:$0xff] %vm3747, %v3726
      %3753 = vst.msk [vmem:[#allocation4 + $0x50] sm:$0xff] %vm3747, %v3728
      %3754 = vst.msk [vmem:[#allocation4 + $0x60] sm:$0xff] %vm3747, %v3730
      %3755 = vst.msk [vmem:[#allocation4 + $0x70] sm:$0xff] %vm3747, %v3732
      %3756 = vst.msk [vmem:[#allocation4 + $0x80] sm:$0xff] %vm3747, %v3734
      %3757 = vst.msk [vmem:[#allocation4 + $0x90] sm:$0xff] %vm3747, %v3736
      %v3758 = vld [vmem:[#allocation3 + $0xa] sm:$0xff]
      %v3759 = vld [vmem:[#allocation3 + $0x12] sm:$0xff]
      %v3760 = vld [vmem:[#allocation3 + $0x1a] sm:$0xff]
      %v3761 = vld [vmem:[#allocation3 + $0x22] sm:$0xff]
      %v3762 = vld [vmem:[#allocation3 + $0x2a] sm:$0xff]
      %v3763 = vld [vmem:[#allocation3 + $0x32] sm:$0xff]
      %v3764 = vld [vmem:[#allocation3 + $0x3a] sm:$0xff]
      %v3765 = vld [vmem:[#allocation3 + $0x42] sm:$0xff]
      %v3766 = vld [vmem:[#allocation3 + $0x4a] sm:$0xff]
      %v3767 = vld [vmem:[#allocation3 + $0x52] sm:$0xff]
      %3778 = vrot.lane.b32.xlu0 %v3758, 48
      %v3779 = vpop.permute.xlu0 %3778
      %3780 = vrot.lane.b32.xlu0 %v3759, 48
      %v3781 = vpop.permute.xlu0 %3780
      %3782 = vrot.lane.b32.xlu0 %v3760, 48
      %v3783 = vpop.permute.xlu0 %3782
      %3784 = vrot.lane.b32.xlu0 %v3761, 48
      %v3785 = vpop.permute.xlu0 %3784
      %3786 = vrot.lane.b32.xlu0 %v3762, 48
      %v3787 = vpop.permute.xlu0 %3786
      %3788 = vrot.lane.b32.xlu0 %v3763, 48
      %v3789 = vpop.permute.xlu0 %3788
      %3790 = vrot.lane.b32.xlu0 %v3764, 48
      %v3791 = vpop.permute.xlu0 %3790
      %3792 = vrot.lane.b32.xlu0 %v3765, 48
      %v3793 = vpop.permute.xlu0 %3792
      %3794 = vrot.lane.b32.xlu0 %v3766, 48
      %v3795 = vpop.permute.xlu0 %3794
      %3796 = vrot.lane.b32.xlu0 %v3767, 48
      %v3797 = vpop.permute.xlu0 %3796
      %vm3808 = vcmask 523648
      %3809 = vst.msk [vmem:[#allocation4] sm:$0xff] %vm3808, %v3779
      %3810 = vst.msk [vmem:[#allocation4 + $0x10] sm:$0xff] %vm3808, %v3781
      %3811 = vst.msk [vmem:[#allocation4 + $0x20] sm:$0xff] %vm3808, %v3783
      %3812 = vst.msk [vmem:[#allocation4 + $0x30] sm:$0xff] %vm3808, %v3785
      %3813 = vst.msk [vmem:[#allocation4 + $0x40] sm:$0xff] %vm3808, %v3787
      %3814 = vst.msk [vmem:[#allocation4 + $0x50] sm:$0xff] %vm3808, %v3789
      %3815 = vst.msk [vmem:[#allocation4 + $0x60] sm:$0xff] %vm3808, %v3791
      %3816 = vst.msk [vmem:[#allocation4 + $0x70] sm:$0xff] %vm3808, %v3793
      %3817 = vst.msk [vmem:[#allocation4 + $0x80] sm:$0xff] %vm3808, %v3795
      %3818 = vst.msk [vmem:[#allocation4 + $0x90] sm:$0xff] %vm3808, %v3797
      %v3819 = vld [vmem:[#allocation3 + $0xb] sm:$0xff]
      %v3820 = vld [vmem:[#allocation3 + $0x13] sm:$0xff]
      %v3821 = vld [vmem:[#allocation3 + $0x1b] sm:$0xff]
      %v3822 = vld [vmem:[#allocation3 + $0x23] sm:$0xff]
      %v3823 = vld [vmem:[#allocation3 + $0x2b] sm:$0xff]
      %v3824 = vld [vmem:[#allocation3 + $0x33] sm:$0xff]
      %v3825 = vld [vmem:[#allocation3 + $0x3b] sm:$0xff]
      %v3826 = vld [vmem:[#allocation3 + $0x43] sm:$0xff]
      %v3827 = vld [vmem:[#allocation3 + $0x4b] sm:$0xff]
      %v3828 = vld [vmem:[#allocation3 + $0x53] sm:$0xff]
      %3839 = vrot.lane.b32.xlu0 %v3819, 64
      %v3840 = vpop.permute.xlu0 %3839
      %3841 = vrot.lane.b32.xlu0 %v3820, 64
      %v3842 = vpop.permute.xlu0 %3841
      %3843 = vrot.lane.b32.xlu0 %v3821, 64
      %v3844 = vpop.permute.xlu0 %3843
      %3845 = vrot.lane.b32.xlu0 %v3822, 64
      %v3846 = vpop.permute.xlu0 %3845
      %3847 = vrot.lane.b32.xlu0 %v3823, 64
      %v3848 = vpop.permute.xlu0 %3847
      %3849 = vrot.lane.b32.xlu0 %v3824, 64
      %v3850 = vpop.permute.xlu0 %3849
      %3851 = vrot.lane.b32.xlu0 %v3825, 64
      %v3852 = vpop.permute.xlu0 %3851
      %3853 = vrot.lane.b32.xlu0 %v3826, 64
      %v3854 = vpop.permute.xlu0 %3853
      %3855 = vrot.lane.b32.xlu0 %v3827, 64
      %v3856 = vpop.permute.xlu0 %3855
      %3857 = vrot.lane.b32.xlu0 %v3828, 64
      %v3858 = vpop.permute.xlu0 %3857
      %vm3869 = vcmask 654848
      %3870 = vst.msk [vmem:[#allocation4] sm:$0xff] %vm3869, %v3840
      %3871 = vst.msk [vmem:[#allocation4 + $0x10] sm:$0xff] %vm3869, %v3842
      %3872 = vst.msk [vmem:[#allocation4 + $0x20] sm:$0xff] %vm3869, %v3844
      %3873 = vst.msk [vmem:[#allocation4 + $0x30] sm:$0xff] %vm3869, %v3846
      %3874 = vst.msk [vmem:[#allocation4 + $0x40] sm:$0xff] %vm3869, %v3848
      %3875 = vst.msk [vmem:[#allocation4 + $0x50] sm:$0xff] %vm3869, %v3850
      %3876 = vst.msk [vmem:[#allocation4 + $0x60] sm:$0xff] %vm3869, %v3852
      %3877 = vst.msk [vmem:[#allocation4 + $0x70] sm:$0xff] %vm3869, %v3854
      %3878 = vst.msk [vmem:[#allocation4 + $0x80] sm:$0xff] %vm3869, %v3856
      %3879 = vst.msk [vmem:[#allocation4 + $0x90] sm:$0xff] %vm3869, %v3858
      %v3880 = vld [vmem:[#allocation3 + $0xc] sm:$0xff]
      %v3881 = vld [vmem:[#allocation3 + $0x14] sm:$0xff]
      %v3882 = vld [vmem:[#allocation3 + $0x1c] sm:$0xff]
      %v3883 = vld [vmem:[#allocation3 + $0x24] sm:$0xff]
      %v3884 = vld [vmem:[#allocation3 + $0x2c] sm:$0xff]
      %v3885 = vld [vmem:[#allocation3 + $0x34] sm:$0xff]
      %v3886 = vld [vmem:[#allocation3 + $0x3c] sm:$0xff]
      %v3887 = vld [vmem:[#allocation3 + $0x44] sm:$0xff]
      %v3888 = vld [vmem:[#allocation3 + $0x4c] sm:$0xff]
      %v3889 = vld [vmem:[#allocation3 + $0x54] sm:$0xff]
      %3900 = vrot.lane.b32.xlu0 %v3880, 80
      %v3901 = vpop.permute.xlu0 %3900
      %3902 = vrot.lane.b32.xlu0 %v3881, 80
      %v3903 = vpop.permute.xlu0 %3902
      %3904 = vrot.lane.b32.xlu0 %v3882, 80
      %v3905 = vpop.permute.xlu0 %3904
      %3906 = vrot.lane.b32.xlu0 %v3883, 80
      %v3907 = vpop.permute.xlu0 %3906
      %3908 = vrot.lane.b32.xlu0 %v3884, 80
      %v3909 = vpop.permute.xlu0 %3908
      %3910 = vrot.lane.b32.xlu0 %v3885, 80
      %v3911 = vpop.permute.xlu0 %3910
      %3912 = vrot.lane.b32.xlu0 %v3886, 80
      %v3913 = vpop.permute.xlu0 %3912
      %3914 = vrot.lane.b32.xlu0 %v3887, 80
      %v3915 = vpop.permute.xlu0 %3914
      %3916 = vrot.lane.b32.xlu0 %v3888, 80
      %v3917 = vpop.permute.xlu0 %3916
      %3918 = vrot.lane.b32.xlu0 %v3889, 80
      %v3919 = vpop.permute.xlu0 %3918
      %vm3930 = vcmask 786048
      %3931 = vst.msk [vmem:[#allocation4] sm:$0xff] %vm3930, %v3901
      %3932 = vst.msk [vmem:[#allocation4 + $0x10] sm:$0xff] %vm3930, %v3903
      %3933 = vst.msk [vmem:[#allocation4 + $0x20] sm:$0xff] %vm3930, %v3905
      %3934 = vst.msk [vmem:[#allocation4 + $0x30] sm:$0xff] %vm3930, %v3907
      %3935 = vst.msk [vmem:[#allocation4 + $0x40] sm:$0xff] %vm3930, %v3909
      %3936 = vst.msk [vmem:[#allocation4 + $0x50] sm:$0xff] %vm3930, %v3911
      %3937 = vst.msk [vmem:[#allocation4 + $0x60] sm:$0xff] %vm3930, %v3913
      %3938 = vst.msk [vmem:[#allocation4 + $0x70] sm:$0xff] %vm3930, %v3915
      %3939 = vst.msk [vmem:[#allocation4 + $0x80] sm:$0xff] %vm3930, %v3917
      %3940 = vst.msk [vmem:[#allocation4 + $0x90] sm:$0xff] %vm3930, %v3919
      %v3941 = vld [vmem:[#allocation3 + $0x14] sm:$0xff]
      %v3942 = vld [vmem:[#allocation3 + $0x1c] sm:$0xff]
      %v3943 = vld [vmem:[#allocation3 + $0x24] sm:$0xff]
      %v3944 = vld [vmem:[#allocation3 + $0x2c] sm:$0xff]
      %v3945 = vld [vmem:[#allocation3 + $0x34] sm:$0xff]
      %v3946 = vld [vmem:[#allocation3 + $0x3c] sm:$0xff]
      %v3947 = vld [vmem:[#allocation3 + $0x44] sm:$0xff]
      %v3948 = vld [vmem:[#allocation3 + $0x4c] sm:$0xff]
      %v3949 = vld [vmem:[#allocation3 + $0x54] sm:$0xff]
      %v3950 = vld [vmem:[#allocation3 + $0x5c] sm:$0xff]
      %3961 = vrot.lane.b32.xlu0 %v3941, 96
      %v3962 = vpop.permute.xlu0 %3961
      %3963 = vrot.lane.b32.xlu0 %v3942, 96
      %v3964 = vpop.permute.xlu0 %3963
      %3965 = vrot.lane.b32.xlu0 %v3943, 96
      %v3966 = vpop.permute.xlu0 %3965
      %3967 = vrot.lane.b32.xlu0 %v3944, 96
      %v3968 = vpop.permute.xlu0 %3967
      %3969 = vrot.lane.b32.xlu0 %v3945, 96
      %v3970 = vpop.permute.xlu0 %3969
      %3971 = vrot.lane.b32.xlu0 %v3946, 96
      %v3972 = vpop.permute.xlu0 %3971
      %3973 = vrot.lane.b32.xlu0 %v3947, 96
      %v3974 = vpop.permute.xlu0 %3973
      %3975 = vrot.lane.b32.xlu0 %v3948, 96
      %v3976 = vpop.permute.xlu0 %3975
      %3977 = vrot.lane.b32.xlu0 %v3949, 96
      %v3978 = vpop.permute.xlu0 %3977
      %3979 = vrot.lane.b32.xlu0 %v3950, 96
      %v3980 = vpop.permute.xlu0 %3979
      %vm3991 = vcmask 917248
      %3992 = vst.msk [vmem:[#allocation4] sm:$0xff] %vm3991, %v3962
      %3993 = vst.msk [vmem:[#allocation4 + $0x10] sm:$0xff] %vm3991, %v3964
      %3994 = vst.msk [vmem:[#allocation4 + $0x20] sm:$0xff] %vm3991, %v3966
      %3995 = vst.msk [vmem:[#allocation4 + $0x30] sm:$0xff] %vm3991, %v3968
      %3996 = vst.msk [vmem:[#allocation4 + $0x40] sm:$0xff] %vm3991, %v3970
      %3997 = vst.msk [vmem:[#allocation4 + $0x50] sm:$0xff] %vm3991, %v3972
      %3998 = vst.msk [vmem:[#allocation4 + $0x60] sm:$0xff] %vm3991, %v3974
      %3999 = vst.msk [vmem:[#allocation4 + $0x70] sm:$0xff] %vm3991, %v3976
      %4000 = vst.msk [vmem:[#allocation4 + $0x80] sm:$0xff] %vm3991, %v3978
      %4001 = vst.msk [vmem:[#allocation4 + $0x90] sm:$0xff] %vm3991, %v3980
      %v4002 = vld [vmem:[#allocation3 + $0x15] sm:$0xff]
      %v4003 = vld [vmem:[#allocation3 + $0x1d] sm:$0xff]
      %v4004 = vld [vmem:[#allocation3 + $0x25] sm:$0xff]
      %v4005 = vld [vmem:[#allocation3 + $0x2d] sm:$0xff]
      %v4006 = vld [vmem:[#allocation3 + $0x35] sm:$0xff]
      %v4007 = vld [vmem:[#allocation3 + $0x3d] sm:$0xff]
      %v4008 = vld [vmem:[#allocation3 + $0x45] sm:$0xff]
      %v4009 = vld [vmem:[#allocation3 + $0x4d] sm:$0xff]
      %v4010 = vld [vmem:[#allocation3 + $0x55] sm:$0xff]
      %v4011 = vld [vmem:[#allocation3 + $0x5d] sm:$0xff]
      %4022 = vrot.lane.b32.xlu0 %v4002, 112
      %v4023 = vpop.permute.xlu0 %4022
      %4024 = vrot.lane.b32.xlu0 %v4003, 112
      %v4025 = vpop.permute.xlu0 %4024
      %4026 = vrot.lane.b32.xlu0 %v4004, 112
      %v4027 = vpop.permute.xlu0 %4026
      %4028 = vrot.lane.b32.xlu0 %v4005, 112
      %v4029 = vpop.permute.xlu0 %4028
      %4030 = vrot.lane.b32.xlu0 %v4006, 112
      %v4031 = vpop.permute.xlu0 %4030
      %4032 = vrot.lane.b32.xlu0 %v4007, 112
      %v4033 = vpop.permute.xlu0 %4032
      %4034 = vrot.lane.b32.xlu0 %v4008, 112
      %v4035 = vpop.permute.xlu0 %4034
      %4036 = vrot.lane.b32.xlu0 %v4009, 112
      %v4037 = vpop.permute.xlu0 %4036
      %4038 = vrot.lane.b32.xlu0 %v4010, 112
      %v4039 = vpop.permute.xlu0 %4038
      %4040 = vrot.lane.b32.xlu0 %v4011, 112
      %v4041 = vpop.permute.xlu0 %4040
      %vm4052 = vcmask 1048448
      %4053 = vst.msk [vmem:[#allocation4] sm:$0xff] %vm4052, %v4023
      %4054 = vst.msk [vmem:[#allocation4 + $0x10] sm:$0xff] %vm4052, %v4025
      %4055 = vst.msk [vmem:[#allocation4 + $0x20] sm:$0xff] %vm4052, %v4027
      %4056 = vst.msk [vmem:[#allocation4 + $0x30] sm:$0xff] %vm4052, %v4029
      %4057 = vst.msk [vmem:[#allocation4 + $0x40] sm:$0xff] %vm4052, %v4031
      %4058 = vst.msk [vmem:[#allocation4 + $0x50] sm:$0xff] %vm4052, %v4033
      %4059 = vst.msk [vmem:[#allocation4 + $0x60] sm:$0xff] %vm4052, %v4035
      %4060 = vst.msk [vmem:[#allocation4 + $0x70] sm:$0xff] %vm4052, %v4037
      %4061 = vst.msk [vmem:[#allocation4 + $0x80] sm:$0xff] %vm4052, %v4039
      %4062 = vst.msk [vmem:[#allocation4 + $0x90] sm:$0xff] %vm4052, %v4041
      %v4063 = vld [vmem:[#allocation3 + $0x16] sm:$0xff]
      %v4064 = vld [vmem:[#allocation3 + $0x1e] sm:$0xff]
      %v4065 = vld [vmem:[#allocation3 + $0x26] sm:$0xff]
      %v4066 = vld [vmem:[#allocation3 + $0x2e] sm:$0xff]
      %v4067 = vld [vmem:[#allocation3 + $0x36] sm:$0xff]
      %v4068 = vld [vmem:[#allocation3 + $0x3e] sm:$0xff]
      %v4069 = vld [vmem:[#allocation3 + $0x46] sm:$0xff]
      %v4070 = vld [vmem:[#allocation3 + $0x4e] sm:$0xff]
      %v4071 = vld [vmem:[#allocation3 + $0x56] sm:$0xff]
      %v4072 = vld [vmem:[#allocation3 + $0x5e] sm:$0xff]
      %4073 = vst.msk [vmem:[#allocation4 + $0x8] sm:$0xff] %vm3077, %v4063
      %4074 = vst.msk [vmem:[#allocation4 + $0x18] sm:$0xff] %vm3077, %v4064
      %4075 = vst.msk [vmem:[#allocation4 + $0x28] sm:$0xff] %vm3077, %v4065
      %4076 = vst.msk [vmem:[#allocation4 + $0x38] sm:$0xff] %vm3077, %v4066
      %4077 = vst.msk [vmem:[#allocation4 + $0x48] sm:$0xff] %vm3077, %v4067
      %4078 = vst.msk [vmem:[#allocation4 + $0x58] sm:$0xff] %vm3077, %v4068
      %4079 = vst.msk [vmem:[#allocation4 + $0x68] sm:$0xff] %vm3077, %v4069
      %4080 = vst.msk [vmem:[#allocation4 + $0x78] sm:$0xff] %vm3077, %v4070
      %4081 = vst.msk [vmem:[#allocation4 + $0x88] sm:$0xff] %vm3077, %v4071
      %4082 = vst.msk [vmem:[#allocation4 + $0x98] sm:$0xff] %vm3077, %v4072
      %v4083 = vld [vmem:[#allocation4] sm:$0xff]
      %v4084 = vld [vmem:[#allocation4 + $0x8] sm:$0xff]
      %v4085 = vld [vmem:[#allocation4 + $0x10] sm:$0xff]
      %v4086 = vld [vmem:[#allocation4 + $0x18] sm:$0xff]
      %v4087 = vld [vmem:[#allocation4 + $0x20] sm:$0xff]
      %v4088 = vld [vmem:[#allocation4 + $0x28] sm:$0xff]
      %v4089 = vld [vmem:[#allocation4 + $0x30] sm:$0xff]
      %v4090 = vld [vmem:[#allocation4 + $0x38] sm:$0xff]
      %v4091 = vld [vmem:[#allocation4 + $0x40] sm:$0xff]
      %v4092 = vld [vmem:[#allocation4 + $0x48] sm:$0xff]
      %v4093 = vld [vmem:[#allocation4 + $0x50] sm:$0xff]
      %v4094 = vld [vmem:[#allocation4 + $0x58] sm:$0xff]
      %v4095 = vld [vmem:[#allocation4 + $0x60] sm:$0xff]
      %v4096 = vld [vmem:[#allocation4 + $0x68] sm:$0xff]
      %v4097 = vld [vmem:[#allocation4 + $0x70] sm:$0xff]
      %v4098 = vld [vmem:[#allocation4 + $0x78] sm:$0xff]
      %v4099 = vld [vmem:[#allocation4 + $0x80] sm:$0xff]
      %v4100 = vld [vmem:[#allocation4 + $0x88] sm:$0xff]
      %v4101 = vld [vmem:[#allocation4 + $0x90] sm:$0xff]
      %v4102 = vld [vmem:[#allocation4 + $0x98] sm:$0xff]
      %v4103 = vpack.c.bf16 %v4085, %v4083
      %v4104 = vpack.c.bf16 %v4086, %v4084
      %v4105 = vpack.c.bf16 %v4089, %v4087
      %v4106 = vpack.c.bf16 %v4090, %v4088
      %v4107 = vpack.c.bf16 %v4093, %v4091
      %v4108 = vpack.c.bf16 %v4094, %v4092
      %v4109 = vpack.c.bf16 %v4097, %v4095
      %v4110 = vpack.c.bf16 %v4098, %v4096
      %v4111 = vpack.c.bf16 %v4101, %v4099
      %v4112 = vpack.c.bf16 %v4102, %v4100
      %v4113 = vld [vmem:[%s4] sm:$0xf]
      %v4114 = vld [vmem:[%s4 + $0x4] sm:$0xf]
      %v4115 = vld [vmem:[%s4 + $0x8] sm:$0xf]
      %v4116 = vld [vmem:[%s4 + $0xc] sm:$0xf]
      %v4117 = vld [vmem:[%s4 + $0x10] sm:$0xf]
      %v4118 = vld [vmem:[%s4 + $0x14] sm:$0xf]
      %v4119 = vld [vmem:[%s4 + $0x18] sm:$0xf]
      %v4120 = vld [vmem:[%s4 + $0x1c] sm:$0xf]
      %v4121 = vld [vmem:[%s4 + $0x20] sm:$0xf]
      %v4122 = vld [vmem:[%s4 + $0x24] sm:$0xf]
      %v4123 = vld [vmem:[%s4 + $0x28] sm:$0xf]
      %v4124 = vld [vmem:[%s4 + $0x2c] sm:$0xf]
      %v4125 = vld [vmem:[%s4 + $0x30] sm:$0xf]
      %v4126 = vld [vmem:[%s4 + $0x34] sm:$0xf]
      %v4127 = vld [vmem:[%s4 + $0x38] sm:$0xf]
      %v4128 = vld [vmem:[%s4 + $0x3c] sm:$0xf]
      %v4129 = vld [vmem:[%s4 + $0x40] sm:$0xf]
      %v4130 = vld [vmem:[%s4 + $0x44] sm:$0xf]
      %v4131 = vld [vmem:[%s5] sm:$0x1]
      %v4133 = vperm.slane %v4131, 0
      %v4153 = vunpack.c.l.b16 %v4113
      %v4154 = vunpack.c.l.b16 %v4114
      %v4155 = vunpack.c.l.b16 %v4115
      %v4156 = vunpack.c.l.b16 %v4116
      %v4157 = vunpack.c.l.b16 %v4117
      %v4158 = vunpack.c.l.b16 %v4118
      %v4159 = vunpack.c.l.b16 %v4119
      %v4160 = vunpack.c.l.b16 %v4120
      %v4161 = vunpack.c.l.b16 %v4121
      %v4162 = vunpack.c.l.b16 %v4122
      %v4163 = vunpack.c.l.b16 %v4123
      %v4164 = vunpack.c.l.b16 %v4124
      %v4165 = vunpack.c.l.b16 %v4125
      %v4166 = vunpack.c.l.b16 %v4126
      %v4167 = vunpack.c.l.b16 %v4127
      %v4168 = vunpack.c.l.b16 %v4128
      %v4169 = vunpack.c.l.b16 %v4129
      %v4170 = vunpack.c.l.b16 %v4130
      %v4171 = vpack.c.b16 %v4154, %v4153
      %v4172 = vpack.c.b16 %v4156, %v4155
      %v4173 = vpack.c.b16 %v4158, %v4157
      %v4174 = vpack.c.b16 %v4160, %v4159
      %v4175 = vpack.c.b16 %v4162, %v4161
      %v4176 = vpack.c.b16 %v4164, %v4163
      %v4177 = vpack.c.b16 %v4166, %v4165
      %v4178 = vpack.c.b16 %v4168, %v4167
      %v4179 = vpack.c.b16 %v4170, %v4169
      %v4190 = vsel %vm3077, %v4104, 0
      %v4193 = vsel %vm3077, %v4106, 0
      %v4196 = vsel %vm3077, %v4108, 0
      %v4199 = vsel %vm3077, %v4110, 0
      %v4202 = vsel %vm3077, %v4112, 0
      %4204 = vmatpush.bf16.msra.mxu0 %v4178
      %4205 = vmatpush.bf16.msra.mxu0 %v4177
      %4206 = vmatpush.bf16.msra.mxu0 %v4176
      %4207 = vmatpush.bf16.msra.mxu0 %v4175
      %4208 = vmatpush.bf16.msra.mxu0 %v4174
      %4209 = vmatpush.bf16.msra.mxu0 %v4173
      %4210 = vmatpush.bf16.msra.mxu0 %v4172
      %4211 = vmatpush.bf16.msra.mxu0 %v4171
      %4212 = vmatmul.bf16.gmra.mxu0 %v4103
      %v4213 = vpop.f32.mrf.mxu0
      %v4214 = vadd.f32 %v4133, %v4213
      %v4215 = vpop.f32.mrf.mxu0
      %v4216 = vadd.f32 %v4133, %v4215
      %4217 = vmatmul.bf16.gmra.mxu0 %v4105
      %v4218 = vpop.f32.mrf.mxu0
      %v4219 = vadd.f32 %v4133, %v4218
      %v4220 = vpop.f32.mrf.mxu0
      %v4221 = vadd.f32 %v4133, %v4220
      %4222 = vmatmul.bf16.gmra.mxu0 %v4107
      %v4223 = vpop.f32.mrf.mxu0
      %v4224 = vadd.f32 %v4133, %v4223
      %v4225 = vpop.f32.mrf.mxu0
      %v4226 = vadd.f32 %v4133, %v4225
      %4227 = vmatmul.bf16.gmra.mxu0 %v4109
      %v4228 = vpop.f32.mrf.mxu0
      %v4229 = vadd.f32 %v4133, %v4228
      %v4230 = vpop.f32.mrf.mxu0
      %v4231 = vadd.f32 %v4133, %v4230
      %4232 = vmatmul.bf16.gmra.mxu0 %v4111
      %v4233 = vpop.f32.mrf.mxu0
      %v4234 = vadd.f32 %v4133, %v4233
      %v4235 = vpop.f32.mrf.mxu0
      %v4236 = vadd.f32 %v4133, %v4235
      %4237 = vdwg.mxu0
      %4238 = vmatpush.bf16.msra.mxu0 0
      %4239 = vmatpush.bf16.msra.mxu0 0
      %4240 = vmatpush.bf16.msra.mxu0 0
      %4241 = vmatpush.bf16.msra.mxu0 0
      %4242 = vmatpush.bf16.msra.mxu0 0
      %4243 = vmatpush.bf16.msra.mxu0 0
      %4244 = vmatpush.bf16.msra.mxu0 0
      %4245 = vmatpush.bf16.msra.mxu0 %v4179
      %4246 = vmatmul.bf16.gmra.mxu0 %v4190
      %v4247 = vpop.f32.mrf.mxu0
      %v4248 = vadd.f32 %v4214, %v4247
      %v4249 = vpop.f32.mrf.mxu0
      %v4250 = vadd.f32 %v4216, %v4249
      %4251 = vmatmul.bf16.gmra.mxu0 %v4193
      %v4252 = vpop.f32.mrf.mxu0
      %v4253 = vadd.f32 %v4219, %v4252
      %v4254 = vpop.f32.mrf.mxu0
      %v4255 = vadd.f32 %v4221, %v4254
      %4256 = vmatmul.bf16.gmra.mxu0 %v4196
      %v4257 = vpop.f32.mrf.mxu0
      %v4258 = vadd.f32 %v4224, %v4257
      %v4259 = vpop.f32.mrf.mxu0
      %v4260 = vadd.f32 %v4226, %v4259
      %4261 = vmatmul.bf16.gmra.mxu0 %v4199
      %v4262 = vpop.f32.mrf.mxu0
      %v4263 = vadd.f32 %v4229, %v4262
      %v4264 = vpop.f32.mrf.mxu0
      %v4265 = vadd.f32 %v4231, %v4264
      %4266 = vmatmul.bf16.gmra.mxu0 %v4202
      %v4267 = vpop.f32.mrf.mxu0
      %v4268 = vadd.f32 %v4234, %v4267
      %v4269 = vpop.f32.mrf.mxu0
      %v4270 = vadd.f32 %v4236, %v4269
      %4271 = vdwg.mxu0
      %v4272 = vmax.f32 %v4248, 0.0
      %v4273 = vmax.f32 %v4250, 0.0
      %v4274 = vmax.f32 %v4253, 0.0
      %v4275 = vmax.f32 %v4255, 0.0
      %v4276 = vmax.f32 %v4258, 0.0
      %v4277 = vmax.f32 %v4260, 0.0
      %v4278 = vmax.f32 %v4263, 0.0
      %v4279 = vmax.f32 %v4265, 0.0
      %v4280 = vmax.f32 %v4268, 0.0
      %v4281 = vmax.f32 %v4270, 0.0
      %vm4282 = vcmask 261120
      %4283 = vst.msk [vmem:[#allocation5] sm:$0xff] %vm4282, %v4272
      %4284 = vst.msk [vmem:[#allocation5 + $0x8] sm:$0xff] %vm4282, %v4273
      %4285 = vst.msk [vmem:[#allocation5 + $0x10] sm:$0xff] %vm4282, %v4274
      %4286 = vst.msk [vmem:[#allocation5 + $0x18] sm:$0xff] %vm4282, %v4275
      %4287 = vst.msk [vmem:[#allocation5 + $0x20] sm:$0xff] %vm4282, %v4276
      %4288 = vst.msk [vmem:[#allocation5 + $0x28] sm:$0xff] %vm4282, %v4277
      %4289 = vst.msk [vmem:[#allocation5 + $0x30] sm:$0xff] %vm4282, %v4278
      %4290 = vst.msk [vmem:[#allocation5 + $0x38] sm:$0xff] %vm4282, %v4279
      %4291 = vst.msk [vmem:[#allocation5 + $0x40] sm:$0xff] %vm4282, %v4280
      %4292 = vst.msk [vmem:[#allocation5 + $0x48] sm:$0xff] %vm4282, %v4281
      %v4293 = vld [vmem:[#allocation5] sm:$0xff]
      %v4294 = vld [vmem:[#allocation5 + $0x8] sm:$0xff]
      %v4295 = vld [vmem:[#allocation5 + $0x10] sm:$0xff]
      %v4296 = vld [vmem:[#allocation5 + $0x18] sm:$0xff]
      %v4297 = vld [vmem:[#allocation5 + $0x20] sm:$0xff]
      %v4298 = vld [vmem:[#allocation5 + $0x28] sm:$0xff]
      %v4299 = vld [vmem:[#allocation5 + $0x30] sm:$0xff]
      %v4300 = vld [vmem:[#allocation5 + $0x38] sm:$0xff]
      %v4301 = vld [vmem:[#allocation5 + $0x40] sm:$0x1f]
      %v4302 = vld [vmem:[#allocation5 + $0x1] sm:$0xff]
      %v4303 = vld [vmem:[#allocation5 + $0x9] sm:$0xff]
      %v4304 = vld [vmem:[#allocation5 + $0x11] sm:$0xff]
      %v4305 = vld [vmem:[#allocation5 + $0x19] sm:$0xff]
      %v4306 = vld [vmem:[#allocation5 + $0x21] sm:$0xff]
      %v4307 = vld [vmem:[#allocation5 + $0x29] sm:$0xff]
      %v4308 = vld [vmem:[#allocation5 + $0x31] sm:$0xff]
      %v4309 = vld [vmem:[#allocation5 + $0x39] sm:$0xff]
      %v4310 = vld [vmem:[#allocation5 + $0x41] sm:$0x1f]
      %v4311 = vmax.f32 %v4293, %v4302
      %v4312 = vmax.f32 %v4294, %v4303
      %v4313 = vmax.f32 %v4295, %v4304
      %v4314 = vmax.f32 %v4296, %v4305
      %v4315 = vmax.f32 %v4297, %v4306
      %v4316 = vmax.f32 %v4298, %v4307
      %v4317 = vmax.f32 %v4299, %v4308
      %v4318 = vmax.f32 %v4300, %v4309
      %v4319 = vmax.f32 %v4301, %v4310
      %v4320 = vld [vmem:[#allocation5 + $0xa] sm:$0xff]
      %v4321 = vld [vmem:[#allocation5 + $0x12] sm:$0xff]
      %v4322 = vld [vmem:[#allocation5 + $0x1a] sm:$0xff]
      %v4323 = vld [vmem:[#allocation5 + $0x22] sm:$0xff]
      %v4324 = vld [vmem:[#allocation5 + $0x2a] sm:$0xff]
      %v4325 = vld [vmem:[#allocation5 + $0x32] sm:$0xff]
      %v4326 = vld [vmem:[#allocation5 + $0x3a] sm:$0xff]
      %v4327 = vld [vmem:[#allocation5 + $0x42] sm:$0xff]
      %v4328 = vld [vmem:[#allocation5 + $0x4a] sm:$0x1f]
      %v4329 = vld [vmem:[#allocation5 + $0xb] sm:$0xff]
      %v4330 = vld [vmem:[#allocation5 + $0x13] sm:$0xff]
      %v4331 = vld [vmem:[#allocation5 + $0x1b] sm:$0xff]
      %v4332 = vld [vmem:[#allocation5 + $0x23] sm:$0xff]
      %v4333 = vld [vmem:[#allocation5 + $0x2b] sm:$0xff]
      %v4334 = vld [vmem:[#allocation5 + $0x33] sm:$0xff]
      %v4335 = vld [vmem:[#allocation5 + $0x3b] sm:$0xff]
      %v4336 = vld [vmem:[#allocation5 + $0x43] sm:$0xff]
      %v4337 = vld [vmem:[#allocation5 + $0x4b] sm:$0x1f]
      %v4338 = vmax.f32 %v4320, %v4329
      %v4339 = vmax.f32 %v4321, %v4330
      %v4340 = vmax.f32 %v4322, %v4331
      %v4341 = vmax.f32 %v4323, %v4332
      %v4342 = vmax.f32 %v4324, %v4333
      %v4343 = vmax.f32 %v4325, %v4334
      %v4344 = vmax.f32 %v4326, %v4335
      %v4345 = vmax.f32 %v4327, %v4336
      %v4346 = vmax.f32 %v4328, %v4337
      %v4347 = vmax.f32 %v4311, %v4338
      %v4348 = vmax.f32 %v4312, %v4339
      %v4349 = vmax.f32 %v4313, %v4340
      %v4350 = vmax.f32 %v4314, %v4341
      %v4351 = vmax.f32 %v4315, %v4342
      %v4352 = vmax.f32 %v4316, %v4343
      %v4353 = vmax.f32 %v4317, %v4344
      %v4354 = vmax.f32 %v4318, %v4345
      %v4355 = vmax.f32 %v4319, %v4346
      %v4356 = vld [vmem:[%s6] sm:$0xff]
      %v4357 = vld [vmem:[%s6 + $0x8] sm:$0xff]
      %vm4358 = vcmask 564224
      %v4360 = vsel %vm4358, %v4356, 0
      %v4363 = vsel %vm4358, %v4357, 0
      %v4366 = vsel %vm3431, %v4355, 0
      %4368 = vmatpush.msra.mxu0 0.0
      %4369 = vmatpush.msra.mxu0 0.0
      %4370 = vmatpush.msra.mxu0 0.0
      %4371 = vmatpush.msra.mxu0 0.0
      %4372 = vmatpush.msra.mxu0 0.0
      %4373 = vmatpush.msra.mxu0 0.0
      %4374 = vmatpush.msra.mxu0 0.0
      %4375 = vmatpush.msra.mxu0 %v4366
      %4376 = vmatpush.msra.mxu0 %v4354
      %4377 = vmatpush.msra.mxu0 %v4353
      %4378 = vmatpush.msra.mxu0 %v4352
      %4379 = vmatpush.msra.mxu0 %v4351
      %4380 = vmatpush.msra.mxu0 %v4350
      %4381 = vmatpush.msra.mxu0 %v4349
      %4382 = vmatpush.msra.mxu0 %v4348
      %4383 = vmatpush.msra.mxu0 %v4347
      %4384 = vmatmul.f32.gmra.mxu0 %v4360
      %v4385 = vpop.f32.mrf.mxu0
      %v4386 = vadd.f32 0.0, %v4385
      %4387 = vmatmul.f32.gmra.mxu0 %v4363
      %v4388 = vpop.f32.mrf.mxu0
      %v4389 = vadd.f32 0.0, %v4388
      %4390 = vdwg.mxu0
      %v4391 = vpack.c.bf16 %v4389, %v4386
      %v4392 = vld [vmem:[%s7] sm:$0xf]
      %v4393 = vld [vmem:[%s7 + $0x4] sm:$0xf]
      %v4394 = vld [vmem:[%s7 + $0x8] sm:$0xf]
      %v4395 = vld [vmem:[%s7 + $0xc] sm:$0xf]
      %v4396 = vld [vmem:[%s8] sm:$0x1]
      %v4398 = vperm.slane %v4396, 0
      %v4404 = vunpack.c.l.b16 %v4392
      %v4405 = vunpack.c.l.b16 %v4393
      %v4406 = vunpack.c.l.b16 %v4394
      %v4407 = vunpack.c.l.b16 %v4395
      %v4408 = vpack.c.b16 %v4405, %v4404
      %v4409 = vpack.c.b16 %v4407, %v4406
      %v4413 = vsel %vm4282, %v4391, 0
      %4415 = vmatpush.bf16.msra.mxu0 0
      %4416 = vmatpush.bf16.msra.mxu0 0
      %4417 = vmatpush.bf16.msra.mxu0 0
      %4418 = vmatpush.bf16.msra.mxu0 0
      %4419 = vmatpush.bf16.msra.mxu0 0
      %4420 = vmatpush.bf16.msra.mxu0 0
      %4421 = vmatpush.bf16.msra.mxu0 %v4409
      %4422 = vmatpush.bf16.msra.mxu0 %v4408
      %4423 = vmatmul.bf16.gmra.mxu0 %v4413
      %v4424 = vpop.f32.mrf.mxu0
      %v4425 = vadd.f32 %v4398, %v4424
      %v4426 = vpop.f32.mrf.mxu0
      %v4427 = vadd.f32 %v4398, %v4426
      %4428 = vdwg.mxu0
      %v4429 = vmax.f32 %v4425, 0.0
      %v4430 = vmax.f32 %v4427, 0.0
      %v4431 = vpack.c.bf16 %v4430, %v4429
      %v4432 = vld [vmem:[%s9] sm:$0xf]
      %v4433 = vld [vmem:[%s9 + $0x4] sm:$0xf]
      %v4434 = vld [vmem:[%s9 + $0x8] sm:$0xf]
      %v4435 = vld [vmem:[%s9 + $0xc] sm:$0xf]
      %v4436 = vld [vmem:[%s9 + $0x10] sm:$0xf]
      %v4437 = vld [vmem:[%s9 + $0x14] sm:$0xf]
      %v4438 = vld [vmem:[%s9 + $0x18] sm:$0xf]
      %v4439 = vld [vmem:[%s9 + $0x1c] sm:$0xf]
      %v4440 = vld [vmem:[%s10] sm:$0x1]
      %v4442 = vperm.slane %v4440, 0
      %v4452 = vunpack.c.l.b16 %v4432
      %v4453 = vunpack.c.l.b16 %v4433
      %v4454 = vunpack.c.l.b16 %v4434
      %v4455 = vunpack.c.l.b16 %v4435
      %v4456 = vunpack.c.l.b16 %v4436
      %v4457 = vunpack.c.l.b16 %v4437
      %v4458 = vunpack.c.l.b16 %v4438
      %v4459 = vunpack.c.l.b16 %v4439
      %v4460 = vpack.c.b16 %v4453, %v4452
      %v4461 = vpack.c.b16 %v4455, %v4454
      %v4462 = vpack.c.b16 %v4457, %v4456
      %v4463 = vpack.c.b16 %v4459, %v4458
      %vm4468 = vcmask 523264
      %v4470 = vsel %vm4468, %v4431, 0
      %4472 = vmatpush.bf16.msra.mxu0 0
      %4473 = vmatpush.bf16.msra.mxu0 0
      %4474 = vmatpush.bf16.msra.mxu0 0
      %4475 = vmatpush.bf16.msra.mxu0 0
      %4476 = vmatpush.bf16.msra.mxu0 %v4463
      %4477 = vmatpush.bf16.msra.mxu0 %v4462
      %4478 = vmatpush.bf16.msra.mxu0 %v4461
      %4479 = vmatpush.bf16.msra.mxu0 %v4460
      %4480 = vmatmul.bf16.gmra.mxu0 %v4470
      %v4481 = vpop.f32.mrf.mxu0
      %v4482 = vadd.f32 %v4442, %v4481
      %v4483 = vpop.f32.mrf.mxu0
      %v4484 = vadd.f32 %v4442, %v4483
      %4485 = vdwg.mxu0
      %v4486 = vxor.u32 %v4482, 2147483648
      %v4487 = vxor.u32 %v4484, 2147483648
      %v4488 = vmul.f32 %v4486, 1.442695
      %v4489 = vpow.pop %v4488
      %v4490 = vmul.f32 %v4487, 1.442695
      %v4491 = vpow.pop %v4490
      %v4492 = vadd.f32 %v4489, 1.0
      %v4493 = vadd.f32 %v4491, 1.0
      %v4494 = vrcp.pop %v4492
      %v4495 = vmul.f32 %v4492, %v4494
      %v4496 = vsub.f32 1.0, %v4495
      %v4497 = vmul.f32 %v4494, %v4496
      %v4498 = vadd.f32 %v4494, %v4497
      %vm4499 = vweird.f32 %v4492
      %vm4500 = vweird.f32 %v4494
      %vm4501 = vmor %vm4499, %vm4500
      %v4502 = vsel %vm4501, %v4494, %v4498
      %v4503 = vand.u32 2147483647, %v4492
      %vm4504 = vcmp.eq.f32.partialorder %v4503, 8.507059e+37
      %v4505 = vand.u32 %v4492, 2147483648
      %v4506 = vor.u32 1.1754944e-38, %v4505
      %v4507 = vsel %vm4504, %v4506, %v4502
      %v4508 = vmul.f32 1.0, %v4507
      %v4509 = vrcp.pop %v4493
      %v4510 = vmul.f32 %v4493, %v4509
      %v4511 = vsub.f32 1.0, %v4510
      %v4512 = vmul.f32 %v4509, %v4511
      %v4513 = vadd.f32 %v4509, %v4512
      %vm4514 = vweird.f32 %v4493
      %vm4515 = vweird.f32 %v4509
      %vm4516 = vmor %vm4514, %vm4515
      %v4517 = vsel %vm4516, %v4509, %v4513
      %v4518 = vand.u32 2147483647, %v4493
      %vm4519 = vcmp.eq.f32.partialorder %v4518, 8.507059e+37
      %v4520 = vand.u32 %v4493, 2147483648
      %v4521 = vor.u32 1.1754944e-38, %v4520
      %v4522 = vsel %vm4519, %v4521, %v4517
      %v4523 = vmul.f32 1.0, %v4522
      %4524 = vst.msk [vmem:[%s388] sm:$0xff] %vm3077, %v4508
      %4525 = vst.msk [vmem:[%s388 + $0x8] sm:$0xff] %vm3077, %v4523
      %s4526 = smul.u32 2, %s22
      %p4527 = scmp.lt.s32.totalorder %s4526, 3
      %s4528 = scalar_select %p4527, %s4526, 3
      %s4529 = smul.addr %s4528, 8
      %s4530 = scalar_lea.vmem %s11, %s4529
      // Predicated region
      $region65: #{simple_unet_forward.1} parent=63 // pred_check
        %p4531 = pneg %p276
      $region66: #{simple_unet_forward.1} parent=63 // pred_check_branch
        %4533 = sbr.rel (%p4531) target = $region68
      $region67: #{simple_unet_forward.1} parent=63 // pred_region
        %s4534 = smul.u32 2, %s22
      $region68: #{simple_unet_forward.1} parent=63 // pred_fallthru
        _
    $region64: #{simple_unet_forward.1} parent=5 // pred_fallthru
      _
    %p4535 = scmp.le.s32.totalorder 2, %s17
    // Predicated region
    $region69: #{simple_unet_forward.1} parent=5 // pred_check
      %p4536 = pneg %p4535
    $region70: #{simple_unet_forward.1} parent=5 // pred_check_branch
      %4538 = sbr.rel (%p4536) target = $region72
    $region71: #{simple_unet_forward.1} parent=5 // pred_region
      %s4539 = ssub.s32 %s17, 2
      // Predicated region
      $region73: #{simple_unet_forward.1} parent=71 // pred_check
        %p4540 = pneg %p282
      $region74: #{simple_unet_forward.1} parent=71 // pred_check_branch
        %4542 = sbr.rel (%p4540) target = $region76
      $region75: #{simple_unet_forward.1} parent=71 // pred_region
        %s4543 = smul.u32 2, %s23
        %p4544 = scmp.lt.s32.totalorder %s4543, 3
        %s4545 = scalar_select %p4544, %s4543, 3
        %s4546 = smul.addr %s4545, 8
        %s4547 = scalar_lea.vmem %s11, %s4546
      $region76: #{simple_unet_forward.1} parent=71 // pred_fallthru
        _
    $region72: #{simple_unet_forward.1} parent=5 // pred_fallthru
      _
  $region6: #{simple_unet_forward.1} parent=0 // loop_footer
    %s21 = sadd.s32 1, %s17
  $region7: #{simple_unet_forward.1} parent=0 // loop_footer_branch
    %16 = sbr.rel target = $region3
  $region8: #{simple_unet_forward.1} parent=0 // loop_exit
    _

</llo_original>
